<compile_context>
chip_gen: v7x
topology: tpu7x:2x2x1
jax: 0.10.0
libtpu: 0.0.40
codegen_flags: <defaults>
</compile_context>

<pallas_src>
import math
from functools import partial

import jax
import jax.numpy as jnp
from jax.experimental import pallas as pl
from jax.experimental.pallas import tpu as pltpu


# --------------------------------------------------------------------------- helpers

def _choose_tile(s, align, target):
    """Largest t <= target with t % align == 0, t % 128 == 0, s % t == 0; else s."""
    if s <= target:
        return s
    base = align * 128 // math.gcd(align, 128)   # lcm(align, 128)
    t = (min(target, s) // base) * base
    while t >= base:
        if s % t == 0:
            return t
        t -= base
    return s


def _vmem_limit(estimate_bytes):
    # Explicit scoped-VMEM limit: 2x headroom, clamped to v7x's 64 MiB physical VMEM
    # (also well under v5e/v6e's 128 MiB).
    return int(min(max(2 * estimate_bytes, 32 * 1024 * 1024), 64 * 1024 * 1024))


# --------------------------------------------------------------------------- pass 1

def _proj_kernel(xt_ref, xo_ref, thw_ref, thb_ref, phw_ref, phb_ref, bd_ref, linb_ref,
                 theta_out, phit_out, g_out, gate_out):
    """Per (batch, S-tile): theta/phi 1x1 convs + fused to_hidden Linear+SiLU+chunk."""
    c_int = thw_ref.shape[0]
    xt = xt_ref[...]                                   # (C, tp) f32
    xo = xo_ref[...]                                   # (C, tp) f32

    # theta(x_this), phi(x_other): channel-mixing matmuls, lane dim = tp (dense).
    theta = jnp.dot(thw_ref[...], xt, preferred_element_type=jnp.float32) + thb_ref[...]
    theta_out[...] = theta.astype(theta_out.dtype)     # (c_int, tp) -> bf16

    phi = jnp.dot(phw_ref[...], xo, preferred_element_type=jnp.float32) + phb_ref[...]
    phit_out[...] = phi.T.astype(phit_out.dtype)       # pre-transposed (tp, c_int) bf16

    # to_hidden: per-row Linear over the W axis expressed as ONE matmul against the
    # block-diagonal kron(I_r, lin_w^T) matrix, then SiLU, then channel chunk.
    pre = jnp.dot(xo, bd_ref[...], preferred_element_type=jnp.float32) + linb_ref[...]
    hid = pre * jax.nn.sigmoid(pre)                    # SiLU, (C, tp)
    g_out[...] = hid[:c_int, :].astype(g_out.dtype)    # chunk 1 (channels)  -> bf16
    gate_out[...] = hid[c_int:, :].astype(gate_out.dtype)  # chunk 2 (channels) -> f32


# --------------------------------------------------------------------------- pass 2

def _attn_kernel(phit_ref, theta_ref, g_ref, gate_ref, xthis_ref,
                 wzw_ref, wzb_ref, bns_ref, bnsh_ref,
                 out_ref, m_s, l_s, acc_s):
    """Flash-style embedded-Gaussian attention + gating + W_z/BN + residual."""
    k_idx = pl.program_id(2)

    @pl.when(k_idx == 0)
    def _init():
        m_s[...] = jnp.full(m_s.shape, -jnp.inf, dtype=m_s.dtype)
        l_s[...] = jnp.zeros(l_s.shape, dtype=l_s.dtype)
        acc_s[...] = jnp.zeros(acc_s.shape, dtype=acc_s.dtype)

    # scores f[i, j] = sum_c phi[c, i] * theta[c, j]   (bf16 MXU, f32 accumulate)
    s = jnp.dot(phit_ref[...], theta_ref[...], preferred_element_type=jnp.float32)  # (tq, tk)

    m_prev = m_s[...]
    m_new = jnp.maximum(m_prev, jnp.max(s, axis=-1, keepdims=True))
    alpha = jnp.exp(m_prev - m_new)
    p = jnp.exp(s - m_new)
    l_s[...] = alpha * l_s[...] + jnp.sum(p, axis=-1, keepdims=True)
    # y += p @ g^T   (NT matmul, bf16 inputs, f32 accumulate)
    pv = jax.lax.dot_general(p.astype(jnp.bfloat16), g_ref[...],
                             (((1,), (1,)), ((), ())),
                             preferred_element_type=jnp.float32)                    # (tq, c_int)
    acc_s[...] = alpha * acc_s[...] + pv
    m_s[...] = m_new

    @pl.when(k_idx == pl.num_programs(2) - 1)
    def _finalize():
        # softmax normalization on the EUP (free bundle slot)
        y = acc_s[...] * pl.reciprocal(l_s[...], approx=True)     # (tq, c_int)
        yg = y.T * gate_ref[...]                                  # (c_int, tq)
        wy = jnp.dot(wzw_ref[...], yg, preferred_element_type=jnp.float32) + wzb_ref[...]
        wy = wy * bns_ref[...] + bnsh_ref[...]                    # folded inference BN
        out_ref[...] = (wy + xthis_ref[...]).astype(out_ref.dtype)


# --------------------------------------------------------------------------- wrapper

@partial(jax.jit, static_argnames=("tile_q", "tile_k", "tile_p"))
def nlblock_cross_forward(x_this, x_other, params, *, tile_q=256, tile_k=256, tile_p=None):
    """x_this, x_other: NCHW float32.  Returns NCHW float32."""
    B, C, H, W = x_this.shape
    c_int = C // 2
    assert W == c_int, "to_hidden Linear(inter, inter) requires last spatial dim == inter_channels"
    S = H * W

    # Free reshapes (no data movement): NCHW -> (B, C, S), s = h*W + w.
    x_this_cs = x_this.reshape(B, C, S)
    x_other_cs = x_other.reshape(B, C, S)

    tq = _choose_tile(S, 1, tile_q)
    tk = _choose_tile(S, 1, tile_k)
    tp = _choose_tile(S, W, tile_p if tile_p is not None else max(tile_q, tile_k))
    nq, nk, npt = S // tq, S // tk, S // tp

    # Folded inference BatchNorm.
    eps = 1e-5
    scale_v = params["bn_gamma"] / jnp.sqrt(params["bn_var"] + eps)
    shift_v = params["bn_beta"] - params["bn_mean"] * scale_v
    bn_scale = scale_v[:, None]                      # (C, 1)
    bn_shift = shift_v[:, None]                      # (C, 1)

    # Block-diagonal matrix implementing the per-row Linear over the W axis on a tile.
    r = tp // W
    bd = jnp.kron(jnp.eye(r, dtype=jnp.float32), params["lin_w"].T.astype(jnp.float32))  # (tp, tp)
    lin_b_row = jnp.tile(params["lin_b"], r)[None, :]                                    # (1, tp)

    f32b, bf16b = 4, 2

    # ---------------- pass 1: projections (theta, phi^T, g, gate) ----------------
    vmem1 = _vmem_limit(2 * (2 * C * tp * f32b + tp * tp * f32b
                             + 3 * c_int * tp * bf16b + c_int * tp * f32b))
    cmap2 = lambda b, i: (0, 0)
    theta_all, phit_all, g_all, gate_all = pl.pallas_call(
        _proj_kernel,
        out_shape=(
            jax.ShapeDtypeStruct((B, c_int, S), jnp.bfloat16),   # theta(x_this)
            jax.ShapeDtypeStruct((B, S, c_int), jnp.bfloat16),   # phi(x_other)^T
            jax.ShapeDtypeStruct((B, c_int, S), jnp.bfloat16),   # g  (to_hidden chunk 1)
            jax.ShapeDtypeStruct((B, c_int, S), jnp.float32),    # gate (to_hidden chunk 2)
        ),
        grid_spec=pltpu.PrefetchScalarGridSpec(
            num_scalar_prefetch=0,
            grid=(B, npt),
            in_specs=[
                pl.BlockSpec((None, C, tp), lambda b, i: (b, 0, i)),   # x_this tile
                pl.BlockSpec((None, C, tp), lambda b, i: (b, 0, i)),   # x_other tile
                pl.BlockSpec((c_int, C), cmap2),                       # theta_w
                pl.BlockSpec((c_int, 1), cmap2),                       # theta_b
                pl.BlockSpec((c_int, C), cmap2),                       # phi_w
                pl.BlockSpec((c_int, 1), cmap2),                       # phi_b
                pl.BlockSpec((tp, tp), cmap2),                         # block-diag lin_w^T
                pl.BlockSpec((1, tp), cmap2),                          # tiled lin_b
            ],
            out_specs=[
                pl.BlockSpec((None, c_int, tp), lambda b, i: (b, 0, i)),
                pl.BlockSpec((None, tp, c_int), lambda b, i: (b, i, 0)),
                pl.BlockSpec((None, c_int, tp), lambda b, i: (b, 0, i)),
                pl.BlockSpec((None, c_int, tp), lambda b, i: (b, 0, i)),
            ],
        ),
        compiler_params=pltpu.CompilerParams(
            dimension_semantics=("parallel", "parallel"),
            vmem_limit_bytes=vmem1),
    )(x_this_cs, x_other_cs,
      params["theta_w"], params["theta_b"][:, None],
      params["phi_w"], params["phi_b"][:, None],
      bd, lin_b_row)

    # ---------------- pass 2: flash attention + gate + W_z/BN + residual ----------------
    vmem2 = _vmem_limit(2 * (tq * c_int * bf16b + 2 * c_int * tk * bf16b
                             + c_int * tq * f32b + 2 * C * tq * f32b + C * c_int * f32b)
                        + (2 * tq + tq * c_int) * f32b + 3 * tq * tk * f32b)
    cmap3 = lambda b, q, k: (0, 0)
    out_cs = pl.pallas_call(
        _attn_kernel,
        out_shape=jax.ShapeDtypeStruct((B, C, S), jnp.float32),
        grid_spec=pltpu.PrefetchScalarGridSpec(
            num_scalar_prefetch=0,
            grid=(B, nq, nk),
            in_specs=[
                pl.BlockSpec((None, tq, c_int), lambda b, q, k: (b, q, 0)),   # phi^T  (query)
                pl.BlockSpec((None, c_int, tk), lambda b, q, k: (b, 0, k)),   # theta  (key)
                pl.BlockSpec((None, c_int, tk), lambda b, q, k: (b, 0, k)),   # g      (key)
                pl.BlockSpec((None, c_int, tq), lambda b, q, k: (b, 0, q)),   # gate   (query)
                pl.BlockSpec((None, C, tq), lambda b, q, k: (b, 0, q)),       # x_this (residual)
                pl.BlockSpec((C, c_int), cmap3),                              # wz_w
                pl.BlockSpec((C, 1), cmap3),                                  # wz_b
                pl.BlockSpec((C, 1), cmap3),                                  # BN scale
                pl.BlockSpec((C, 1), cmap3),                                  # BN shift
            ],
            out_specs=pl.BlockSpec((None, C, tq), lambda b, q, k: (b, 0, q)),
            scratch_shapes=[
                pltpu.VMEM((tq, 1), jnp.float32),       # running max
                pltpu.VMEM((tq, 1), jnp.float32),       # running sum
                pltpu.VMEM((tq, c_int), jnp.float32),   # output accumulator
            ],
        ),
        compiler_params=pltpu.CompilerParams(
            dimension_semantics=("parallel", "parallel", "arbitrary"),
            vmem_limit_bytes=vmem2),
    )(phit_all, theta_all, g_all, gate_all, x_this_cs,
      params["wz_w"], params["wz_b"][:, None], bn_scale, bn_shift)

    return out_cs.reshape(B, C, H, W)


# --------------------------------------------------------------------------- reference

def ref_forward(x_this, x_other, params):
    """Pure-JAX mirror of the PyTorch forward (mode='embedded', inference BN)."""
    B, C, H, W = x_this.shape
    c_int = C // 2
    theta = jnp.einsum("bchw,oc->bohw", x_this, params["theta_w"]) \
        + params["theta_b"][None, :, None, None]
    phi = jnp.einsum("bchw,oc->bohw", x_other, params["phi_w"]) \
        + params["phi_b"][None, :, None, None]
    pre = jnp.einsum("bchw,vw->bchv", x_other, params["lin_w"]) \
        + params["lin_b"][None, None, None, :]
    hid = pre * jax.nn.sigmoid(pre)
    g_chunk, gate = hid[:, :c_int], hid[:, c_int:]
    g_x = g_chunk.reshape(B, c_int, -1).transpose(0, 2, 1)
    theta_x = theta.reshape(B, c_int, -1)
    phi_x = phi.reshape(B, c_int, -1).transpose(0, 2, 1)
    f = jnp.einsum("bic,bcj->bij", phi_x, theta_x)
    f_div = jax.nn.softmax(f, axis=-1)
    y = jnp.einsum("bij,bjc->bic", f_div, g_x)
    y = y.transpose(0, 2, 1).reshape(B, c_int, H, W)
    y = y * gate
    wy = jnp.einsum("bchw,oc->bohw", y, params["wz_w"]) + params["wz_b"][None, :, None, None]
    eps = 1e-5
    scale = params["bn_gamma"] / jnp.sqrt(params["bn_var"] + eps)
    shift = params["bn_beta"] - params["bn_mean"] * scale
    wy = wy * scale[None, :, None, None] + shift[None, :, None, None]
    return wy + x_this


# --------------------------------------------------------------------------- test

if __name__ == "__main__":
    B, C, H = 2, 16, 32
    c_int = C // 2
    W = c_int            # required by the module's to_hidden Linear(inter, inter)
    # S = H * W = 256 -> with tile_q = tile_k = 128 this exercises a real
    # multi-tile online-softmax grid: (B, 2, 2).

    key = jax.random.PRNGKey(0)
    ks = jax.random.split(key, 12)
    x_this = jax.random.normal(ks[0], (B, C, H, W), jnp.float32)
    x_other = jax.random.normal(ks[1], (B, C, H, W), jnp.float32)

    params = dict(
        theta_w=0.1 * jax.random.normal(ks[2], (c_int, C), jnp.float32),
        theta_b=0.1 * jax.random.normal(ks[3], (c_int,), jnp.float32),
        phi_w=0.1 * jax.random.normal(ks[4], (c_int, C), jnp.float32),
        phi_b=0.1 * jax.random.normal(ks[5], (c_int,), jnp.float32),
        lin_w=0.1 * jax.random.normal(ks[6], (c_int, c_int), jnp.float32),
        lin_b=0.1 * jax.random.normal(ks[7], (c_int,), jnp.float32),
        wz_w=0.1 * jax.random.normal(ks[8], (C, c_int), jnp.float32),
        wz_b=0.1 * jax.random.normal(ks[9], (C,), jnp.float32),
        # Module init: BN gamma = beta = 0 (block is identity at init).
        bn_gamma=jnp.zeros((C,), jnp.float32),
        bn_beta=jnp.zeros((C,), jnp.float32),
        bn_mean=jnp.zeros((C,), jnp.float32),
        bn_var=jnp.ones((C,), jnp.float32),
    )

    # 1) Faithful init (gamma=beta=0): output must equal the residual input.
    out0 = jax.block_until_ready(
        nlblock_cross_forward(x_this, x_other, params, tile_q=128, tile_k=128, tile_p=128))
    assert out0.shape == x_this.shape and out0.dtype == jnp.float32
    assert jnp.allclose(out0, x_this, atol=1e-5, rtol=1e-5), "identity-at-init check failed"

    # 2) Exercise the full numeric path (BN gamma=1) and compare to the JAX reference.
    #    Tolerance accounts for bf16 MXU inputs + approx reciprocal.
    params2 = dict(params, bn_gamma=jnp.ones((C,), jnp.float32))
    out2 = jax.block_until_ready(
        nlblock_cross_forward(x_this, x_other, params2, tile_q=128, tile_k=128, tile_p=128))
    ref2 = ref_forward(x_this, x_other, params2)
    assert jnp.allclose(out2, ref2, atol=1e-2, rtol=1e-2), "full-path numeric check failed"

    print("KERNEL_OK")
</pallas_src>

<mosaic_0001>
module attributes {stable_mosaic.version = 11 : i64} {
  func.func @_proj_kernel(%arg0: i32, %arg1: i32, %arg2: memref<1x16x128xf32, #tpu.memory_space<vmem>>, %arg3: memref<1x16x128xf32, #tpu.memory_space<vmem>>, %arg4: memref<8x16xf32, #tpu.memory_space<vmem>>, %arg5: memref<8x1xf32, #tpu.memory_space<vmem>>, %arg6: memref<8x16xf32, #tpu.memory_space<vmem>>, %arg7: memref<8x1xf32, #tpu.memory_space<vmem>>, %arg8: memref<128x128xf32, #tpu.memory_space<vmem>>, %arg9: memref<1x128xf32, #tpu.memory_space<vmem>>, %arg10: memref<1x8x128xbf16, #tpu.memory_space<vmem>>, %arg11: memref<1x128x8xbf16, #tpu.memory_space<vmem>>, %arg12: memref<1x8x128xbf16, #tpu.memory_space<vmem>>, %arg13: memref<1x8x128xf32, #tpu.memory_space<vmem>>) attributes {dimension_semantics = [#tpu.dimension_semantics<parallel>, #tpu.dimension_semantics<parallel>], iteration_bounds = array<i64: 2, 2>, scalar_prefetch = 0 : i64, scratch_operands = 0 : i64, tpu.core_type = #tpu.core_type<tc>, window_params = [{transform_indices = @transform_0, window_bounds = array<i64: 1, 16, 128>}, {transform_indices = @transform_1, window_bounds = array<i64: 1, 16, 128>}, {pipeline_mode = #tpu.pipeline_mode<synchronous>, transform_indices = @transform_2, window_bounds = array<i64: 8, 16>}, {pipeline_mode = #tpu.pipeline_mode<synchronous>, transform_indices = @transform_3, window_bounds = array<i64: 8, 1>}, {pipeline_mode = #tpu.pipeline_mode<synchronous>, transform_indices = @transform_4, window_bounds = array<i64: 8, 16>}, {pipeline_mode = #tpu.pipeline_mode<synchronous>, transform_indices = @transform_5, window_bounds = array<i64: 8, 1>}, {pipeline_mode = #tpu.pipeline_mode<synchronous>, transform_indices = @transform_6, window_bounds = array<i64: 128, 128>}, {pipeline_mode = #tpu.pipeline_mode<synchronous>, transform_indices = @transform_7, window_bounds = array<i64: 1, 128>}, {transform_indices = @transform_8, window_bounds = array<i64: 1, 8, 128>}, {transform_indices = @transform_9, window_bounds = array<i64: 1, 128, 8>}, {transform_indices = @transform_10, window_bounds = array<i64: 1, 8, 128>}, {transform_indices = @transform_11, window_bounds = array<i64: 1, 8, 128>}]} {
    %c0 = arith.constant 0 : index
    %c0_0 = arith.constant 0 : index
    %c0_1 = arith.constant 0 : index
    %0 = vector.load %arg2[%c0, %c0_0, %c0_1] : memref<1x16x128xf32, #tpu.memory_space<vmem>>, vector<1x16x128xf32>
    %1 = vector.shape_cast %0 : vector<1x16x128xf32> to vector<16x128xf32>
    %c0_2 = arith.constant 0 : index
    %c0_3 = arith.constant 0 : index
    %c0_4 = arith.constant 0 : index
    %2 = vector.load %arg3[%c0_2, %c0_3, %c0_4] : memref<1x16x128xf32, #tpu.memory_space<vmem>>, vector<1x16x128xf32>
    %3 = vector.shape_cast %2 : vector<1x16x128xf32> to vector<16x128xf32>
    %c0_5 = arith.constant 0 : index
    %c0_6 = arith.constant 0 : index
    %4 = vector.load %arg4[%c0_5, %c0_6] : memref<8x16xf32, #tpu.memory_space<vmem>>, vector<8x16xf32>
    %cst = arith.constant dense<0.000000e+00> : vector<8x128xf32>
    %5 = tpu.matmul %4, %1, %cst {dimension_numbers = #tpu.dot_dimension_numbers<[1], [0], [0], [1], [0, 0, 1, 1], [], []>} : vector<8x16xf32>, vector<16x128xf32>, vector<8x128xf32> -> vector<8x128xf32>
    %c0_7 = arith.constant 0 : index
    %c0_8 = arith.constant 0 : index
    %6 = vector.load %arg5[%c0_7, %c0_8] : memref<8x1xf32, #tpu.memory_space<vmem>>, vector<8x1xf32>
    %7 = vector.broadcast %6 : vector<8x1xf32> to vector<8x128xf32>
    %8 = arith.addf %5, %7 : vector<8x128xf32>
    %9 = arith.truncf %8 : vector<8x128xf32> to vector<8x128xbf16>
    %c0_9 = arith.constant 0 : index
    %c0_10 = arith.constant 0 : index
    %c0_11 = arith.constant 0 : index
    %10 = vector.load %arg10[%c0_9, %c0_10, %c0_11] : memref<1x8x128xbf16, #tpu.memory_space<vmem>>, vector<1x8x128xbf16>
    %11 = vector.shape_cast %10 : vector<1x8x128xbf16> to vector<8x128xbf16>
    %12 = vector.shape_cast %9 : vector<8x128xbf16> to vector<1x8x128xbf16>
    tpu.vector_store %arg10[%c0_9, %c0_10, %c0_11], %12 {strides = array<i32>} : memref<1x8x128xbf16, #tpu.memory_space<vmem>>, vector<1x8x128xbf16>,
    %c0_12 = arith.constant 0 : index
    %c0_13 = arith.constant 0 : index
    %13 = vector.load %arg6[%c0_12, %c0_13] : memref<8x16xf32, #tpu.memory_space<vmem>>, vector<8x16xf32>
    %cst_14 = arith.constant dense<0.000000e+00> : vector<8x128xf32>
    %14 = tpu.matmul %13, %3, %cst_14 {dimension_numbers = #tpu.dot_dimension_numbers<[1], [0], [0], [1], [0, 0, 1, 1], [], []>} : vector<8x16xf32>, vector<16x128xf32>, vector<8x128xf32> -> vector<8x128xf32>
    %c0_15 = arith.constant 0 : index
    %c0_16 = arith.constant 0 : index
    %15 = vector.load %arg7[%c0_15, %c0_16] : memref<8x1xf32, #tpu.memory_space<vmem>>, vector<8x1xf32>
    %16 = vector.broadcast %15 : vector<8x1xf32> to vector<8x128xf32>
    %17 = arith.addf %14, %16 : vector<8x128xf32>
    %18 = tpu.transpose %17, [1, 0] : vector<8x128xf32> -> vector<128x8xf32>
    %19 = arith.truncf %18 : vector<128x8xf32> to vector<128x8xbf16>
    %c0_17 = arith.constant 0 : index
    %c0_18 = arith.constant 0 : index
    %c0_19 = arith.constant 0 : index
    %20 = vector.load %arg11[%c0_17, %c0_18, %c0_19] : memref<1x128x8xbf16, #tpu.memory_space<vmem>>, vector<1x128x8xbf16>
    %21 = vector.shape_cast %20 : vector<1x128x8xbf16> to vector<128x8xbf16>
    %22 = vector.shape_cast %19 : vector<128x8xbf16> to vector<1x128x8xbf16>
    tpu.vector_store %arg11[%c0_17, %c0_18, %c0_19], %22 {strides = array<i32>} : memref<1x128x8xbf16, #tpu.memory_space<vmem>>, vector<1x128x8xbf16>,
    %c0_20 = arith.constant 0 : index
    %c0_21 = arith.constant 0 : index
    %23 = vector.load %arg8[%c0_20, %c0_21] : memref<128x128xf32, #tpu.memory_space<vmem>>, vector<128x128xf32>
    %cst_22 = arith.constant dense<0.000000e+00> : vector<16x128xf32>
    %24 = tpu.matmul %3, %23, %cst_22 {dimension_numbers = #tpu.dot_dimension_numbers<[1], [0], [0], [1], [0, 0, 1, 1], [], []>} : vector<16x128xf32>, vector<128x128xf32>, vector<16x128xf32> -> vector<16x128xf32>
    %c0_23 = arith.constant 0 : index
    %c0_24 = arith.constant 0 : index
    %25 = vector.load %arg9[%c0_23, %c0_24] : memref<1x128xf32, #tpu.memory_space<vmem>>, vector<1x128xf32>
    %26 = vector.broadcast %25 : vector<1x128xf32> to vector<16x128xf32>
    %27 = arith.addf %24, %26 : vector<16x128xf32>
    %28 = arith.negf %27 : vector<16x128xf32>
    %29 = math.exp %28 : vector<16x128xf32>
    %cst_25 = arith.constant 1.000000e+00 : f32
    %30 = vector.broadcast %cst_25 : f32 to vector<16x128xf32>
    %31 = arith.addf %30, %29 : vector<16x128xf32>
    %32 = arith.divf %30, %31 : vector<16x128xf32>
    %33 = arith.mulf %27, %32 : vector<16x128xf32>
    %34 = vector.extract_strided_slice %33 {offsets = [0, 0], sizes = [8, 128], strides = [1, 1]} : vector<16x128xf32> to vector<8x128xf32>
    %35 = arith.truncf %34 : vector<8x128xf32> to vector<8x128xbf16>
    %c0_26 = arith.constant 0 : index
    %c0_27 = arith.constant 0 : index
    %c0_28 = arith.constant 0 : index
    %36 = vector.load %arg12[%c0_26, %c0_27, %c0_28] : memref<1x8x128xbf16, #tpu.memory_space<vmem>>, vector<1x8x128xbf16>
    %37 = vector.shape_cast %36 : vector<1x8x128xbf16> to vector<8x128xbf16>
    %38 = vector.shape_cast %35 : vector<8x128xbf16> to vector<1x8x128xbf16>
    tpu.vector_store %arg12[%c0_26, %c0_27, %c0_28], %38 {strides = array<i32>} : memref<1x8x128xbf16, #tpu.memory_space<vmem>>, vector<1x8x128xbf16>,
    %39 = vector.extract_strided_slice %33 {offsets = [8, 0], sizes = [8, 128], strides = [1, 1]} : vector<16x128xf32> to vector<8x128xf32>
    %c0_29 = arith.constant 0 : index
    %c0_30 = arith.constant 0 : index
    %c0_31 = arith.constant 0 : index
    %40 = vector.load %arg13[%c0_29, %c0_30, %c0_31] : memref<1x8x128xf32, #tpu.memory_space<vmem>>, vector<1x8x128xf32>
    %41 = vector.shape_cast %40 : vector<1x8x128xf32> to vector<8x128xf32>
    %42 = vector.shape_cast %39 : vector<8x128xf32> to vector<1x8x128xf32>
    tpu.vector_store %arg13[%c0_29, %c0_30, %c0_31], %42 {strides = array<i32>} : memref<1x8x128xf32, #tpu.memory_space<vmem>>, vector<1x8x128xf32>,
    return
  }
  func.func @transform_0(%arg0: i32, %arg1: i32) -> (i32, i32, i32) {
    %c0_i32 = arith.constant 0 : i32
    %c0_i32_0 = arith.constant 0 : i32
    return %arg0, %c0_i32, %arg1 : i32, i32, i32
  }
  func.func @transform_1(%arg0: i32, %arg1: i32) -> (i32, i32, i32) {
    %c0_i32 = arith.constant 0 : i32
    %c0_i32_0 = arith.constant 0 : i32
    return %arg0, %c0_i32, %arg1 : i32, i32, i32
  }
  func.func @transform_2(%arg0: i32, %arg1: i32) -> (i32, i32) {
    %c0_i32 = arith.constant 0 : i32
    %c0_i32_0 = arith.constant 0 : i32
    %c0_i32_1 = arith.constant 0 : i32
    return %c0_i32, %c0_i32_0 : i32, i32
  }
  func.func @transform_3(%arg0: i32, %arg1: i32) -> (i32, i32) {
    %c0_i32 = arith.constant 0 : i32
    %c0_i32_0 = arith.constant 0 : i32
    %c0_i32_1 = arith.constant 0 : i32
    return %c0_i32, %c0_i32_0 : i32, i32
  }
  func.func @transform_4(%arg0: i32, %arg1: i32) -> (i32, i32) {
    %c0_i32 = arith.constant 0 : i32
    %c0_i32_0 = arith.constant 0 : i32
    %c0_i32_1 = arith.constant 0 : i32
    return %c0_i32, %c0_i32_0 : i32, i32
  }
  func.func @transform_5(%arg0: i32, %arg1: i32) -> (i32, i32) {
    %c0_i32 = arith.constant 0 : i32
    %c0_i32_0 = arith.constant 0 : i32
    %c0_i32_1 = arith.constant 0 : i32
    return %c0_i32, %c0_i32_0 : i32, i32
  }
  func.func @transform_6(%arg0: i32, %arg1: i32) -> (i32, i32) {
    %c0_i32 = arith.constant 0 : i32
    %c0_i32_0 = arith.constant 0 : i32
    %c0_i32_1 = arith.constant 0 : i32
    return %c0_i32, %c0_i32_0 : i32, i32
  }
  func.func @transform_7(%arg0: i32, %arg1: i32) -> (i32, i32) {
    %c0_i32 = arith.constant 0 : i32
    %c0_i32_0 = arith.constant 0 : i32
    %c0_i32_1 = arith.constant 0 : i32
    return %c0_i32, %c0_i32_0 : i32, i32
  }
  func.func @transform_8(%arg0: i32, %arg1: i32) -> (i32, i32, i32) {
    %c0_i32 = arith.constant 0 : i32
    %c0_i32_0 = arith.constant 0 : i32
    return %arg0, %c0_i32, %arg1 : i32, i32, i32
  }
  func.func @transform_9(%arg0: i32, %arg1: i32) -> (i32, i32, i32) {
    %c0_i32 = arith.constant 0 : i32
    %c0_i32_0 = arith.constant 0 : i32
    return %arg0, %arg1, %c0_i32 : i32, i32, i32
  }
  func.func @transform_10(%arg0: i32, %arg1: i32) -> (i32, i32, i32) {
    %c0_i32 = arith.constant 0 : i32
    %c0_i32_0 = arith.constant 0 : i32
    return %arg0, %c0_i32, %arg1 : i32, i32, i32
  }
  func.func @transform_11(%arg0: i32, %arg1: i32) -> (i32, i32, i32) {
    %c0_i32 = arith.constant 0 : i32
    %c0_i32_0 = arith.constant 0 : i32
    return %arg0, %c0_i32, %arg1 : i32, i32, i32
  }
}

module attributes {stable_mosaic.version = 11 : i64} {
  func.func @_attn_kernel(%arg0: i32, %arg1: i32, %arg2: i32, %arg3: memref<1x128x8xbf16, #tpu.memory_space<vmem>>, %arg4: memref<1x8x128xbf16, #tpu.memory_space<vmem>>, %arg5: memref<1x8x128xbf16, #tpu.memory_space<vmem>>, %arg6: memref<1x8x128xf32, #tpu.memory_space<vmem>>, %arg7: memref<1x16x128xf32, #tpu.memory_space<vmem>>, %arg8: memref<16x8xf32, #tpu.memory_space<vmem>>, %arg9: memref<16x1xf32, #tpu.memory_space<vmem>>, %arg10: memref<16x1xf32, #tpu.memory_space<vmem>>, %arg11: memref<16x1xf32, #tpu.memory_space<vmem>>, %arg12: memref<1x16x128xf32, #tpu.memory_space<vmem>>, %arg13: memref<128x1xf32, #tpu.memory_space<vmem>>, %arg14: memref<128x1xf32, #tpu.memory_space<vmem>>, %arg15: memref<128x8xf32, #tpu.memory_space<vmem>>) attributes {dimension_semantics = [#tpu.dimension_semantics<parallel>, #tpu.dimension_semantics<parallel>, #tpu.dimension_semantics<arbitrary>], iteration_bounds = array<i64: 2, 2, 2>, scalar_prefetch = 0 : i64, scratch_operands = 3 : i64, tpu.core_type = #tpu.core_type<tc>, window_params = [{transform_indices = @transform_0, window_bounds = array<i64: 1, 128, 8>}, {transform_indices = @transform_1, window_bounds = array<i64: 1, 8, 128>}, {transform_indices = @transform_2, window_bounds = array<i64: 1, 8, 128>}, {transform_indices = @transform_3, window_bounds = array<i64: 1, 8, 128>}, {transform_indices = @transform_4, window_bounds = array<i64: 1, 16, 128>}, {pipeline_mode = #tpu.pipeline_mode<synchronous>, transform_indices = @transform_5, window_bounds = array<i64: 16, 8>}, {pipeline_mode = #tpu.pipeline_mode<synchronous>, transform_indices = @transform_6, window_bounds = array<i64: 16, 1>}, {pipeline_mode = #tpu.pipeline_mode<synchronous>, transform_indices = @transform_7, window_bounds = array<i64: 16, 1>}, {pipeline_mode = #tpu.pipeline_mode<synchronous>, transform_indices = @transform_8, window_bounds = array<i64: 16, 1>}, {transform_indices = @transform_9, window_bounds = array<i64: 1, 16, 128>}]} {
    %c0_i32 = arith.constant 0 : i32
    %0 = arith.cmpi eq, %arg2, %c0_i32 : i32
    %1 = arith.extui %0 : i1 to i32
    %c0_i32_0 = arith.constant 0 : i32
    %2 = arith.cmpi ne, %1, %c0_i32_0 : i32
    scf.if %2 {
      %cst_25 = arith.constant 0xFF800000 : f32
      %36 = vector.broadcast %cst_25 : f32 to vector<128x1xf32>
      %c0_26 = arith.constant 0 : index
      %c0_27 = arith.constant 0 : index
      %37 = vector.load %arg13[%c0_26, %c0_27] : memref<128x1xf32, #tpu.memory_space<vmem>>, vector<128x1xf32>
      tpu.vector_store %arg13[%c0_26, %c0_27], %36 {strides = array<i32>} : memref<128x1xf32, #tpu.memory_space<vmem>>, vector<128x1xf32>,
      %cst_28 = arith.constant 0.000000e+00 : f32
      %38 = vector.broadcast %cst_28 : f32 to vector<128x1xf32>
      %c0_29 = arith.constant 0 : index
      %c0_30 = arith.constant 0 : index
      %39 = vector.load %arg14[%c0_29, %c0_30] : memref<128x1xf32, #tpu.memory_space<vmem>>, vector<128x1xf32>
      tpu.vector_store %arg14[%c0_29, %c0_30], %38 {strides = array<i32>} : memref<128x1xf32, #tpu.memory_space<vmem>>, vector<128x1xf32>,
      %cst_31 = arith.constant 0.000000e+00 : f32
      %40 = vector.broadcast %cst_31 : f32 to vector<128x8xf32>
      %c0_32 = arith.constant 0 : index
      %c0_33 = arith.constant 0 : index
      %41 = vector.load %arg15[%c0_32, %c0_33] : memref<128x8xf32, #tpu.memory_space<vmem>>, vector<128x8xf32>
      tpu.vector_store %arg15[%c0_32, %c0_33], %40 {strides = array<i32>} : memref<128x8xf32, #tpu.memory_space<vmem>>, vector<128x8xf32>,
    } else {
    }
    %c0 = arith.constant 0 : index
    %c0_1 = arith.constant 0 : index
    %c0_2 = arith.constant 0 : index
    %3 = vector.load %arg3[%c0, %c0_1, %c0_2] : memref<1x128x8xbf16, #tpu.memory_space<vmem>>, vector<1x128x8xbf16>
    %4 = vector.shape_cast %3 : vector<1x128x8xbf16> to vector<128x8xbf16>
    %c0_3 = arith.constant 0 : index
    %c0_4 = arith.constant 0 : index
    %c0_5 = arith.constant 0 : index
    %5 = vector.load %arg4[%c0_3, %c0_4, %c0_5] : memref<1x8x128xbf16, #tpu.memory_space<vmem>>, vector<1x8x128xbf16>
    %6 = vector.shape_cast %5 : vector<1x8x128xbf16> to vector<8x128xbf16>
    %cst = arith.constant dense<0.000000e+00> : vector<128x128xf32>
    %7 = tpu.matmul %4, %6, %cst {dimension_numbers = #tpu.dot_dimension_numbers<[1], [0], [0], [1], [0, 0, 1, 1], [], []>} : vector<128x8xbf16>, vector<8x128xbf16>, vector<128x128xf32> -> vector<128x128xf32>
    %c0_6 = arith.constant 0 : index
    %c0_7 = arith.constant 0 : index
    %8 = vector.load %arg13[%c0_6, %c0_7] : memref<128x1xf32, #tpu.memory_space<vmem>>, vector<128x1xf32>
    %cst_8 = arith.constant dense<0xFF800000> : vector<128xf32>
    %9 = vector.multi_reduction <maximumf>, %7, %cst_8 [1] : vector<128x128xf32> to vector<128xf32>
    %10 = vector.shape_cast %9 : vector<128xf32> to vector<128x1xf32>
    %11 = arith.maximumf %8, %10 : vector<128x1xf32>
    %12 = arith.subf %8, %11 : vector<128x1xf32>
    %13 = math.exp %12 : vector<128x1xf32>
    %14 = vector.broadcast %11 : vector<128x1xf32> to vector<128x128xf32>
    %15 = arith.subf %7, %14 : vector<128x128xf32>
    %16 = math.exp %15 : vector<128x128xf32>
    %c0_9 = arith.constant 0 : index
    %c0_10 = arith.constant 0 : index
    %17 = vector.load %arg14[%c0_9, %c0_10] : memref<128x1xf32, #tpu.memory_space<vmem>>, vector<128x1xf32>
    %18 = arith.mulf %13, %17 : vector<128x1xf32>
    %cst_11 = arith.constant dense<0.000000e+00> : vector<128xf32>
    %19 = vector.multi_reduction <add>, %16, %cst_11 [1] : vector<128x128xf32> to vector<128xf32>
    %20 = vector.shape_cast %19 : vector<128xf32> to vector<128x1xf32>
    %21 = arith.addf %18, %20 : vector<128x1xf32>
    %c0_12 = arith.constant 0 : index
    %c0_13 = arith.constant 0 : index
    %22 = vector.load %arg14[%c0_12, %c0_13] : memref<128x1xf32, #tpu.memory_space<vmem>>, vector<128x1xf32>
    tpu.vector_store %arg14[%c0_12, %c0_13], %21 {strides = array<i32>} : memref<128x1xf32, #tpu.memory_space<vmem>>, vector<128x1xf32>,
    %23 = arith.truncf %16 : vector<128x128xf32> to vector<128x128xbf16>
    %c0_14 = arith.constant 0 : index
    %c0_15 = arith.constant 0 : index
    %c0_16 = arith.constant 0 : index
    %24 = vector.load %arg5[%c0_14, %c0_15, %c0_16] : memref<1x8x128xbf16, #tpu.memory_space<vmem>>, vector<1x8x128xbf16>
    %25 = vector.shape_cast %24 : vector<1x8x128xbf16> to vector<8x128xbf16>
    %cst_17 = arith.constant dense<0.000000e+00> : vector<128x8xf32>
    %26 = tpu.matmul %23, %25, %cst_17 {dimension_numbers = #tpu.dot_dimension_numbers<[1], [1], [0], [0], [0, 0, 1, 0], [], []>} : vector<128x128xbf16>, vector<8x128xbf16>, vector<128x8xf32> -> vector<128x8xf32>
    %c0_18 = arith.constant 0 : index
    %c0_19 = arith.constant 0 : index
    %27 = vector.load %arg15[%c0_18, %c0_19] : memref<128x8xf32, #tpu.memory_space<vmem>>, vector<128x8xf32>
    %28 = vector.broadcast %13 : vector<128x1xf32> to vector<128x8xf32>
    %29 = arith.mulf %28, %27 : vector<128x8xf32>
    %30 = arith.addf %29, %26 : vector<128x8xf32>
    %c0_20 = arith.constant 0 : index
    %c0_21 = arith.constant 0 : index
    %31 = vector.load %arg15[%c0_20, %c0_21] : memref<128x8xf32, #tpu.memory_space<vmem>>, vector<128x8xf32>
    tpu.vector_store %arg15[%c0_20, %c0_21], %30 {strides = array<i32>} : memref<128x8xf32, #tpu.memory_space<vmem>>, vector<128x8xf32>,
    %c0_22 = arith.constant 0 : index
    %c0_23 = arith.constant 0 : index
    %32 = vector.load %arg13[%c0_22, %c0_23] : memref<128x1xf32, #tpu.memory_space<vmem>>, vector<128x1xf32>
    tpu.vector_store %arg13[%c0_22, %c0_23], %11 {strides = array<i32>} : memref<128x1xf32, #tpu.memory_space<vmem>>, vector<128x1xf32>,
    %c1_i32 = arith.constant 1 : i32
    %33 = arith.cmpi eq, %arg2, %c1_i32 : i32
    %34 = arith.extui %33 : i1 to i32
    %c0_i32_24 = arith.constant 0 : i32
    %35 = arith.cmpi ne, %34, %c0_i32_24 : i32
    scf.if %35 {
      %c0_25 = arith.constant 0 : index
      %c0_26 = arith.constant 0 : index
      %36 = vector.load %arg15[%c0_25, %c0_26] : memref<128x8xf32, #tpu.memory_space<vmem>>, vector<128x8xf32>
      %c0_27 = arith.constant 0 : index
      %c0_28 = arith.constant 0 : index
      %37 = vector.load %arg14[%c0_27, %c0_28] : memref<128x1xf32, #tpu.memory_space<vmem>>, vector<128x1xf32>
      %38 = tpu.reciprocal %37 {approx = true} : vector<128x1xf32> -> vector<128x1xf32>
      %39 = vector.broadcast %38 : vector<128x1xf32> to vector<128x8xf32>
      %40 = arith.mulf %36, %39 : vector<128x8xf32>
      %41 = tpu.transpose %40, [1, 0] : vector<128x8xf32> -> vector<8x128xf32>
      %c0_29 = arith.constant 0 : index
      %c0_30 = arith.constant 0 : index
      %c0_31 = arith.constant 0 : index
      %42 = vector.load %arg6[%c0_29, %c0_30, %c0_31] : memref<1x8x128xf32, #tpu.memory_space<vmem>>, vector<1x8x128xf32>
      %43 = vector.shape_cast %42 : vector<1x8x128xf32> to vector<8x128xf32>
      %44 = arith.mulf %41, %43 : vector<8x128xf32>
      %c0_32 = arith.constant 0 : index
      %c0_33 = arith.constant 0 : index
      %45 = vector.load %arg8[%c0_32, %c0_33] : memref<16x8xf32, #tpu.memory_space<vmem>>, vector<16x8xf32>
      %cst_34 = arith.constant dense<0.000000e+00> : vector<16x128xf32>
      %46 = tpu.matmul %45, %44, %cst_34 {dimension_numbers = #tpu.dot_dimension_numbers<[1], [0], [0], [1], [0, 0, 1, 1], [], []>} : vector<16x8xf32>, vector<8x128xf32>, vector<16x128xf32> -> vector<16x128xf32>
      %c0_35 = arith.constant 0 : index
      %c0_36 = arith.constant 0 : index
      %47 = vector.load %arg9[%c0_35, %c0_36] : memref<16x1xf32, #tpu.memory_space<vmem>>, vector<16x1xf32>
      %48 = vector.broadcast %47 : vector<16x1xf32> to vector<16x128xf32>
      %49 = arith.addf %46, %48 : vector<16x128xf32>
      %c0_37 = arith.constant 0 : index
      %c0_38 = arith.constant 0 : index
      %50 = vector.load %arg10[%c0_37, %c0_38] : memref<16x1xf32, #tpu.memory_space<vmem>>, vector<16x1xf32>
      %51 = vector.broadcast %50 : vector<16x1xf32> to vector<16x128xf32>
      %52 = arith.mulf %49, %51 : vector<16x128xf32>
      %c0_39 = arith.constant 0 : index
      %c0_40 = arith.constant 0 : index
      %53 = vector.load %arg11[%c0_39, %c0_40] : memref<16x1xf32, #tpu.memory_space<vmem>>, vector<16x1xf32>
      %54 = vector.broadcast %53 : vector<16x1xf32> to vector<16x128xf32>
      %55 = arith.addf %52, %54 : vector<16x128xf32>
      %c0_41 = arith.constant 0 : index
      %c0_42 = arith.constant 0 : index
      %c0_43 = arith.constant 0 : index
      %56 = vector.load %arg7[%c0_41, %c0_42, %c0_43] : memref<1x16x128xf32, #tpu.memory_space<vmem>>, vector<1x16x128xf32>
      %57 = vector.shape_cast %56 : vector<1x16x128xf32> to vector<16x128xf32>
      %58 = arith.addf %55, %57 : vector<16x128xf32>
      %c0_44 = arith.constant 0 : index
      %c0_45 = arith.constant 0 : index
      %c0_46 = arith.constant 0 : index
      %59 = vector.load %arg12[%c0_44, %c0_45, %c0_46] : memref<1x16x128xf32, #tpu.memory_space<vmem>>, vector<1x16x128xf32>
      %60 = vector.shape_cast %59 : vector<1x16x128xf32> to vector<16x128xf32>
      %61 = vector.shape_cast %58 : vector<16x128xf32> to vector<1x16x128xf32>
      tpu.vector_store %arg12[%c0_44, %c0_45, %c0_46], %61 {strides = array<i32>} : memref<1x16x128xf32, #tpu.memory_space<vmem>>, vector<1x16x128xf32>,
    } else {
    }
    return
  }
  func.func @transform_0(%arg0: i32, %arg1: i32, %arg2: i32) -> (i32, i32, i32) {
    %c0_i32 = arith.constant 0 : i32
    %c0_i32_0 = arith.constant 0 : i32
    return %arg0, %arg1, %c0_i32 : i32, i32, i32
  }
  func.func @transform_1(%arg0: i32, %arg1: i32, %arg2: i32) -> (i32, i32, i32) {
    %c0_i32 = arith.constant 0 : i32
    %c0_i32_0 = arith.constant 0 : i32
    return %arg0, %c0_i32, %arg2 : i32, i32, i32
  }
  func.func @transform_2(%arg0: i32, %arg1: i32, %arg2: i32) -> (i32, i32, i32) {
    %c0_i32 = arith.constant 0 : i32
    %c0_i32_0 = arith.constant 0 : i32
    return %arg0, %c0_i32, %arg2 : i32, i32, i32
  }
  func.func @transform_3(%arg0: i32, %arg1: i32, %arg2: i32) -> (i32, i32, i32) {
    %c0_i32 = arith.constant 0 : i32
    %c0_i32_0 = arith.constant 0 : i32
    return %arg0, %c0_i32, %arg1 : i32, i32, i32
  }
  func.func @transform_4(%arg0: i32, %arg1: i32, %arg2: i32) -> (i32, i32, i32) {
    %c0_i32 = arith.constant 0 : i32
    %c0_i32_0 = arith.constant 0 : i32
    return %arg0, %c0_i32, %arg1 : i32, i32, i32
  }
  func.func @transform_5(%arg0: i32, %arg1: i32, %arg2: i32) -> (i32, i32) {
    %c0_i32 = arith.constant 0 : i32
    %c0_i32_0 = arith.constant 0 : i32
    %c0_i32_1 = arith.constant 0 : i32
    return %c0_i32, %c0_i32_0 : i32, i32
  }
  func.func @transform_6(%arg0: i32, %arg1: i32, %arg2: i32) -> (i32, i32) {
    %c0_i32 = arith.constant 0 : i32
    %c0_i32_0 = arith.constant 0 : i32
    %c0_i32_1 = arith.constant 0 : i32
    return %c0_i32, %c0_i32_0 : i32, i32
  }
  func.func @transform_7(%arg0: i32, %arg1: i32, %arg2: i32) -> (i32, i32) {
    %c0_i32 = arith.constant 0 : i32
    %c0_i32_0 = arith.constant 0 : i32
    %c0_i32_1 = arith.constant 0 : i32
    return %c0_i32, %c0_i32_0 : i32, i32
  }
  func.func @transform_8(%arg0: i32, %arg1: i32, %arg2: i32) -> (i32, i32) {
    %c0_i32 = arith.constant 0 : i32
    %c0_i32_0 = arith.constant 0 : i32
    %c0_i32_1 = arith.constant 0 : i32
    return %c0_i32, %c0_i32_0 : i32, i32
  }
  func.func @transform_9(%arg0: i32, %arg1: i32, %arg2: i32) -> (i32, i32, i32) {
    %c0_i32 = arith.constant 0 : i32
    %c0_i32_0 = arith.constant 0 : i32
    return %arg0, %c0_i32, %arg1 : i32, i32, i32
  }
}

</mosaic_0001>

<llo_original>
// kernel: tile.8
$region0: #{tile.8}
  #allocation0 [shape = 's32[1]{0}', space=sflag, size = 0x4, scoped, tag = 'scoped memory for tile.8']
  %s0 = inlined_call_operand.vmem [shape: f32[8], index: 0, kind: input, shape index: {}]
  %s1 = inlined_call_operand.vmem [shape: f32[16,8], index: 1, kind: output, shape index: {}]
  // Predicated region
  $region2: #{tile.8} parent=0 // pred_check
    _
  $region3: #{tile.8} parent=0 // pred_check_branch
    %3 = sbr.rel (0) target = $region5
  $region4: #{tile.8} parent=0 // pred_region
    _
  $region5: #{tile.8} parent=0 // pred_fallthru
    _
  %v4 = vld [vmem:[%s0] ss:$0 sm:$0xff]
  %5 = vst [vmem:[%s1] sm:$0xff] %v4
  %s6 = scalar_lea.vmem %s1, 8
  %7 = vst [vmem:[%s6] sm:$0xff] %v4

// kernel: tile.9
$region0: #{tile.9}
  %s0 = inlined_call_operand.vmem [shape: f32[16,8], index: 0, kind: input, shape index: {}]
  %s1 = inlined_call_operand.vmem [shape: f32[1,128], index: 1, kind: output, shape index: {}]
  $region1: #{tile.9} parent=0
    #allocation0 [shape = 'u8[4096]{0}', space=vmem, size = 0x1000, scoped, tag = 'scoped mem for output reshape']
    %v2 = vld [vmem:[%s0] sm:$0x1]
    %vm3 = vcmask 64512
    %4 = vst.msk [vmem:[#allocation0] sm:$0x1] %vm3, %v2
    %s5 = scalar_lea.vmem %s0, 15
    %v6 = vld [vmem:[%s5] sm:$0x1]
    %7 = vrot.lane.b32.xlu0 %v6, 120
    %v8 = vpop.permute.xlu0 %7
    %vm9 = vcmask 1048512
    %10 = vst.msk [vmem:[#allocation0] sm:$0x1] %vm9, %v8
    %s11 = scalar_lea.vmem %s0, 14
    %v12 = vld [vmem:[%s11] sm:$0x1]
    %13 = vrot.lane.b32.xlu0 %v12, 112
    %v14 = vpop.permute.xlu0 %13
    %vm15 = vcmask 982912
    %16 = vst.msk [vmem:[#allocation0] sm:$0x1] %vm15, %v14
    %s17 = scalar_lea.vmem %s0, 13
    %v18 = vld [vmem:[%s17] sm:$0x1]
    %19 = vrot.lane.b32.xlu0 %v18, 104
    %v20 = vpop.permute.xlu0 %19
    %vm21 = vcmask 917312
    %22 = vst.msk [vmem:[#allocation0] sm:$0x1] %vm21, %v20
    %s23 = scalar_lea.vmem %s0, 12
    %v24 = vld [vmem:[%s23] sm:$0x1]
    %25 = vrot.lane.b32.xlu0 %v24, 96
    %v26 = vpop.permute.xlu0 %25
    %vm27 = vcmask 851712
    %28 = vst.msk [vmem:[#allocation0] sm:$0x1] %vm27, %v26
    %s29 = scalar_lea.vmem %s0, 11
    %v30 = vld [vmem:[%s29] sm:$0x1]
    %31 = vrot.lane.b32.xlu0 %v30, 88
    %v32 = vpop.permute.xlu0 %31
    %vm33 = vcmask 786112
    %34 = vst.msk [vmem:[#allocation0] sm:$0x1] %vm33, %v32
    %s35 = scalar_lea.vmem %s0, 10
    %v36 = vld [vmem:[%s35] sm:$0x1]
    %37 = vrot.lane.b32.xlu0 %v36, 80
    %v38 = vpop.permute.xlu0 %37
    %vm39 = vcmask 720512
    %40 = vst.msk [vmem:[#allocation0] sm:$0x1] %vm39, %v38
    %s41 = scalar_lea.vmem %s0, 9
    %v42 = vld [vmem:[%s41] sm:$0x1]
    %43 = vrot.lane.b32.xlu0 %v42, 72
    %v44 = vpop.permute.xlu0 %43
    %vm45 = vcmask 654912
    %46 = vst.msk [vmem:[#allocation0] sm:$0x1] %vm45, %v44
    %s47 = scalar_lea.vmem %s0, 8
    %v48 = vld [vmem:[%s47] sm:$0x1]
    %49 = vrot.lane.b32.xlu0 %v48, 64
    %v50 = vpop.permute.xlu0 %49
    %vm51 = vcmask 589312
    %52 = vst.msk [vmem:[#allocation0] sm:$0x1] %vm51, %v50
    %s53 = scalar_lea.vmem %s0, 7
    %v54 = vld [vmem:[%s53] sm:$0x1]
    %55 = vrot.lane.b32.xlu0 %v54, 56
    %v56 = vpop.permute.xlu0 %55
    %vm57 = vcmask 523712
    %58 = vst.msk [vmem:[#allocation0] sm:$0x1] %vm57, %v56
    %s59 = scalar_lea.vmem %s0, 6
    %v60 = vld [vmem:[%s59] sm:$0x1]
    %61 = vrot.lane.b32.xlu0 %v60, 48
    %v62 = vpop.permute.xlu0 %61
    %vm63 = vcmask 458112
    %64 = vst.msk [vmem:[#allocation0] sm:$0x1] %vm63, %v62
    %s65 = scalar_lea.vmem %s0, 5
    %v66 = vld [vmem:[%s65] sm:$0x1]
    %67 = vrot.lane.b32.xlu0 %v66, 40
    %v68 = vpop.permute.xlu0 %67
    %vm69 = vcmask 392512
    %70 = vst.msk [vmem:[#allocation0] sm:$0x1] %vm69, %v68
    %s71 = scalar_lea.vmem %s0, 4
    %v72 = vld [vmem:[%s71] sm:$0x1]
    %73 = vrot.lane.b32.xlu0 %v72, 32
    %v74 = vpop.permute.xlu0 %73
    %vm75 = vcmask 326912
    %76 = vst.msk [vmem:[#allocation0] sm:$0x1] %vm75, %v74
    %s77 = scalar_lea.vmem %s0, 3
    %v78 = vld [vmem:[%s77] sm:$0x1]
    %79 = vrot.lane.b32.xlu0 %v78, 24
    %v80 = vpop.permute.xlu0 %79
    %vm81 = vcmask 261312
    %82 = vst.msk [vmem:[#allocation0] sm:$0x1] %vm81, %v80
    %s83 = scalar_lea.vmem %s0, 2
    %v84 = vld [vmem:[%s83] sm:$0x1]
    %85 = vrot.lane.b32.xlu0 %v84, 16
    %v86 = vpop.permute.xlu0 %85
    %vm87 = vcmask 195712
    %88 = vst.msk [vmem:[#allocation0] sm:$0x1] %vm87, %v86
    %s89 = scalar_lea.vmem %s0, 1
    %v90 = vld [vmem:[%s89] sm:$0x1]
    %91 = vrot.lane.b32.xlu0 %v90, 8
    %v92 = vpop.permute.xlu0 %91
    %vm93 = vcmask 130112
    %94 = vst.msk [vmem:[#allocation0] sm:$0x1] %vm93, %v92
    %s96 = sshllo.u32 0, 1
    %v98 = vld [vmem:[#allocation0] sm:%s96]
    %s99 = sshllo.u32 0, 1
    %100 = vst [vmem:[%s1] sm:%s99] %v98

// kernel: nlblock_cross_forward.2
$region0: #{nlblock_cross_forward.2}
  #allocation0 [shape = 'u32[]', space=smem, size = 0x4, offset = 0x4, fixed_abs, tag = 'smem constant byte address 0x4 - core index']
  #allocation1 [shape = 'u32[144,128]{1,0:T(1,128)}', space=vmem, size = 0x12000, scoped, tag = 'internal scratch']
  %s0 = inlined_call_operand.vmem [shape: f32[2,16,256], index: 0, kind: input, shape index: {}]
  %s1 = inlined_call_operand.vmem [shape: f32[2,16,256], index: 1, kind: input, shape index: {}]
  %s2 = inlined_call_operand.vmem [shape: f32[8,16], index: 2, kind: input, shape index: {}]
  %s3 = inlined_call_operand.vmem [shape: f32[8,1], index: 3, kind: input, shape index: {}]
  %s4 = inlined_call_operand.vmem [shape: f32[8,16], index: 4, kind: input, shape index: {}]
  %s5 = inlined_call_operand.vmem [shape: f32[8,1], index: 5, kind: input, shape index: {}]
  %s6 = inlined_call_operand.vmem [shape: f32[128,128], index: 6, kind: input, shape index: {}]
  %s7 = inlined_call_operand.vmem [shape: f32[1,128], index: 7, kind: input, shape index: {}]
  %s8 = inlined_call_operand.vmem [shape: bf16[2,8,256], index: 8, kind: output, shape index: {0}]
  %s9 = inlined_call_operand.vmem [shape: bf16[2,256,8], index: 9, kind: output, shape index: {1}]
  %s10 = inlined_call_operand.vmem [shape: bf16[2,8,256], index: 10, kind: output, shape index: {2}]
  %s11 = inlined_call_operand.vmem [shape: f32[2,8,256], index: 11, kind: output, shape index: {3}]
  %12 = xla_tuple %s8, %s9, %s10, %s11
  %s13 = sld [smem:[#allocation0]]
  $region165: #{nlblock_cross_forward.2} parent=0
    _
  %s15 = ssub.s32 1, %s13
  %s16 = scalar_select 0, %s15, %s13
  $region1: #{nlblock_cross_forward.2} parent=0
    #allocation2 [shape = 'u8[16384]{0}', space=vmem, size = 0x4000, scoped, tag = 'input window, operand 0']
    #allocation3 [shape = 'u8[16384]{0}', space=vmem, size = 0x4000, scoped, tag = 'input window, operand 1']
    loop: start=0, step=1, limit=6
    $region2: #{nlblock_cross_forward.2} parent=1 // loop_pre_header
      _
    $region3: #{nlblock_cross_forward.2} parent=1 // loop_header
      %s18 = sphi 0, %s22
      %p19 = scmp.ge.s32.totalorder %s18, 6
      %s25 = sphi 0, %s37
      %s26 = sphi 0, %s33
      %s27 = sphi 0, %s25
      %s28 = sphi 0, %s26
      %s29 = sphi 0, %s27
      %s30 = sphi 0, %s28
      %s42 = sphi 0, %s44
      %s45 = sphi 0, %s42
      %s46 = sphi 0, %s45
      %s62 = sphi 0, %s46
      %s70 = sphi 0, %s72
      %s73 = sphi 0, %s70
      %s74 = sphi 0, %s73
      %s90 = sphi 0, %s74
      %s94 = sphi 0, %s94
      %s96 = sphi 0, %s94
      %s97 = sphi 0, %s96
      %s111 = sphi 0, %s97
      %s115 = sphi 0, %s115
      %s117 = sphi 0, %s115
      %s118 = sphi 0, %s117
      %s132 = sphi 0, %s118
      %s136 = sphi 0, %s136
      %s138 = sphi 0, %s136
      %s139 = sphi 0, %s138
      %s153 = sphi 0, %s139
      %s157 = sphi 0, %s157
      %s159 = sphi 0, %s157
      %s160 = sphi 0, %s159
      %s174 = sphi 0, %s160
      %s178 = sphi 0, %s178
      %s180 = sphi 0, %s178
      %s181 = sphi 0, %s180
      %s195 = sphi 0, %s181
      %s199 = sphi 0, %s199
      %s201 = sphi 0, %s199
      %s202 = sphi 0, %s201
      %s216 = sphi 0, %s202
      %s224 = sphi 0, %s226
      %s227 = sphi 0, %s224
      %s228 = sphi 0, %s227
      %s244 = sphi 0, %s228
      %s252 = sphi 0, %s254
      %s255 = sphi 0, %s252
      %s256 = sphi 0, %s255
      %s272 = sphi 0, %s256
      %s280 = sphi 0, %s282
      %s283 = sphi 0, %s280
      %s284 = sphi 0, %s283
      %s300 = sphi 0, %s284
      %s308 = sphi 0, %s310
      %s311 = sphi 0, %s308
      %s312 = sphi 0, %s311
      %s328 = sphi 0, %s312
    $region4: #{nlblock_cross_forward.2} parent=1 // loop_header_branch
      %21 = sbr.rel (%p19) target = $region8
    $region5: #{nlblock_cross_forward.2} parent=1 // loop_body
      %s23 = ssub.s32 %s18, 1
      %s24 = ssub.s32 %s18, 2
      %s31 = sadd.s32 1, %s26
      %p32 = scmp.ge.s32.totalorder %s31, 2
      %s33 = scalar_select %p32, 0, %s31
      %s34 = sadd.s32 1, %s25
      %s35 = scalar_select %p32, %s34, %s25
      %p36 = scmp.ge.s32.totalorder %s35, 2
      %s37 = scalar_select %p36, 0, %s35
      %s38 = ssub.s32 %s25, %s37
      %s39 = ssub.s32 %s26, %s33
      %s40 = sor.u32 %s38, %s39
      %p41 = scmp.eq.s32.totalorder %s40, 0
      %s43 = sadd.s32 %s42, 1
      %s44 = scalar_select %p41, %s42, %s43
      %p47 = pneg %p41
      %p48 = scmp.eq.s32.totalorder %s18, 3
      %p49 = por %p47, %p48
      %p50 = scmp.ne.s32.totalorder %s42, %s45
      %p51 = scmp.eq.s32.totalorder %s18, 0
      %p52 = por %p50, %p51
      %p53 = scmp.ne.s32.totalorder %s42, %s45
      %p54 = scmp.eq.s32.totalorder %s23, 3
      %p55 = por %p53, %p54
      %p56 = scmp.ne.s32.totalorder %s45, %s46
      %p57 = scmp.eq.s32.totalorder %s23, 0
      %p58 = por %p56, %p57
      %p59 = scmp.ne.s32.totalorder %s45, %s46
      %p60 = scmp.eq.s32.totalorder %s24, 3
      %p61 = por %p59, %p60
      %p63 = scmp.ne.s32.totalorder %s46, %s62
      %p64 = scmp.eq.s32.totalorder %s24, 0
      %p65 = por %p63, %p64
      %s66 = ssub.s32 %s25, %s37
      %s67 = ssub.s32 %s26, %s33
      %s68 = sor.u32 %s66, %s67
      %p69 = scmp.eq.s32.totalorder %s68, 0
      %s71 = sadd.s32 %s70, 1
      %s72 = scalar_select %p69, %s70, %s71
      %p75 = pneg %p69
      %p76 = scmp.eq.s32.totalorder %s18, 3
      %p77 = por %p75, %p76
      %p78 = scmp.ne.s32.totalorder %s70, %s73
      %p79 = scmp.eq.s32.totalorder %s18, 0
      %p80 = por %p78, %p79
      %p81 = scmp.ne.s32.totalorder %s70, %s73
      %p82 = scmp.eq.s32.totalorder %s23, 3
      %p83 = por %p81, %p82
      %p84 = scmp.ne.s32.totalorder %s73, %s74
      %p85 = scmp.eq.s32.totalorder %s23, 0
      %p86 = por %p84, %p85
      %p87 = scmp.ne.s32.totalorder %s73, %s74
      %p88 = scmp.eq.s32.totalorder %s24, 3
      %p89 = por %p87, %p88
      %p91 = scmp.ne.s32.totalorder %s74, %s90
      %p92 = scmp.eq.s32.totalorder %s24, 0
      %p93 = por %p91, %p92
      %s95 = sadd.s32 %s94, 1
      %p98 = scmp.eq.s32.totalorder %s18, 3
      %p99 = scmp.ne.s32.totalorder %s94, %s96
      %p100 = scmp.eq.s32.totalorder %s18, 0
      %p101 = por %p99, %p100
      %p102 = scmp.ne.s32.totalorder %s94, %s96
      %p103 = scmp.eq.s32.totalorder %s23, 3
      %p104 = por %p102, %p103
      %p105 = scmp.ne.s32.totalorder %s96, %s97
      %p106 = scmp.eq.s32.totalorder %s23, 0
      %p107 = por %p105, %p106
      %p108 = scmp.ne.s32.totalorder %s96, %s97
      %p109 = scmp.eq.s32.totalorder %s24, 3
      %p110 = por %p108, %p109
      %p112 = scmp.ne.s32.totalorder %s97, %s111
      %p113 = scmp.eq.s32.totalorder %s24, 0
      %p114 = por %p112, %p113
      %s116 = sadd.s32 %s115, 1
      %p119 = scmp.eq.s32.totalorder %s18, 3
      %p120 = scmp.ne.s32.totalorder %s115, %s117
      %p121 = scmp.eq.s32.totalorder %s18, 0
      %p122 = por %p120, %p121
      %p123 = scmp.ne.s32.totalorder %s115, %s117
      %p124 = scmp.eq.s32.totalorder %s23, 3
      %p125 = por %p123, %p124
      %p126 = scmp.ne.s32.totalorder %s117, %s118
      %p127 = scmp.eq.s32.totalorder %s23, 0
      %p128 = por %p126, %p127
      %p129 = scmp.ne.s32.totalorder %s117, %s118
      %p130 = scmp.eq.s32.totalorder %s24, 3
      %p131 = por %p129, %p130
      %p133 = scmp.ne.s32.totalorder %s118, %s132
      %p134 = scmp.eq.s32.totalorder %s24, 0
      %p135 = por %p133, %p134
      %s137 = sadd.s32 %s136, 1
      %p140 = scmp.eq.s32.totalorder %s18, 3
      %p141 = scmp.ne.s32.totalorder %s136, %s138
      %p142 = scmp.eq.s32.totalorder %s18, 0
      %p143 = por %p141, %p142
      %p144 = scmp.ne.s32.totalorder %s136, %s138
      %p145 = scmp.eq.s32.totalorder %s23, 3
      %p146 = por %p144, %p145
      %p147 = scmp.ne.s32.totalorder %s138, %s139
      %p148 = scmp.eq.s32.totalorder %s23, 0
      %p149 = por %p147, %p148
      %p150 = scmp.ne.s32.totalorder %s138, %s139
      %p151 = scmp.eq.s32.totalorder %s24, 3
      %p152 = por %p150, %p151
      %p154 = scmp.ne.s32.totalorder %s139, %s153
      %p155 = scmp.eq.s32.totalorder %s24, 0
      %p156 = por %p154, %p155
      %s158 = sadd.s32 %s157, 1
      %p161 = scmp.eq.s32.totalorder %s18, 3
      %p162 = scmp.ne.s32.totalorder %s157, %s159
      %p163 = scmp.eq.s32.totalorder %s18, 0
      %p164 = por %p162, %p163
      %p165 = scmp.ne.s32.totalorder %s157, %s159
      %p166 = scmp.eq.s32.totalorder %s23, 3
      %p167 = por %p165, %p166
      %p168 = scmp.ne.s32.totalorder %s159, %s160
      %p169 = scmp.eq.s32.totalorder %s23, 0
      %p170 = por %p168, %p169
      %p171 = scmp.ne.s32.totalorder %s159, %s160
      %p172 = scmp.eq.s32.totalorder %s24, 3
      %p173 = por %p171, %p172
      %p175 = scmp.ne.s32.totalorder %s160, %s174
      %p176 = scmp.eq.s32.totalorder %s24, 0
      %p177 = por %p175, %p176
      %s179 = sadd.s32 %s178, 1
      %p182 = scmp.eq.s32.totalorder %s18, 3
      %p183 = scmp.ne.s32.totalorder %s178, %s180
      %p184 = scmp.eq.s32.totalorder %s18, 0
      %p185 = por %p183, %p184
      %p186 = scmp.ne.s32.totalorder %s178, %s180
      %p187 = scmp.eq.s32.totalorder %s23, 3
      %p188 = por %p186, %p187
      %p189 = scmp.ne.s32.totalorder %s180, %s181
      %p190 = scmp.eq.s32.totalorder %s23, 0
      %p191 = por %p189, %p190
      %p192 = scmp.ne.s32.totalorder %s180, %s181
      %p193 = scmp.eq.s32.totalorder %s24, 3
      %p194 = por %p192, %p193
      %p196 = scmp.ne.s32.totalorder %s181, %s195
      %p197 = scmp.eq.s32.totalorder %s24, 0
      %p198 = por %p196, %p197
      %s200 = sadd.s32 %s199, 1
      %p203 = scmp.eq.s32.totalorder %s18, 3
      %p204 = scmp.ne.s32.totalorder %s199, %s201
      %p205 = scmp.eq.s32.totalorder %s18, 0
      %p206 = por %p204, %p205
      %p207 = scmp.ne.s32.totalorder %s199, %s201
      %p208 = scmp.eq.s32.totalorder %s23, 3
      %p209 = por %p207, %p208
      %p210 = scmp.ne.s32.totalorder %s201, %s202
      %p211 = scmp.eq.s32.totalorder %s23, 0
      %p212 = por %p210, %p211
      %p213 = scmp.ne.s32.totalorder %s201, %s202
      %p214 = scmp.eq.s32.totalorder %s24, 3
      %p215 = por %p213, %p214
      %p217 = scmp.ne.s32.totalorder %s202, %s216
      %p218 = scmp.eq.s32.totalorder %s24, 0
      %p219 = por %p217, %p218
      %s220 = ssub.s32 %s25, %s37
      %s221 = ssub.s32 %s26, %s33
      %s222 = sor.u32 %s220, %s221
      %p223 = scmp.eq.s32.totalorder %s222, 0
      %s225 = sadd.s32 %s224, 1
      %s226 = scalar_select %p223, %s224, %s225
      %p229 = pneg %p223
      %p230 = scmp.eq.s32.totalorder %s18, 3
      %p231 = por %p229, %p230
      %p232 = scmp.ne.s32.totalorder %s224, %s227
      %p233 = scmp.eq.s32.totalorder %s18, 0
      %p234 = por %p232, %p233
      %p235 = scmp.ne.s32.totalorder %s224, %s227
      %p236 = scmp.eq.s32.totalorder %s23, 3
      %p237 = por %p235, %p236
      %p238 = scmp.ne.s32.totalorder %s227, %s228
      %p239 = scmp.eq.s32.totalorder %s23, 0
      %p240 = por %p238, %p239
      %p241 = scmp.ne.s32.totalorder %s227, %s228
      %p242 = scmp.eq.s32.totalorder %s24, 3
      %p243 = por %p241, %p242
      %p245 = scmp.ne.s32.totalorder %s228, %s244
      %p246 = scmp.eq.s32.totalorder %s24, 0
      %p247 = por %p245, %p246
      %s248 = ssub.s32 %s25, %s37
      %s249 = ssub.s32 %s26, %s33
      %s250 = sor.u32 %s248, %s249
      %p251 = scmp.eq.s32.totalorder %s250, 0
      %s253 = sadd.s32 %s252, 1
      %s254 = scalar_select %p251, %s252, %s253
      %p257 = pneg %p251
      %p258 = scmp.eq.s32.totalorder %s18, 3
      %p259 = por %p257, %p258
      %p260 = scmp.ne.s32.totalorder %s252, %s255
      %p261 = scmp.eq.s32.totalorder %s18, 0
      %p262 = por %p260, %p261
      %p263 = scmp.ne.s32.totalorder %s252, %s255
      %p264 = scmp.eq.s32.totalorder %s23, 3
      %p265 = por %p263, %p264
      %p266 = scmp.ne.s32.totalorder %s255, %s256
      %p267 = scmp.eq.s32.totalorder %s23, 0
      %p268 = por %p266, %p267
      %p269 = scmp.ne.s32.totalorder %s255, %s256
      %p270 = scmp.eq.s32.totalorder %s24, 3
      %p271 = por %p269, %p270
      %p273 = scmp.ne.s32.totalorder %s256, %s272
      %p274 = scmp.eq.s32.totalorder %s24, 0
      %p275 = por %p273, %p274
      %s276 = ssub.s32 %s25, %s37
      %s277 = ssub.s32 %s26, %s33
      %s278 = sor.u32 %s276, %s277
      %p279 = scmp.eq.s32.totalorder %s278, 0
      %s281 = sadd.s32 %s280, 1
      %s282 = scalar_select %p279, %s280, %s281
      %p285 = pneg %p279
      %p286 = scmp.eq.s32.totalorder %s18, 3
      %p287 = por %p285, %p286
      %p288 = scmp.ne.s32.totalorder %s280, %s283
      %p289 = scmp.eq.s32.totalorder %s18, 0
      %p290 = por %p288, %p289
      %p291 = scmp.ne.s32.totalorder %s280, %s283
      %p292 = scmp.eq.s32.totalorder %s23, 3
      %p293 = por %p291, %p292
      %p294 = scmp.ne.s32.totalorder %s283, %s284
      %p295 = scmp.eq.s32.totalorder %s23, 0
      %p296 = por %p294, %p295
      %p297 = scmp.ne.s32.totalorder %s283, %s284
      %p298 = scmp.eq.s32.totalorder %s24, 3
      %p299 = por %p297, %p298
      %p301 = scmp.ne.s32.totalorder %s284, %s300
      %p302 = scmp.eq.s32.totalorder %s24, 0
      %p303 = por %p301, %p302
      %s304 = ssub.s32 %s25, %s37
      %s305 = ssub.s32 %s26, %s33
      %s306 = sor.u32 %s304, %s305
      %p307 = scmp.eq.s32.totalorder %s306, 0
      %s309 = sadd.s32 %s308, 1
      %s310 = scalar_select %p307, %s308, %s309
      %p313 = pneg %p307
      %p314 = scmp.eq.s32.totalorder %s18, 3
      %p315 = por %p313, %p314
      %p316 = scmp.ne.s32.totalorder %s308, %s311
      %p317 = scmp.eq.s32.totalorder %s18, 0
      %p318 = por %p316, %p317
      %p319 = scmp.ne.s32.totalorder %s308, %s311
      %p320 = scmp.eq.s32.totalorder %s23, 3
      %p321 = por %p319, %p320
      %p322 = scmp.ne.s32.totalorder %s311, %s312
      %p323 = scmp.eq.s32.totalorder %s23, 0
      %p324 = por %p322, %p323
      %p325 = scmp.ne.s32.totalorder %s311, %s312
      %p326 = scmp.eq.s32.totalorder %s24, 3
      %p327 = por %p325, %p326
      %p329 = scmp.ne.s32.totalorder %s312, %s328
      %p330 = scmp.eq.s32.totalorder %s24, 0
      %p331 = por %p329, %p330
      %p332 = scmp.le.s32.totalorder 1, %s18
      %p333 = scmp.lt.s32.totalorder %s18, 5
      %p334 = pnand %p332, %p333
      %p335 = pneg %p334
      // Predicated region
      $region9: #{nlblock_cross_forward.2} parent=5 // pred_check
        _
      $region10: #{nlblock_cross_forward.2} parent=5 // pred_check_branch
        %337 = sbr.rel (%p334) target = $region12
      $region11: #{nlblock_cross_forward.2} parent=5 // pred_region
        %s338 = ssub.s32 %s18, 1
        // Predicated region
        $region13: #{nlblock_cross_forward.2} parent=11 // pred_check
          %p339 = pneg %p107
        $region14: #{nlblock_cross_forward.2} parent=11 // pred_check_branch
          %341 = sbr.rel (%p339) target = $region16
        $region15: #{nlblock_cross_forward.2} parent=11 // pred_region
          _
        $region16: #{nlblock_cross_forward.2} parent=11 // pred_fallthru
          _
        // Predicated region
        $region17: #{nlblock_cross_forward.2} parent=11 // pred_check
          %p342 = pneg %p128
        $region18: #{nlblock_cross_forward.2} parent=11 // pred_check_branch
          %344 = sbr.rel (%p342) target = $region20
        $region19: #{nlblock_cross_forward.2} parent=11 // pred_region
          _
        $region20: #{nlblock_cross_forward.2} parent=11 // pred_fallthru
          _
        // Predicated region
        $region21: #{nlblock_cross_forward.2} parent=11 // pred_check
          %p345 = pneg %p149
        $region22: #{nlblock_cross_forward.2} parent=11 // pred_check_branch
          %347 = sbr.rel (%p345) target = $region24
        $region23: #{nlblock_cross_forward.2} parent=11 // pred_region
          _
        $region24: #{nlblock_cross_forward.2} parent=11 // pred_fallthru
          _
        // Predicated region
        $region25: #{nlblock_cross_forward.2} parent=11 // pred_check
          %p348 = pneg %p170
        $region26: #{nlblock_cross_forward.2} parent=11 // pred_check_branch
          %350 = sbr.rel (%p348) target = $region28
        $region27: #{nlblock_cross_forward.2} parent=11 // pred_region
          _
        $region28: #{nlblock_cross_forward.2} parent=11 // pred_fallthru
          _
        // Predicated region
        $region29: #{nlblock_cross_forward.2} parent=11 // pred_check
          %p351 = pneg %p191
        $region30: #{nlblock_cross_forward.2} parent=11 // pred_check_branch
          %353 = sbr.rel (%p351) target = $region32
        $region31: #{nlblock_cross_forward.2} parent=11 // pred_region
          _
        $region32: #{nlblock_cross_forward.2} parent=11 // pred_fallthru
          _
        // Predicated region
        $region33: #{nlblock_cross_forward.2} parent=11 // pred_check
          %p354 = pneg %p212
        $region34: #{nlblock_cross_forward.2} parent=11 // pred_check_branch
          %356 = sbr.rel (%p354) target = $region36
        $region35: #{nlblock_cross_forward.2} parent=11 // pred_region
          _
        $region36: #{nlblock_cross_forward.2} parent=11 // pred_fallthru
          _
      $region12: #{nlblock_cross_forward.2} parent=5 // pred_fallthru
        _
      %p357 = scmp.lt.s32.totalorder %s18, 4
      // Predicated region
      $region37: #{nlblock_cross_forward.2} parent=5 // pred_check
        %p358 = pneg %p357
      $region38: #{nlblock_cross_forward.2} parent=5 // pred_check_branch
        %360 = sbr.rel (%p358) target = $region40
      $region39: #{nlblock_cross_forward.2} parent=5 // pred_region
        // Predicated region
        $region41: #{nlblock_cross_forward.2} parent=39 // pred_check
          %p361 = pneg %p52
        $region42: #{nlblock_cross_forward.2} parent=39 // pred_check_branch
          %363 = sbr.rel (%p361) target = $region44
        $region43: #{nlblock_cross_forward.2} parent=39 // pred_region
          %s364 = sand.u32 %s42, 1
          %s365 = sand.u32 %s42, 1
          %s366 = smul.addr %s365, 16
          %s367 = scalar_lea.vmem [#allocation2], %s366
          %s368 = smul.addr %s25, 4
          %s369 = sadd.s32 %s26, %s368
          %s370 = smul.addr %s369, 8
          %s371 = scalar_lea.vmem %s0, %s370
          // Predicated region
          $region45: #{nlblock_cross_forward.2} parent=43 // pred_check
            _
          $region46: #{nlblock_cross_forward.2} parent=43 // pred_check_branch
            %373 = sbr.rel (0) target = $region48
          $region47: #{nlblock_cross_forward.2} parent=43 // pred_region
            // Predicated region
            $region49: #{nlblock_cross_forward.2} parent=47 // pred_check
              _
            $region50: #{nlblock_cross_forward.2} parent=47 // pred_check_branch
              %375 = sbr.rel (0) target = $region52
            $region51: #{nlblock_cross_forward.2} parent=47 // pred_region
              // Predicated region
              $region64: #{nlblock_cross_forward.2} parent=51 // pred_check
                _
              $region65: #{nlblock_cross_forward.2} parent=51 // pred_check_branch
                %392 = sbr.rel (0) target = $region67
              $region66: #{nlblock_cross_forward.2} parent=51 // pred_region
                loop: start=0, step=1, limit=1
                $region68: #{nlblock_cross_forward.2} parent=66 // loop_pre_header
                  _
                $region69: #{nlblock_cross_forward.2} parent=66 // loop_header
                  %s394 = sphi 0, %s398
                  %p395 = scmp.ge.s32.totalorder %s394, 1
                  %s399 = sphi %s371, %s371
                  %s400 = sphi %s367, %s367
                $region70: #{nlblock_cross_forward.2} parent=66 // loop_header_branch
                  %397 = sbr.rel (%p395) target = $region74
                $region71: #{nlblock_cross_forward.2} parent=66 // loop_body
                  %v401 = vld [vmem:[%s399] sm:$0xff]
                  %402 = vst [vmem:[%s400] sm:$0xff] %v401
                  %v403 = vld [vmem:[%s399 + $0x10] sm:$0xff]
                  %404 = vst [vmem:[%s400 + $0x8] sm:$0xff] %v403
                $region72: #{nlblock_cross_forward.2} parent=66 // loop_footer
                  %s398 = sadd.s32 1, %s394
                $region73: #{nlblock_cross_forward.2} parent=66 // loop_footer_branch
                  %393 = sbr.rel target = $region69
                $region74: #{nlblock_cross_forward.2} parent=66 // loop_exit
                  _
              $region67: #{nlblock_cross_forward.2} parent=51 // pred_fallthru
                _
              // Predicated region
              $region75: #{nlblock_cross_forward.2} parent=51 // pred_check
                _
              $region76: #{nlblock_cross_forward.2} parent=51 // pred_check_branch
                %406 = sbr.rel target = $region78
              $region77: #{nlblock_cross_forward.2} parent=51 // pred_region
                _
              $region78: #{nlblock_cross_forward.2} parent=51 // pred_fallthru
                _
            $region52: #{nlblock_cross_forward.2} parent=47 // pred_fallthru
              _
            // Predicated region
            $region53: #{nlblock_cross_forward.2} parent=47 // pred_check
              _
            $region54: #{nlblock_cross_forward.2} parent=47 // pred_check_branch
              %377 = sbr.rel target = $region56
            $region55: #{nlblock_cross_forward.2} parent=47 // pred_region
              loop: start=0, step=1, limit=1
              $region57: #{nlblock_cross_forward.2} parent=55 // loop_pre_header
                _
              $region58: #{nlblock_cross_forward.2} parent=55 // loop_header
                %s380 = sphi 0, %s384
                %p381 = scmp.ge.s32.totalorder %s380, 1
                %s385 = sphi %s371, %s371
                %s386 = sphi %s367, %s367
              $region59: #{nlblock_cross_forward.2} parent=55 // loop_header_branch
                %383 = sbr.rel (%p381) target = $region63
              $region60: #{nlblock_cross_forward.2} parent=55 // loop_body
                %v387 = vld [vmem:[%s385] sm:$0xff]
                %388 = vst [vmem:[%s386] sm:$0xff] %v387
                %v389 = vld [vmem:[%s385 + $0x10] sm:$0xff]
                %390 = vst [vmem:[%s386 + $0x8] sm:$0xff] %v389
              $region61: #{nlblock_cross_forward.2} parent=55 // loop_footer
                %s384 = sadd.s32 1, %s380
              $region62: #{nlblock_cross_forward.2} parent=55 // loop_footer_branch
                %379 = sbr.rel target = $region58
              $region63: #{nlblock_cross_forward.2} parent=55 // loop_exit
                _
            $region56: #{nlblock_cross_forward.2} parent=47 // pred_fallthru
              _
          $region48: #{nlblock_cross_forward.2} parent=43 // pred_fallthru
            _
          %407 = vnop
        $region44: #{nlblock_cross_forward.2} parent=39 // pred_fallthru
          _
        // Predicated region
        $region79: #{nlblock_cross_forward.2} parent=39 // pred_check
          %p408 = pneg %p80
        $region80: #{nlblock_cross_forward.2} parent=39 // pred_check_branch
          %410 = sbr.rel (%p408) target = $region82
        $region81: #{nlblock_cross_forward.2} parent=39 // pred_region
          %s411 = sand.u32 %s70, 1
          %s412 = sand.u32 %s70, 1
          %s413 = smul.addr %s412, 16
          %s414 = scalar_lea.vmem [#allocation3], %s413
          %s415 = smul.addr %s25, 4
          %s416 = sadd.s32 %s26, %s415
          %s417 = smul.addr %s416, 8
          %s418 = scalar_lea.vmem %s1, %s417
          // Predicated region
          $region83: #{nlblock_cross_forward.2} parent=81 // pred_check
            _
          $region84: #{nlblock_cross_forward.2} parent=81 // pred_check_branch
            %420 = sbr.rel (0) target = $region86
          $region85: #{nlblock_cross_forward.2} parent=81 // pred_region
            // Predicated region
            $region87: #{nlblock_cross_forward.2} parent=85 // pred_check
              _
            $region88: #{nlblock_cross_forward.2} parent=85 // pred_check_branch
              %422 = sbr.rel (0) target = $region90
            $region89: #{nlblock_cross_forward.2} parent=85 // pred_region
              // Predicated region
              $region102: #{nlblock_cross_forward.2} parent=89 // pred_check
                _
              $region103: #{nlblock_cross_forward.2} parent=89 // pred_check_branch
                %439 = sbr.rel (0) target = $region105
              $region104: #{nlblock_cross_forward.2} parent=89 // pred_region
                loop: start=0, step=1, limit=1
                $region106: #{nlblock_cross_forward.2} parent=104 // loop_pre_header
                  _
                $region107: #{nlblock_cross_forward.2} parent=104 // loop_header
                  %s441 = sphi 0, %s445
                  %p442 = scmp.ge.s32.totalorder %s441, 1
                  %s446 = sphi %s418, %s418
                  %s447 = sphi %s414, %s414
                $region108: #{nlblock_cross_forward.2} parent=104 // loop_header_branch
                  %444 = sbr.rel (%p442) target = $region112
                $region109: #{nlblock_cross_forward.2} parent=104 // loop_body
                  %v448 = vld [vmem:[%s446] sm:$0xff]
                  %449 = vst [vmem:[%s447] sm:$0xff] %v448
                  %v450 = vld [vmem:[%s446 + $0x10] sm:$0xff]
                  %451 = vst [vmem:[%s447 + $0x8] sm:$0xff] %v450
                $region110: #{nlblock_cross_forward.2} parent=104 // loop_footer
                  %s445 = sadd.s32 1, %s441
                $region111: #{nlblock_cross_forward.2} parent=104 // loop_footer_branch
                  %440 = sbr.rel target = $region107
                $region112: #{nlblock_cross_forward.2} parent=104 // loop_exit
                  _
              $region105: #{nlblock_cross_forward.2} parent=89 // pred_fallthru
                _
              // Predicated region
              $region113: #{nlblock_cross_forward.2} parent=89 // pred_check
                _
              $region114: #{nlblock_cross_forward.2} parent=89 // pred_check_branch
                %453 = sbr.rel target = $region116
              $region115: #{nlblock_cross_forward.2} parent=89 // pred_region
                _
              $region116: #{nlblock_cross_forward.2} parent=89 // pred_fallthru
                _
            $region90: #{nlblock_cross_forward.2} parent=85 // pred_fallthru
              _
            // Predicated region
            $region91: #{nlblock_cross_forward.2} parent=85 // pred_check
              _
            $region92: #{nlblock_cross_forward.2} parent=85 // pred_check_branch
              %424 = sbr.rel target = $region94
            $region93: #{nlblock_cross_forward.2} parent=85 // pred_region
              loop: start=0, step=1, limit=1
              $region95: #{nlblock_cross_forward.2} parent=93 // loop_pre_header
                _
              $region96: #{nlblock_cross_forward.2} parent=93 // loop_header
                %s427 = sphi 0, %s431
                %p428 = scmp.ge.s32.totalorder %s427, 1
                %s432 = sphi %s418, %s418
                %s433 = sphi %s414, %s414
              $region97: #{nlblock_cross_forward.2} parent=93 // loop_header_branch
                %430 = sbr.rel (%p428) target = $region101
              $region98: #{nlblock_cross_forward.2} parent=93 // loop_body
                %v434 = vld [vmem:[%s432] sm:$0xff]
                %435 = vst [vmem:[%s433] sm:$0xff] %v434
                %v436 = vld [vmem:[%s432 + $0x10] sm:$0xff]
                %437 = vst [vmem:[%s433 + $0x8] sm:$0xff] %v436
              $region99: #{nlblock_cross_forward.2} parent=93 // loop_footer
                %s431 = sadd.s32 1, %s427
              $region100: #{nlblock_cross_forward.2} parent=93 // loop_footer_branch
                %426 = sbr.rel target = $region96
              $region101: #{nlblock_cross_forward.2} parent=93 // loop_exit
                _
            $region94: #{nlblock_cross_forward.2} parent=85 // pred_fallthru
              _
          $region86: #{nlblock_cross_forward.2} parent=81 // pred_fallthru
            _
          %454 = vnop
        $region82: #{nlblock_cross_forward.2} parent=39 // pred_fallthru
          _
      $region40: #{nlblock_cross_forward.2} parent=5 // pred_fallthru
        _
      %p455 = scmp.le.s32.totalorder 1, %s18
      %p456 = scmp.lt.s32.totalorder %s18, 5
      %p457 = pnand %p455, %p456
      %p458 = pneg %p457
      // Predicated region
      $region117: #{nlblock_cross_forward.2} parent=5 // pred_check
        _
      $region118: #{nlblock_cross_forward.2} parent=5 // pred_check_branch
        %460 = sbr.rel (%p457) target = $region120
      $region119: #{nlblock_cross_forward.2} parent=5 // pred_region
        %s461 = ssub.s32 %s18, 1
        %s462 = sand.u32 %s45, 1
        %s463 = sand.u32 %s45, 1
        %s464 = smul.addr %s463, 16
        %s465 = scalar_lea.vmem [#allocation2], %s464
        // Predicated region
        $region121: #{nlblock_cross_forward.2} parent=119 // pred_check
          %p466 = pneg %p58
        $region122: #{nlblock_cross_forward.2} parent=119 // pred_check_branch
          %468 = sbr.rel (%p466) target = $region124
        $region123: #{nlblock_cross_forward.2} parent=119 // pred_region
          _
        $region124: #{nlblock_cross_forward.2} parent=119 // pred_fallthru
          _
        %s469 = sand.u32 %s73, 1
        %s470 = sand.u32 %s73, 1
        %s471 = smul.addr %s470, 16
        %s472 = scalar_lea.vmem [#allocation3], %s471
        // Predicated region
        $region125: #{nlblock_cross_forward.2} parent=119 // pred_check
          %p473 = pneg %p86
        $region126: #{nlblock_cross_forward.2} parent=119 // pred_check_branch
          %475 = sbr.rel (%p473) target = $region128
        $region127: #{nlblock_cross_forward.2} parent=119 // pred_region
          _
        $region128: #{nlblock_cross_forward.2} parent=119 // pred_fallthru
          _
        %s476 = sand.u32 %s45, 1
        %s477 = sand.u32 %s45, 1
        %s478 = smul.addr %s477, 16
        %s479 = scalar_lea.vmem [#allocation2], %s478
        %p480 = pneg %p58
        %p481 = pneg %p55
        %s482 = sand.u32 %s73, 1
        %s483 = sand.u32 %s73, 1
        %s484 = smul.addr %s483, 16
        %s485 = scalar_lea.vmem [#allocation3], %s484
        %p486 = pneg %p86
        %p487 = pneg %p83
        %p488 = pneg %p107
        %p489 = pneg %p104
        %p490 = pneg %p128
        %p491 = pneg %p125
        %p492 = pneg %p149
        %p493 = pneg %p146
        %p494 = pneg %p170
        %p495 = pneg %p167
        %p496 = pneg %p191
        %p497 = pneg %p188
        %p498 = pneg %p212
        %p499 = pneg %p209
        %p500 = pneg %p240
        %p501 = pneg %p237
        %p502 = scmp.lt.s32.totalorder %s27, 1
        %s503 = scalar_select %p502, %s27, 1
        %p504 = scmp.lt.s32.totalorder %s28, 1
        %s505 = scalar_select %p504, %s28, 1
        %s506 = smul.addr %s503, 2
        %s507 = sadd.s32 %s505, %s506
        %s508 = smul.addr %s507, 4
        %s509 = scalar_lea.vmem %s8, %s508
        %p510 = pneg %p268
        %p511 = pneg %p265
        %s512 = smul.u32 16, %s28
        %p513 = scmp.lt.s32.totalorder %s27, 1
        %s514 = scalar_select %p513, %s27, 1
        %p515 = scmp.lt.s32.totalorder %s512, 31
        %s516 = scalar_select %p515, %s512, 31
        %s517 = smul.addr %s514, 32
        %s518 = sadd.s32 %s516, %s517
        %s519 = smul.addr %s518, 4
        %s520 = scalar_lea.vmem %s9, %s519
        %p521 = pneg %p296
        %p522 = pneg %p293
        %p523 = scmp.lt.s32.totalorder %s27, 1
        %s524 = scalar_select %p523, %s27, 1
        %p525 = scmp.lt.s32.totalorder %s28, 1
        %s526 = scalar_select %p525, %s28, 1
        %s527 = smul.addr %s524, 2
        %s528 = sadd.s32 %s526, %s527
        %s529 = smul.addr %s528, 4
        %s530 = scalar_lea.vmem %s10, %s529
        %p531 = pneg %p324
        %p532 = pneg %p321
        %p533 = scmp.lt.s32.totalorder %s27, 1
        %s534 = scalar_select %p533, %s27, 1
        %p535 = scmp.lt.s32.totalorder %s28, 1
        %s536 = scalar_select %p535, %s28, 1
        %s537 = smul.addr %s534, 2
        %s538 = sadd.s32 %s536, %s537
        %s539 = smul.addr %s538, 8
        %s540 = scalar_lea.vmem %s11, %s539
        %p541 = scmp.lt.s32.totalorder %s27, 1
        %s542 = scalar_select %p541, %s27, 1
        %p543 = scmp.lt.s32.totalorder %s28, 1
        %s544 = scalar_select %p543, %s28, 1
        %s545 = smul.addr %s542, 2
        %s546 = sadd.s32 %s544, %s545
        %s547 = smul.addr %s546, 4
        %s548 = scalar_lea.vmem %s8, %s547
        %s549 = smul.u32 16, %s28
        %p550 = scmp.lt.s32.totalorder %s27, 1
        %s551 = scalar_select %p550, %s27, 1
        %p552 = scmp.lt.s32.totalorder %s549, 31
        %s553 = scalar_select %p552, %s549, 31
        %s554 = smul.addr %s551, 32
        %s555 = sadd.s32 %s553, %s554
        %s556 = smul.addr %s555, 4
        %s557 = scalar_lea.vmem %s9, %s556
        %s558 = smul.u32 16, %s28
        %p559 = scmp.lt.s32.totalorder %s27, 1
        %s560 = scalar_select %p559, %s27, 1
        %p561 = scmp.lt.s32.totalorder %s28, 1
        %s562 = scalar_select %p561, %s28, 1
        %s563 = smul.addr %s560, 2
        %s564 = sadd.s32 %s562, %s563
        %s565 = smul.addr %s564, 4
        %s566 = scalar_lea.vmem %s10, %s565
        %p567 = scmp.lt.s32.totalorder %s27, 1
        %s568 = scalar_select %p567, %s27, 1
        %p569 = scmp.lt.s32.totalorder %s28, 1
        %s570 = scalar_select %p569, %s28, 1
        %s571 = smul.addr %s568, 2
        %s572 = sadd.s32 %s570, %s571
        %s573 = smul.addr %s572, 8
        %s574 = scalar_lea.vmem %s11, %s573
        %v575 = vld [vmem:[%s465] sm:$0xff]
        %v576 = vld [vmem:[%s465 + $0x8] sm:$0xff]
        %v577 = vld [vmem:[%s472] sm:$0xff]
        %v578 = vld [vmem:[%s472 + $0x8] sm:$0xff]
        %v579 = vld [vmem:[%s2] sm:$0xff]
        %v580 = vld [vmem:[%s3] sm:$0xff]
        %582 = vset.pattern.permute.xlu0 0
        %583 = vperm.xlu0 %582, %v580
        %v584 = vpop.permute.xlu0 %583
        %vm586 = vcmask 130048
        %v588 = vsel %vm586, %v579, 0
        %590 = vmatprep.subr.mxu0 0.0
        %591 = vmatpush1.msra.mxu0 %v575
        %592 = vmatprep.subr.mxu0 0.0
        %593 = vmatpush1.msra.mxu0 %v576
        %594 = vmatprep.subr.mxu0 0.0
        %595 = vmatpush1.msra.mxu0 0.0
        %596 = vmatprep.subr.mxu0 0.0
        %597 = vmatpush1.msra.mxu0 0.0
        %598 = vmatprep.subr.mxu0 0.0
        %599 = vmatpush1.msra.mxu0 0.0
        %600 = vmatprep.subr.mxu0 0.0
        %601 = vmatpush1.msra.mxu0 0.0
        %602 = vmatprep.subr.mxu0 0.0
        %603 = vmatpush1.msra.mxu0 0.0
        %604 = vmatprep.subr.mxu0 0.0
        %605 = vmatpush1.msra.mxu0 0.0
        %606 = vmatprep.subr.mxu0 0.0
        %607 = vmatpush1.msra.mxu0 0.0
        %608 = vmatprep.subr.mxu0 0.0
        %609 = vmatpush1.msra.mxu0 0.0
        %610 = vmatprep.subr.mxu0 0.0
        %611 = vmatpush1.msra.mxu0 0.0
        %612 = vmatprep.subr.mxu0 0.0
        %613 = vmatpush1.msra.mxu0 0.0
        %614 = vmatprep.subr.mxu0 0.0
        %615 = vmatpush1.msra.mxu0 0.0
        %616 = vmatprep.subr.mxu0 0.0
        %617 = vmatpush1.msra.mxu0 0.0
        %618 = vmatprep.subr.mxu0 0.0
        %619 = vmatpush1.msra.mxu0 0.0
        %620 = vmatprep.subr.mxu0 0.0
        %621 = vmatpush1.msra.mxu0 0.0
        %622 = vmatprep.subr.mxu0 0.0
        %623 = vmatpush1.msra.mxu0 0.0
        %624 = vmatprep.subr.mxu0 0.0
        %625 = vmatpush1.msra.mxu0 0.0
        %626 = vmatprep.subr.mxu0 0.0
        %627 = vmatpush1.msra.mxu0 0.0
        %628 = vmatprep.subr.mxu0 0.0
        %629 = vmatpush1.msra.mxu0 0.0
        %630 = vmatprep.subr.mxu0 0.0
        %631 = vmatpush1.msra.mxu0 0.0
        %632 = vmatprep.subr.mxu0 0.0
        %633 = vmatpush1.msra.mxu0 0.0
        %634 = vmatprep.subr.mxu0 0.0
        %635 = vmatpush1.msra.mxu0 0.0
        %636 = vmatprep.subr.mxu0 0.0
        %637 = vmatpush1.msra.mxu0 0.0
        %638 = vmatprep.subr.mxu0 0.0
        %639 = vmatpush1.msra.mxu0 0.0
        %640 = vmatprep.subr.mxu0 0.0
        %641 = vmatpush1.msra.mxu0 0.0
        %642 = vmatprep.subr.mxu0 0.0
        %643 = vmatpush1.msra.mxu0 0.0
        %644 = vmatprep.subr.mxu0 0.0
        %645 = vmatpush1.msra.mxu0 0.0
        %646 = vmatprep.subr.mxu0 0.0
        %647 = vmatpush1.msra.mxu0 0.0
        %648 = vmatprep.subr.mxu0 0.0
        %649 = vmatpush1.msra.mxu0 0.0
        %650 = vmatprep.subr.mxu0 0.0
        %651 = vmatpush1.msra.mxu0 0.0
        %652 = vmatprep.subr.mxu0 0.0
        %653 = vmatpush1.msra.mxu0 0.0
        %654 = vmatprep.mubr.f32.mxu0 0.0
        %655 = vmatmul.mubr.f32.gmra.mrb[0].mxu0 %v588
        %v656 = vpop.f32.mrb[0].mxu0
        %v657 = vadd.f32 %v584, %v656
        %v658 = vpop.f32.mrb[0].mxu0
        %659 = vdwg.mxu0
        %v660 = vpack.c.bf16 %v657, %v657
        %661 = vst [vmem:[%s548] sm:$0xf] %v660
        %v662 = vld [vmem:[%s4] sm:$0xff]
        %v663 = vld [vmem:[%s5] sm:$0xff]
        %665 = vset.pattern.permute.xlu0 0
        %666 = vperm.xlu0 %665, %v663
        %v667 = vpop.permute.xlu0 %666
        %v670 = vsel %vm586, %v662, 0
        %672 = vmatprep.subr.mxu0 0.0
        %673 = vmatpush1.msra.mxu0 %v577
        %674 = vmatprep.subr.mxu0 0.0
        %675 = vmatpush1.msra.mxu0 %v578
        %676 = vmatprep.subr.mxu0 0.0
        %677 = vmatpush1.msra.mxu0 0.0
        %678 = vmatprep.subr.mxu0 0.0
        %679 = vmatpush1.msra.mxu0 0.0
        %680 = vmatprep.subr.mxu0 0.0
        %681 = vmatpush1.msra.mxu0 0.0
        %682 = vmatprep.subr.mxu0 0.0
        %683 = vmatpush1.msra.mxu0 0.0
        %684 = vmatprep.subr.mxu0 0.0
        %685 = vmatpush1.msra.mxu0 0.0
        %686 = vmatprep.subr.mxu0 0.0
        %687 = vmatpush1.msra.mxu0 0.0
        %688 = vmatprep.subr.mxu0 0.0
        %689 = vmatpush1.msra.mxu0 0.0
        %690 = vmatprep.subr.mxu0 0.0
        %691 = vmatpush1.msra.mxu0 0.0
        %692 = vmatprep.subr.mxu0 0.0
        %693 = vmatpush1.msra.mxu0 0.0
        %694 = vmatprep.subr.mxu0 0.0
        %695 = vmatpush1.msra.mxu0 0.0
        %696 = vmatprep.subr.mxu0 0.0
        %697 = vmatpush1.msra.mxu0 0.0
        %698 = vmatprep.subr.mxu0 0.0
        %699 = vmatpush1.msra.mxu0 0.0
        %700 = vmatprep.subr.mxu0 0.0
        %701 = vmatpush1.msra.mxu0 0.0
        %702 = vmatprep.subr.mxu0 0.0
        %703 = vmatpush1.msra.mxu0 0.0
        %704 = vmatprep.subr.mxu0 0.0
        %705 = vmatpush1.msra.mxu0 0.0
        %706 = vmatprep.subr.mxu0 0.0
        %707 = vmatpush1.msra.mxu0 0.0
        %708 = vmatprep.subr.mxu0 0.0
        %709 = vmatpush1.msra.mxu0 0.0
        %710 = vmatprep.subr.mxu0 0.0
        %711 = vmatpush1.msra.mxu0 0.0
        %712 = vmatprep.subr.mxu0 0.0
        %713 = vmatpush1.msra.mxu0 0.0
        %714 = vmatprep.subr.mxu0 0.0
        %715 = vmatpush1.msra.mxu0 0.0
        %716 = vmatprep.subr.mxu0 0.0
        %717 = vmatpush1.msra.mxu0 0.0
        %718 = vmatprep.subr.mxu0 0.0
        %719 = vmatpush1.msra.mxu0 0.0
        %720 = vmatprep.subr.mxu0 0.0
        %721 = vmatpush1.msra.mxu0 0.0
        %722 = vmatprep.subr.mxu0 0.0
        %723 = vmatpush1.msra.mxu0 0.0
        %724 = vmatprep.subr.mxu0 0.0
        %725 = vmatpush1.msra.mxu0 0.0
        %726 = vmatprep.subr.mxu0 0.0
        %727 = vmatpush1.msra.mxu0 0.0
        %728 = vmatprep.subr.mxu0 0.0
        %729 = vmatpush1.msra.mxu0 0.0
        %730 = vmatprep.subr.mxu0 0.0
        %731 = vmatpush1.msra.mxu0 0.0
        %732 = vmatprep.subr.mxu0 0.0
        %733 = vmatpush1.msra.mxu0 0.0
        %734 = vmatprep.subr.mxu0 0.0
        %735 = vmatpush1.msra.mxu0 0.0
        %736 = vmatprep.mubr.f32.mxu0 0.0
        %737 = vmatmul.mubr.f32.gmra.mrb[0].mxu0 %v670
        %v738 = vpop.f32.mrb[0].mxu0
        %v739 = vadd.f32 %v667, %v738
        %v740 = vpop.f32.mrb[0].mxu0
        %741 = vdwg.mxu0
        %742 = vxpose.xlu0.b32.start [1/16] %v739, 128
        %743 = vxpose.xlu0.b32.cont [2/16] 0.0, 128
        %744 = vxpose.xlu0.b32.cont [3/16] 0.0, 128
        %745 = vxpose.xlu0.b32.cont [4/16] 0.0, 128
        %746 = vxpose.xlu0.b32.cont [5/16] 0.0, 128
        %747 = vxpose.xlu0.b32.cont [6/16] 0.0, 128
        %748 = vxpose.xlu0.b32.cont [7/16] 0.0, 128
        %749 = vxpose.xlu0.b32.cont [8/16] 0.0, 128
        %750 = vxpose.xlu0.b32.cont [9/16] 0.0, 128
        %751 = vxpose.xlu0.b32.cont [10/16] 0.0, 128
        %752 = vxpose.xlu0.b32.cont [11/16] 0.0, 128
        %753 = vxpose.xlu0.b32.cont [12/16] 0.0, 128
        %754 = vxpose.xlu0.b32.cont [13/16] 0.0, 128
        %755 = vxpose.xlu0.b32.cont [14/16] 0.0, 128
        %756 = vxpose.xlu0.b32.cont [15/16] 0.0, 128
        %757 = vxpose.xlu0.b32.end [16/16] 0.0, 128
        %v758 = vpop.trf.xlu0
        %v759 = vpop.trf.xlu0
        %v760 = vpop.trf.xlu0
        %v761 = vpop.trf.xlu0
        %v762 = vpop.trf.xlu0
        %v763 = vpop.trf.xlu0
        %v764 = vpop.trf.xlu0
        %v765 = vpop.trf.xlu0
        %v766 = vpop.trf.xlu0
        %v767 = vpop.trf.xlu0
        %v768 = vpop.trf.xlu0
        %v769 = vpop.trf.xlu0
        %v770 = vpop.trf.xlu0
        %v771 = vpop.trf.xlu0
        %v772 = vpop.trf.xlu0
        %v773 = vpop.trf.xlu0
        %v774 = vpack.c.bf16 %v759, %v758
        %v775 = vpack.c.bf16 %v761, %v760
        %v776 = vpack.c.bf16 %v763, %v762
        %v777 = vpack.c.bf16 %v765, %v764
        %v778 = vpack.c.bf16 %v767, %v766
        %v779 = vpack.c.bf16 %v769, %v768
        %v780 = vpack.c.bf16 %v771, %v770
        %v781 = vpack.c.bf16 %v773, %v772
        %v790 = vunpack.c.l.b16 %v774
        %v791 = vunpack.c.h.b16 %v774
        %v792 = vunpack.c.l.b16 %v775
        %v793 = vunpack.c.h.b16 %v775
        %v794 = vunpack.c.l.b16 %v776
        %v795 = vunpack.c.h.b16 %v776
        %v796 = vunpack.c.l.b16 %v777
        %v797 = vunpack.c.h.b16 %v777
        %v798 = vunpack.c.l.b16 %v778
        %v799 = vunpack.c.h.b16 %v778
        %v800 = vunpack.c.l.b16 %v779
        %v801 = vunpack.c.h.b16 %v779
        %v802 = vunpack.c.l.b16 %v780
        %v803 = vunpack.c.h.b16 %v780
        %v804 = vunpack.c.l.b16 %v781
        %v805 = vunpack.c.h.b16 %v781
        %v806 = vpack.c.b16 %v790, %v790
        %v807 = vpack.c.b16 %v791, %v791
        %v808 = vpack.c.b16 %v792, %v792
        %v809 = vpack.c.b16 %v793, %v793
        %v810 = vpack.c.b16 %v794, %v794
        %v811 = vpack.c.b16 %v795, %v795
        %v812 = vpack.c.b16 %v796, %v796
        %v813 = vpack.c.b16 %v797, %v797
        %v814 = vpack.c.b16 %v798, %v798
        %v815 = vpack.c.b16 %v799, %v799
        %v816 = vpack.c.b16 %v800, %v800
        %v817 = vpack.c.b16 %v801, %v801
        %v818 = vpack.c.b16 %v802, %v802
        %v819 = vpack.c.b16 %v803, %v803
        %v820 = vpack.c.b16 %v804, %v804
        %v821 = vpack.c.b16 %v805, %v805
        %vm838 = vcmask 60416
        %839 = vst.msk [vmem:[%s557] sm:$0xf] %vm838, %v806
        %840 = vst.msk [vmem:[%s557 + $0x4] sm:$0xf] %vm838, %v807
        %841 = vst.msk [vmem:[%s557 + $0x8] sm:$0xf] %vm838, %v808
        %842 = vst.msk [vmem:[%s557 + $0xc] sm:$0xf] %vm838, %v809
        %843 = vst.msk [vmem:[%s557 + $0x10] sm:$0xf] %vm838, %v810
        %844 = vst.msk [vmem:[%s557 + $0x14] sm:$0xf] %vm838, %v811
        %845 = vst.msk [vmem:[%s557 + $0x18] sm:$0xf] %vm838, %v812
        %846 = vst.msk [vmem:[%s557 + $0x1c] sm:$0xf] %vm838, %v813
        %847 = vst.msk [vmem:[%s557 + $0x20] sm:$0xf] %vm838, %v814
        %848 = vst.msk [vmem:[%s557 + $0x24] sm:$0xf] %vm838, %v815
        %849 = vst.msk [vmem:[%s557 + $0x28] sm:$0xf] %vm838, %v816
        %850 = vst.msk [vmem:[%s557 + $0x2c] sm:$0xf] %vm838, %v817
        %851 = vst.msk [vmem:[%s557 + $0x30] sm:$0xf] %vm838, %v818
        %852 = vst.msk [vmem:[%s557 + $0x34] sm:$0xf] %vm838, %v819
        %853 = vst.msk [vmem:[%s557 + $0x38] sm:$0xf] %vm838, %v820
        %854 = vst.msk [vmem:[%s557 + $0x3c] sm:$0xf] %vm838, %v821
        %v855 = vld [vmem:[%s6] sm:$0xff]
        %v856 = vld [vmem:[%s6 + $0x8] sm:$0xff]
        %v857 = vld [vmem:[%s6 + $0x10] sm:$0xff]
        %v858 = vld [vmem:[%s6 + $0x18] sm:$0xff]
        %v859 = vld [vmem:[%s6 + $0x20] sm:$0xff]
        %v860 = vld [vmem:[%s6 + $0x28] sm:$0xff]
        %v861 = vld [vmem:[%s6 + $0x30] sm:$0xff]
        %v862 = vld [vmem:[%s6 + $0x38] sm:$0xff]
        %v863 = vld [vmem:[%s6 + $0x40] sm:$0xff]
        %v864 = vld [vmem:[%s6 + $0x48] sm:$0xff]
        %v865 = vld [vmem:[%s6 + $0x50] sm:$0xff]
        %v866 = vld [vmem:[%s6 + $0x58] sm:$0xff]
        %v867 = vld [vmem:[%s6 + $0x60] sm:$0xff]
        %v868 = vld [vmem:[%s6 + $0x68] sm:$0xff]
        %v869 = vld [vmem:[%s6 + $0x70] sm:$0xff]
        %v870 = vld [vmem:[%s6 + $0x78] sm:$0xff]
        %v871 = vld [vmem:[%s7] sm:$0x1]
        %v873 = vlaneseq
        %v874 = vshrl.u32 %v873, 7
        %v875 = vsub.s32 0, %v874
        %v876 = vrot.slane %v871, %v875
        %878 = vmatprep.subr.mxu0 0.0
        %879 = vmatpush1.msra.mxu0 %v855
        %880 = vmatprep.subr.mxu0 0.0
        %881 = vmatpush1.msra.mxu0 %v856
        %882 = vmatprep.subr.mxu0 0.0
        %883 = vmatpush1.msra.mxu0 %v857
        %884 = vmatprep.subr.mxu0 0.0
        %885 = vmatpush1.msra.mxu0 %v858
        %886 = vmatprep.subr.mxu0 0.0
        %887 = vmatpush1.msra.mxu0 %v859
        %888 = vmatprep.subr.mxu0 0.0
        %889 = vmatpush1.msra.mxu0 %v860
        %890 = vmatprep.subr.mxu0 0.0
        %891 = vmatpush1.msra.mxu0 %v861
        %892 = vmatprep.subr.mxu0 0.0
        %893 = vmatpush1.msra.mxu0 %v862
        %894 = vmatprep.subr.mxu0 0.0
        %895 = vmatpush1.msra.mxu0 %v863
        %896 = vmatprep.subr.mxu0 0.0
        %897 = vmatpush1.msra.mxu0 %v864
        %898 = vmatprep.subr.mxu0 0.0
        %899 = vmatpush1.msra.mxu0 %v865
        %900 = vmatprep.subr.mxu0 0.0
        %901 = vmatpush1.msra.mxu0 %v866
        %902 = vmatprep.subr.mxu0 0.0
        %903 = vmatpush1.msra.mxu0 %v867
        %904 = vmatprep.subr.mxu0 0.0
        %905 = vmatpush1.msra.mxu0 %v868
        %906 = vmatprep.subr.mxu0 0.0
        %907 = vmatpush1.msra.mxu0 %v869
        %908 = vmatprep.subr.mxu0 0.0
        %909 = vmatpush1.msra.mxu0 %v870
        %910 = vmatprep.subr.mxu0 0.0
        %911 = vmatpush1.msra.mxu0 0.0
        %912 = vmatprep.subr.mxu0 0.0
        %913 = vmatpush1.msra.mxu0 0.0
        %914 = vmatprep.subr.mxu0 0.0
        %915 = vmatpush1.msra.mxu0 0.0
        %916 = vmatprep.subr.mxu0 0.0
        %917 = vmatpush1.msra.mxu0 0.0
        %918 = vmatprep.subr.mxu0 0.0
        %919 = vmatpush1.msra.mxu0 0.0
        %920 = vmatprep.subr.mxu0 0.0
        %921 = vmatpush1.msra.mxu0 0.0
        %922 = vmatprep.subr.mxu0 0.0
        %923 = vmatpush1.msra.mxu0 0.0
        %924 = vmatprep.subr.mxu0 0.0
        %925 = vmatpush1.msra.mxu0 0.0
        %926 = vmatprep.subr.mxu0 0.0
        %927 = vmatpush1.msra.mxu0 0.0
        %928 = vmatprep.subr.mxu0 0.0
        %929 = vmatpush1.msra.mxu0 0.0
        %930 = vmatprep.subr.mxu0 0.0
        %931 = vmatpush1.msra.mxu0 0.0
        %932 = vmatprep.subr.mxu0 0.0
        %933 = vmatpush1.msra.mxu0 0.0
        %934 = vmatprep.subr.mxu0 0.0
        %935 = vmatpush1.msra.mxu0 0.0
        %936 = vmatprep.subr.mxu0 0.0
        %937 = vmatpush1.msra.mxu0 0.0
        %938 = vmatprep.subr.mxu0 0.0
        %939 = vmatpush1.msra.mxu0 0.0
        %940 = vmatprep.subr.mxu0 0.0
        %941 = vmatpush1.msra.mxu0 0.0
        %942 = vmatprep.mubr.f32.mxu0 0.0
        %943 = vmatmul.mubr.f32.gmra.mrb[0].mxu0 %v577
        %v944 = vpop.f32.mrb[0].mxu0
        %v945 = vadd.f32 %v876, %v944
        %v946 = vpop.f32.mrb[0].mxu0
        %947 = vmatprep.mubr.f32.mxu0 0.0
        %948 = vmatmul.mubr.f32.gmra.mrb[0].mxu0 %v578
        %v949 = vpop.f32.mrb[0].mxu0
        %v950 = vadd.f32 %v876, %v949
        %v951 = vpop.f32.mrb[0].mxu0
        %952 = vdwg.mxu0
        %v953 = vxor.u32 %v945, 2147483648
        %v954 = vxor.u32 %v950, 2147483648
        %v955 = vmul.f32 %v953, 1.442695
        %v956 = vpow.pop %v955
        %v957 = vmul.f32 %v954, 1.442695
        %v958 = vpow.pop %v957
        %v959 = vadd.f32 %v956, 1.0
        %v960 = vadd.f32 %v958, 1.0
        %v961 = vrcp.pop %v959
        %v962 = vmul.f32 1.0, %v961
        %v963 = vrcp.pop %v960
        %v964 = vmul.f32 1.0, %v963
        %v965 = vmul.f32 %v945, %v962
        %v966 = vmul.f32 %v950, %v964
        %v967 = vpack.c.bf16 %v965, %v965
        %968 = vst [vmem:[%s566] sm:$0xf] %v967
        %969 = vst [vmem:[%s574] sm:$0xff] %v966
        %p970 = scmp.lt.s32.totalorder %s27, 1
        %s971 = scalar_select %p970, %s27, 1
        %p972 = scmp.lt.s32.totalorder %s28, 1
        %s973 = scalar_select %p972, %s28, 1
        %s974 = smul.addr %s971, 2
        %s975 = sadd.s32 %s973, %s974
        %s976 = smul.addr %s975, 4
        %s977 = scalar_lea.vmem %s8, %s976
        %s978 = smul.u32 16, %s28
        %p979 = scmp.lt.s32.totalorder %s27, 1
        %s980 = scalar_select %p979, %s27, 1
        %p981 = scmp.lt.s32.totalorder %s978, 31
        %s982 = scalar_select %p981, %s978, 31
        %s983 = smul.addr %s980, 32
        %s984 = sadd.s32 %s982, %s983
        %s985 = smul.addr %s984, 4
        %s986 = scalar_lea.vmem %s9, %s985
        %p987 = scmp.lt.s32.totalorder %s27, 1
        %s988 = scalar_select %p987, %s27, 1
        %p989 = scmp.lt.s32.totalorder %s28, 1
        %s990 = scalar_select %p989, %s28, 1
        %s991 = smul.addr %s988, 2
        %s992 = sadd.s32 %s990, %s991
        %s993 = smul.addr %s992, 4
        %s994 = scalar_lea.vmem %s10, %s993
        %p995 = scmp.lt.s32.totalorder %s27, 1
        %s996 = scalar_select %p995, %s27, 1
        %p997 = scmp.lt.s32.totalorder %s28, 1
        %s998 = scalar_select %p997, %s28, 1
        %s999 = smul.addr %s996, 2
        %s1000 = sadd.s32 %s998, %s999
        %s1001 = smul.addr %s1000, 8
        %s1002 = scalar_lea.vmem %s11, %s1001
        // Predicated region
        $region129: #{nlblock_cross_forward.2} parent=119 // pred_check
          %p1003 = pneg %p237
        $region130: #{nlblock_cross_forward.2} parent=119 // pred_check_branch
          %1005 = sbr.rel (%p1003) target = $region132
        $region131: #{nlblock_cross_forward.2} parent=119 // pred_region
          _
        $region132: #{nlblock_cross_forward.2} parent=119 // pred_fallthru
          _
        // Predicated region
        $region133: #{nlblock_cross_forward.2} parent=119 // pred_check
          %p1006 = pneg %p265
        $region134: #{nlblock_cross_forward.2} parent=119 // pred_check_branch
          %1008 = sbr.rel (%p1006) target = $region136
        $region135: #{nlblock_cross_forward.2} parent=119 // pred_region
          %s1009 = smul.u32 16, %s28
        $region136: #{nlblock_cross_forward.2} parent=119 // pred_fallthru
          _
        // Predicated region
        $region137: #{nlblock_cross_forward.2} parent=119 // pred_check
          %p1010 = pneg %p293
        $region138: #{nlblock_cross_forward.2} parent=119 // pred_check_branch
          %1012 = sbr.rel (%p1010) target = $region140
        $region139: #{nlblock_cross_forward.2} parent=119 // pred_region
          _
        $region140: #{nlblock_cross_forward.2} parent=119 // pred_fallthru
          _
        // Predicated region
        $region141: #{nlblock_cross_forward.2} parent=119 // pred_check
          %p1013 = pneg %p321
        $region142: #{nlblock_cross_forward.2} parent=119 // pred_check_branch
          %1015 = sbr.rel (%p1013) target = $region144
        $region143: #{nlblock_cross_forward.2} parent=119 // pred_region
          _
        $region144: #{nlblock_cross_forward.2} parent=119 // pred_fallthru
          _
      $region120: #{nlblock_cross_forward.2} parent=5 // pred_fallthru
        _
      %p1016 = scmp.le.s32.totalorder 2, %s18
      // Predicated region
      $region145: #{nlblock_cross_forward.2} parent=5 // pred_check
        %p1017 = pneg %p1016
      $region146: #{nlblock_cross_forward.2} parent=5 // pred_check_branch
        %1019 = sbr.rel (%p1017) target = $region148
      $region147: #{nlblock_cross_forward.2} parent=5 // pred_region
        %s1020 = ssub.s32 %s18, 2
        // Predicated region
        $region149: #{nlblock_cross_forward.2} parent=147 // pred_check
          %p1021 = pneg %p243
        $region150: #{nlblock_cross_forward.2} parent=147 // pred_check_branch
          %1023 = sbr.rel (%p1021) target = $region152
        $region151: #{nlblock_cross_forward.2} parent=147 // pred_region
          %p1024 = scmp.lt.s32.totalorder %s29, 1
          %s1025 = scalar_select %p1024, %s29, 1
          %p1026 = scmp.lt.s32.totalorder %s30, 1
          %s1027 = scalar_select %p1026, %s30, 1
          %s1028 = smul.addr %s1025, 2
          %s1029 = sadd.s32 %s1027, %s1028
          %s1030 = smul.addr %s1029, 4
          %s1031 = scalar_lea.vmem %s8, %s1030
        $region152: #{nlblock_cross_forward.2} parent=147 // pred_fallthru
          _
        // Predicated region
        $region153: #{nlblock_cross_forward.2} parent=147 // pred_check
          %p1032 = pneg %p271
        $region154: #{nlblock_cross_forward.2} parent=147 // pred_check_branch
          %1034 = sbr.rel (%p1032) target = $region156
        $region155: #{nlblock_cross_forward.2} parent=147 // pred_region
          %s1035 = smul.u32 16, %s30
          %p1036 = scmp.lt.s32.totalorder %s29, 1
          %s1037 = scalar_select %p1036, %s29, 1
          %p1038 = scmp.lt.s32.totalorder %s1035, 31
          %s1039 = scalar_select %p1038, %s1035, 31
          %s1040 = smul.addr %s1037, 32
          %s1041 = sadd.s32 %s1039, %s1040
          %s1042 = smul.addr %s1041, 4
          %s1043 = scalar_lea.vmem %s9, %s1042
        $region156: #{nlblock_cross_forward.2} parent=147 // pred_fallthru
          _
        // Predicated region
        $region157: #{nlblock_cross_forward.2} parent=147 // pred_check
          %p1044 = pneg %p299
        $region158: #{nlblock_cross_forward.2} parent=147 // pred_check_branch
          %1046 = sbr.rel (%p1044) target = $region160
        $region159: #{nlblock_cross_forward.2} parent=147 // pred_region
          %p1047 = scmp.lt.s32.totalorder %s29, 1
          %s1048 = scalar_select %p1047, %s29, 1
          %p1049 = scmp.lt.s32.totalorder %s30, 1
          %s1050 = scalar_select %p1049, %s30, 1
          %s1051 = smul.addr %s1048, 2
          %s1052 = sadd.s32 %s1050, %s1051
          %s1053 = smul.addr %s1052, 4
          %s1054 = scalar_lea.vmem %s10, %s1053
        $region160: #{nlblock_cross_forward.2} parent=147 // pred_fallthru
          _
        // Predicated region
        $region161: #{nlblock_cross_forward.2} parent=147 // pred_check
          %p1055 = pneg %p327
        $region162: #{nlblock_cross_forward.2} parent=147 // pred_check_branch
          %1057 = sbr.rel (%p1055) target = $region164
        $region163: #{nlblock_cross_forward.2} parent=147 // pred_region
          %p1058 = scmp.lt.s32.totalorder %s29, 1
          %s1059 = scalar_select %p1058, %s29, 1
          %p1060 = scmp.lt.s32.totalorder %s30, 1
          %s1061 = scalar_select %p1060, %s30, 1
          %s1062 = smul.addr %s1059, 2
          %s1063 = sadd.s32 %s1061, %s1062
          %s1064 = smul.addr %s1063, 8
          %s1065 = scalar_lea.vmem %s11, %s1064
        $region164: #{nlblock_cross_forward.2} parent=147 // pred_fallthru
          _
      $region148: #{nlblock_cross_forward.2} parent=5 // pred_fallthru
        _
    $region6: #{nlblock_cross_forward.2} parent=1 // loop_footer
      %s22 = sadd.s32 1, %s18
    $region7: #{nlblock_cross_forward.2} parent=1 // loop_footer_branch
      %17 = sbr.rel target = $region3
    $region8: #{nlblock_cross_forward.2} parent=1 // loop_exit
      _

// kernel: nlblock_cross_forward.3
$region0: #{nlblock_cross_forward.3}
  #allocation0 [shape = 'u32[]', space=smem, size = 0x4, offset = 0x4, fixed_abs, tag = 'smem constant byte address 0x4 - core index']
  #allocation1 [shape = 'u32[144,128]{1,0:T(1,128)}', space=vmem, size = 0x12000, scoped, tag = 'internal scratch']
  #allocation2 [shape = 'f32[128,1]{1,0:T(8,128)}', space=vmem, size = 0x10000, scoped, tag = 'scratch operand']
  #allocation3 [shape = 'f32[128,1]{1,0:T(8,128)}', space=vmem, size = 0x10000, scoped, tag = 'scratch operand']
  #allocation4 [shape = 'f32[128,8]{1,0:T(8,128)}', space=vmem, size = 0x10000, scoped, tag = 'scratch operand']
  %s0 = inlined_call_operand.vmem [shape: bf16[2,256,8], index: 0, kind: input, shape index: {}]
  %s1 = inlined_call_operand.vmem [shape: bf16[2,8,256], index: 1, kind: input, shape index: {}]
  %s2 = inlined_call_operand.vmem [shape: bf16[2,8,256], index: 2, kind: input, shape index: {}]
  %s3 = inlined_call_operand.vmem [shape: f32[2,8,256], index: 3, kind: input, shape index: {}]
  %s4 = inlined_call_operand.vmem [shape: f32[2,16,256], index: 4, kind: input, shape index: {}]
  %s5 = inlined_call_operand.vmem [shape: f32[16,8], index: 5, kind: input, shape index: {}]
  %s6 = inlined_call_operand.vmem [shape: f32[16,1], index: 6, kind: input, shape index: {}]
  %s7 = inlined_call_operand.vmem [shape: f32[16,1], index: 7, kind: input, shape index: {}]
  %s8 = inlined_call_operand.vmem [shape: f32[16,1], index: 8, kind: input, shape index: {}]
  %s9 = inlined_call_operand.vmem [shape: f32[2,16,256], index: 9, kind: output, shape index: {}]
  %s10 = sld [smem:[#allocation0]]
  $region149: #{nlblock_cross_forward.3} parent=0
    _
  %s12 = ssub.s32 1, %s10
  %s13 = scalar_select 0, %s12, %s10
  $region1: #{nlblock_cross_forward.3} parent=0
    #allocation5 [shape = 'u8[16384]{0}', space=vmem, size = 0x4000, scoped, tag = 'input window, operand 4']
    #allocation6 [shape = 'u8[16384]{0}', space=vmem, size = 0x4000, scoped, tag = 'output window, operand 0']
    loop: start=0, step=1, limit=10
    $region2: #{nlblock_cross_forward.3} parent=1 // loop_pre_header
      _
    $region3: #{nlblock_cross_forward.3} parent=1 // loop_header
      %s15 = sphi 0, %s19
      %p16 = scmp.ge.s32.totalorder %s15, 10
      %s22 = sphi 0, %s41
      %s23 = sphi 0, %s37
      %s24 = sphi 0, %s33
      %s25 = sphi 0, %s22
      %s26 = sphi 0, %s23
      %s27 = sphi 0, %s24
      %s28 = sphi 0, %s25
      %s29 = sphi 0, %s26
      %s30 = sphi 0, %s27
      %s46 = sphi 0, %s48
      %s49 = sphi 0, %s46
      %s50 = sphi 0, %s49
      %s66 = sphi 0, %s50
      %s74 = sphi 0, %s76
      %s77 = sphi 0, %s74
      %s78 = sphi 0, %s77
      %s94 = sphi 0, %s78
      %s102 = sphi 0, %s104
      %s105 = sphi 0, %s102
      %s106 = sphi 0, %s105
      %s122 = sphi 0, %s106
      %s130 = sphi 0, %s132
      %s133 = sphi 0, %s130
      %s134 = sphi 0, %s133
      %s150 = sphi 0, %s134
      %s158 = sphi 0, %s160
      %s161 = sphi 0, %s158
      %s162 = sphi 0, %s161
      %s178 = sphi 0, %s162
      %s182 = sphi 0, %s182
      %s184 = sphi 0, %s182
      %s185 = sphi 0, %s184
      %s199 = sphi 0, %s185
      %s203 = sphi 0, %s203
      %s205 = sphi 0, %s203
      %s206 = sphi 0, %s205
      %s220 = sphi 0, %s206
      %s224 = sphi 0, %s224
      %s226 = sphi 0, %s224
      %s227 = sphi 0, %s226
      %s241 = sphi 0, %s227
      %s245 = sphi 0, %s245
      %s247 = sphi 0, %s245
      %s248 = sphi 0, %s247
      %s262 = sphi 0, %s248
      %s270 = sphi 0, %s272
      %s273 = sphi 0, %s270
      %s274 = sphi 0, %s273
      %s290 = sphi 0, %s274
    $region4: #{nlblock_cross_forward.3} parent=1 // loop_header_branch
      %18 = sbr.rel (%p16) target = $region8
    $region5: #{nlblock_cross_forward.3} parent=1 // loop_body
      %s20 = ssub.s32 %s15, 1
      %s21 = ssub.s32 %s15, 2
      %s31 = sadd.s32 1, %s24
      %p32 = scmp.ge.s32.totalorder %s31, 2
      %s33 = scalar_select %p32, 0, %s31
      %s34 = sadd.s32 1, %s23
      %s35 = scalar_select %p32, %s34, %s23
      %p36 = scmp.ge.s32.totalorder %s35, 2
      %s37 = scalar_select %p36, 0, %s35
      %s38 = sadd.s32 1, %s22
      %s39 = scalar_select %p36, %s38, %s22
      %p40 = scmp.ge.s32.totalorder %s39, 2
      %s41 = scalar_select %p40, 0, %s39
      %s42 = ssub.s32 %s22, %s41
      %s43 = ssub.s32 %s23, %s37
      %s44 = sor.u32 %s42, %s43
      %p45 = scmp.eq.s32.totalorder %s44, 0
      %s47 = sadd.s32 %s46, 1
      %s48 = scalar_select %p45, %s46, %s47
      %p51 = pneg %p45
      %p52 = scmp.eq.s32.totalorder %s15, 7
      %p53 = por %p51, %p52
      %p54 = scmp.ne.s32.totalorder %s46, %s49
      %p55 = scmp.eq.s32.totalorder %s15, 0
      %p56 = por %p54, %p55
      %p57 = scmp.ne.s32.totalorder %s46, %s49
      %p58 = scmp.eq.s32.totalorder %s20, 7
      %p59 = por %p57, %p58
      %p60 = scmp.ne.s32.totalorder %s49, %s50
      %p61 = scmp.eq.s32.totalorder %s20, 0
      %p62 = por %p60, %p61
      %p63 = scmp.ne.s32.totalorder %s49, %s50
      %p64 = scmp.eq.s32.totalorder %s21, 7
      %p65 = por %p63, %p64
      %p67 = scmp.ne.s32.totalorder %s50, %s66
      %p68 = scmp.eq.s32.totalorder %s21, 0
      %p69 = por %p67, %p68
      %s70 = ssub.s32 %s22, %s41
      %s71 = ssub.s32 %s24, %s33
      %s72 = sor.u32 %s70, %s71
      %p73 = scmp.eq.s32.totalorder %s72, 0
      %s75 = sadd.s32 %s74, 1
      %s76 = scalar_select %p73, %s74, %s75
      %p79 = pneg %p73
      %p80 = scmp.eq.s32.totalorder %s15, 7
      %p81 = por %p79, %p80
      %p82 = scmp.ne.s32.totalorder %s74, %s77
      %p83 = scmp.eq.s32.totalorder %s15, 0
      %p84 = por %p82, %p83
      %p85 = scmp.ne.s32.totalorder %s74, %s77
      %p86 = scmp.eq.s32.totalorder %s20, 7
      %p87 = por %p85, %p86
      %p88 = scmp.ne.s32.totalorder %s77, %s78
      %p89 = scmp.eq.s32.totalorder %s20, 0
      %p90 = por %p88, %p89
      %p91 = scmp.ne.s32.totalorder %s77, %s78
      %p92 = scmp.eq.s32.totalorder %s21, 7
      %p93 = por %p91, %p92
      %p95 = scmp.ne.s32.totalorder %s78, %s94
      %p96 = scmp.eq.s32.totalorder %s21, 0
      %p97 = por %p95, %p96
      %s98 = ssub.s32 %s22, %s41
      %s99 = ssub.s32 %s24, %s33
      %s100 = sor.u32 %s98, %s99
      %p101 = scmp.eq.s32.totalorder %s100, 0
      %s103 = sadd.s32 %s102, 1
      %s104 = scalar_select %p101, %s102, %s103
      %p107 = pneg %p101
      %p108 = scmp.eq.s32.totalorder %s15, 7
      %p109 = por %p107, %p108
      %p110 = scmp.ne.s32.totalorder %s102, %s105
      %p111 = scmp.eq.s32.totalorder %s15, 0
      %p112 = por %p110, %p111
      %p113 = scmp.ne.s32.totalorder %s102, %s105
      %p114 = scmp.eq.s32.totalorder %s20, 7
      %p115 = por %p113, %p114
      %p116 = scmp.ne.s32.totalorder %s105, %s106
      %p117 = scmp.eq.s32.totalorder %s20, 0
      %p118 = por %p116, %p117
      %p119 = scmp.ne.s32.totalorder %s105, %s106
      %p120 = scmp.eq.s32.totalorder %s21, 7
      %p121 = por %p119, %p120
      %p123 = scmp.ne.s32.totalorder %s106, %s122
      %p124 = scmp.eq.s32.totalorder %s21, 0
      %p125 = por %p123, %p124
      %s126 = ssub.s32 %s22, %s41
      %s127 = ssub.s32 %s23, %s37
      %s128 = sor.u32 %s126, %s127
      %p129 = scmp.eq.s32.totalorder %s128, 0
      %s131 = sadd.s32 %s130, 1
      %s132 = scalar_select %p129, %s130, %s131
      %p135 = pneg %p129
      %p136 = scmp.eq.s32.totalorder %s15, 7
      %p137 = por %p135, %p136
      %p138 = scmp.ne.s32.totalorder %s130, %s133
      %p139 = scmp.eq.s32.totalorder %s15, 0
      %p140 = por %p138, %p139
      %p141 = scmp.ne.s32.totalorder %s130, %s133
      %p142 = scmp.eq.s32.totalorder %s20, 7
      %p143 = por %p141, %p142
      %p144 = scmp.ne.s32.totalorder %s133, %s134
      %p145 = scmp.eq.s32.totalorder %s20, 0
      %p146 = por %p144, %p145
      %p147 = scmp.ne.s32.totalorder %s133, %s134
      %p148 = scmp.eq.s32.totalorder %s21, 7
      %p149 = por %p147, %p148
      %p151 = scmp.ne.s32.totalorder %s134, %s150
      %p152 = scmp.eq.s32.totalorder %s21, 0
      %p153 = por %p151, %p152
      %s154 = ssub.s32 %s22, %s41
      %s155 = ssub.s32 %s23, %s37
      %s156 = sor.u32 %s154, %s155
      %p157 = scmp.eq.s32.totalorder %s156, 0
      %s159 = sadd.s32 %s158, 1
      %s160 = scalar_select %p157, %s158, %s159
      %p163 = pneg %p157
      %p164 = scmp.eq.s32.totalorder %s15, 7
      %p165 = por %p163, %p164
      %p166 = scmp.ne.s32.totalorder %s158, %s161
      %p167 = scmp.eq.s32.totalorder %s15, 0
      %p168 = por %p166, %p167
      %p169 = scmp.ne.s32.totalorder %s158, %s161
      %p170 = scmp.eq.s32.totalorder %s20, 7
      %p171 = por %p169, %p170
      %p172 = scmp.ne.s32.totalorder %s161, %s162
      %p173 = scmp.eq.s32.totalorder %s20, 0
      %p174 = por %p172, %p173
      %p175 = scmp.ne.s32.totalorder %s161, %s162
      %p176 = scmp.eq.s32.totalorder %s21, 7
      %p177 = por %p175, %p176
      %p179 = scmp.ne.s32.totalorder %s162, %s178
      %p180 = scmp.eq.s32.totalorder %s21, 0
      %p181 = por %p179, %p180
      %s183 = sadd.s32 %s182, 1
      %p186 = scmp.eq.s32.totalorder %s15, 7
      %p187 = scmp.ne.s32.totalorder %s182, %s184
      %p188 = scmp.eq.s32.totalorder %s15, 0
      %p189 = por %p187, %p188
      %p190 = scmp.ne.s32.totalorder %s182, %s184
      %p191 = scmp.eq.s32.totalorder %s20, 7
      %p192 = por %p190, %p191
      %p193 = scmp.ne.s32.totalorder %s184, %s185
      %p194 = scmp.eq.s32.totalorder %s20, 0
      %p195 = por %p193, %p194
      %p196 = scmp.ne.s32.totalorder %s184, %s185
      %p197 = scmp.eq.s32.totalorder %s21, 7
      %p198 = por %p196, %p197
      %p200 = scmp.ne.s32.totalorder %s185, %s199
      %p201 = scmp.eq.s32.totalorder %s21, 0
      %p202 = por %p200, %p201
      %s204 = sadd.s32 %s203, 1
      %p207 = scmp.eq.s32.totalorder %s15, 7
      %p208 = scmp.ne.s32.totalorder %s203, %s205
      %p209 = scmp.eq.s32.totalorder %s15, 0
      %p210 = por %p208, %p209
      %p211 = scmp.ne.s32.totalorder %s203, %s205
      %p212 = scmp.eq.s32.totalorder %s20, 7
      %p213 = por %p211, %p212
      %p214 = scmp.ne.s32.totalorder %s205, %s206
      %p215 = scmp.eq.s32.totalorder %s20, 0
      %p216 = por %p214, %p215
      %p217 = scmp.ne.s32.totalorder %s205, %s206
      %p218 = scmp.eq.s32.totalorder %s21, 7
      %p219 = por %p217, %p218
      %p221 = scmp.ne.s32.totalorder %s206, %s220
      %p222 = scmp.eq.s32.totalorder %s21, 0
      %p223 = por %p221, %p222
      %s225 = sadd.s32 %s224, 1
      %p228 = scmp.eq.s32.totalorder %s15, 7
      %p229 = scmp.ne.s32.totalorder %s224, %s226
      %p230 = scmp.eq.s32.totalorder %s15, 0
      %p231 = por %p229, %p230
      %p232 = scmp.ne.s32.totalorder %s224, %s226
      %p233 = scmp.eq.s32.totalorder %s20, 7
      %p234 = por %p232, %p233
      %p235 = scmp.ne.s32.totalorder %s226, %s227
      %p236 = scmp.eq.s32.totalorder %s20, 0
      %p237 = por %p235, %p236
      %p238 = scmp.ne.s32.totalorder %s226, %s227
      %p239 = scmp.eq.s32.totalorder %s21, 7
      %p240 = por %p238, %p239
      %p242 = scmp.ne.s32.totalorder %s227, %s241
      %p243 = scmp.eq.s32.totalorder %s21, 0
      %p244 = por %p242, %p243
      %s246 = sadd.s32 %s245, 1
      %p249 = scmp.eq.s32.totalorder %s15, 7
      %p250 = scmp.ne.s32.totalorder %s245, %s247
      %p251 = scmp.eq.s32.totalorder %s15, 0
      %p252 = por %p250, %p251
      %p253 = scmp.ne.s32.totalorder %s245, %s247
      %p254 = scmp.eq.s32.totalorder %s20, 7
      %p255 = por %p253, %p254
      %p256 = scmp.ne.s32.totalorder %s247, %s248
      %p257 = scmp.eq.s32.totalorder %s20, 0
      %p258 = por %p256, %p257
      %p259 = scmp.ne.s32.totalorder %s247, %s248
      %p260 = scmp.eq.s32.totalorder %s21, 7
      %p261 = por %p259, %p260
      %p263 = scmp.ne.s32.totalorder %s248, %s262
      %p264 = scmp.eq.s32.totalorder %s21, 0
      %p265 = por %p263, %p264
      %s266 = ssub.s32 %s22, %s41
      %s267 = ssub.s32 %s23, %s37
      %s268 = sor.u32 %s266, %s267
      %p269 = scmp.eq.s32.totalorder %s268, 0
      %s271 = sadd.s32 %s270, 1
      %s272 = scalar_select %p269, %s270, %s271
      %p275 = pneg %p269
      %p276 = scmp.eq.s32.totalorder %s15, 7
      %p277 = por %p275, %p276
      %p278 = scmp.ne.s32.totalorder %s270, %s273
      %p279 = scmp.eq.s32.totalorder %s15, 0
      %p280 = por %p278, %p279
      %p281 = scmp.ne.s32.totalorder %s270, %s273
      %p282 = scmp.eq.s32.totalorder %s20, 7
      %p283 = por %p281, %p282
      %p284 = scmp.ne.s32.totalorder %s273, %s274
      %p285 = scmp.eq.s32.totalorder %s20, 0
      %p286 = por %p284, %p285
      %p287 = scmp.ne.s32.totalorder %s273, %s274
      %p288 = scmp.eq.s32.totalorder %s21, 7
      %p289 = por %p287, %p288
      %p291 = scmp.ne.s32.totalorder %s274, %s290
      %p292 = scmp.eq.s32.totalorder %s21, 0
      %p293 = por %p291, %p292
      %p294 = scmp.le.s32.totalorder 1, %s15
      %p295 = scmp.lt.s32.totalorder %s15, 9
      %p296 = pnand %p294, %p295
      %p297 = pneg %p296
      // Predicated region
      $region9: #{nlblock_cross_forward.3} parent=5 // pred_check
        _
      $region10: #{nlblock_cross_forward.3} parent=5 // pred_check_branch
        %299 = sbr.rel (%p296) target = $region12
      $region11: #{nlblock_cross_forward.3} parent=5 // pred_region
        %s300 = ssub.s32 %s15, 1
        // Predicated region
        $region13: #{nlblock_cross_forward.3} parent=11 // pred_check
          %p301 = pneg %p195
        $region14: #{nlblock_cross_forward.3} parent=11 // pred_check_branch
          %303 = sbr.rel (%p301) target = $region16
        $region15: #{nlblock_cross_forward.3} parent=11 // pred_region
          _
        $region16: #{nlblock_cross_forward.3} parent=11 // pred_fallthru
          _
        // Predicated region
        $region17: #{nlblock_cross_forward.3} parent=11 // pred_check
          %p304 = pneg %p216
        $region18: #{nlblock_cross_forward.3} parent=11 // pred_check_branch
          %306 = sbr.rel (%p304) target = $region20
        $region19: #{nlblock_cross_forward.3} parent=11 // pred_region
          _
        $region20: #{nlblock_cross_forward.3} parent=11 // pred_fallthru
          _
        // Predicated region
        $region21: #{nlblock_cross_forward.3} parent=11 // pred_check
          %p307 = pneg %p237
        $region22: #{nlblock_cross_forward.3} parent=11 // pred_check_branch
          %309 = sbr.rel (%p307) target = $region24
        $region23: #{nlblock_cross_forward.3} parent=11 // pred_region
          _
        $region24: #{nlblock_cross_forward.3} parent=11 // pred_fallthru
          _
        // Predicated region
        $region25: #{nlblock_cross_forward.3} parent=11 // pred_check
          %p310 = pneg %p258
        $region26: #{nlblock_cross_forward.3} parent=11 // pred_check_branch
          %312 = sbr.rel (%p310) target = $region28
        $region27: #{nlblock_cross_forward.3} parent=11 // pred_region
          _
        $region28: #{nlblock_cross_forward.3} parent=11 // pred_fallthru
          _
      $region12: #{nlblock_cross_forward.3} parent=5 // pred_fallthru
        _
      %p313 = scmp.lt.s32.totalorder %s15, 8
      // Predicated region
      $region29: #{nlblock_cross_forward.3} parent=5 // pred_check
        %p314 = pneg %p313
      $region30: #{nlblock_cross_forward.3} parent=5 // pred_check_branch
        %316 = sbr.rel (%p314) target = $region32
      $region31: #{nlblock_cross_forward.3} parent=5 // pred_region
        // Predicated region
        $region33: #{nlblock_cross_forward.3} parent=31 // pred_check
          %p317 = pneg %p56
        $region34: #{nlblock_cross_forward.3} parent=31 // pred_check_branch
          %319 = sbr.rel (%p317) target = $region36
        $region35: #{nlblock_cross_forward.3} parent=31 // pred_region
          %s320 = smul.u32 16, %s23
          %p321 = scmp.lt.s32.totalorder %s22, 1
          %s322 = scalar_select %p321, %s22, 1
          %p323 = scmp.lt.s32.totalorder %s320, 31
          %s324 = scalar_select %p323, %s320, 31
          %s325 = smul.addr %s322, 32
          %s326 = sadd.s32 %s324, %s325
          %s327 = smul.addr %s326, 4
          %s328 = scalar_lea.vmem %s0, %s327
          %s329 = smul.u32 16, %s23
        $region36: #{nlblock_cross_forward.3} parent=31 // pred_fallthru
          _
        // Predicated region
        $region37: #{nlblock_cross_forward.3} parent=31 // pred_check
          %p330 = pneg %p84
        $region38: #{nlblock_cross_forward.3} parent=31 // pred_check_branch
          %332 = sbr.rel (%p330) target = $region40
        $region39: #{nlblock_cross_forward.3} parent=31 // pred_region
          %p333 = scmp.lt.s32.totalorder %s22, 1
          %s334 = scalar_select %p333, %s22, 1
          %p335 = scmp.lt.s32.totalorder %s24, 1
          %s336 = scalar_select %p335, %s24, 1
          %s337 = smul.addr %s334, 2
          %s338 = sadd.s32 %s336, %s337
          %s339 = smul.addr %s338, 4
          %s340 = scalar_lea.vmem %s1, %s339
        $region40: #{nlblock_cross_forward.3} parent=31 // pred_fallthru
          _
        // Predicated region
        $region41: #{nlblock_cross_forward.3} parent=31 // pred_check
          %p341 = pneg %p112
        $region42: #{nlblock_cross_forward.3} parent=31 // pred_check_branch
          %343 = sbr.rel (%p341) target = $region44
        $region43: #{nlblock_cross_forward.3} parent=31 // pred_region
          %p344 = scmp.lt.s32.totalorder %s22, 1
          %s345 = scalar_select %p344, %s22, 1
          %p346 = scmp.lt.s32.totalorder %s24, 1
          %s347 = scalar_select %p346, %s24, 1
          %s348 = smul.addr %s345, 2
          %s349 = sadd.s32 %s347, %s348
          %s350 = smul.addr %s349, 4
          %s351 = scalar_lea.vmem %s2, %s350
        $region44: #{nlblock_cross_forward.3} parent=31 // pred_fallthru
          _
        // Predicated region
        $region45: #{nlblock_cross_forward.3} parent=31 // pred_check
          %p352 = pneg %p140
        $region46: #{nlblock_cross_forward.3} parent=31 // pred_check_branch
          %354 = sbr.rel (%p352) target = $region48
        $region47: #{nlblock_cross_forward.3} parent=31 // pred_region
          %p355 = scmp.lt.s32.totalorder %s22, 1
          %s356 = scalar_select %p355, %s22, 1
          %p357 = scmp.lt.s32.totalorder %s23, 1
          %s358 = scalar_select %p357, %s23, 1
          %s359 = smul.addr %s356, 2
          %s360 = sadd.s32 %s358, %s359
          %s361 = smul.addr %s360, 8
          %s362 = scalar_lea.vmem %s3, %s361
        $region48: #{nlblock_cross_forward.3} parent=31 // pred_fallthru
          _
        // Predicated region
        $region49: #{nlblock_cross_forward.3} parent=31 // pred_check
          %p363 = pneg %p168
        $region50: #{nlblock_cross_forward.3} parent=31 // pred_check_branch
          %365 = sbr.rel (%p363) target = $region52
        $region51: #{nlblock_cross_forward.3} parent=31 // pred_region
          %s366 = sand.u32 %s158, 1
          %s367 = sand.u32 %s158, 1
          %s368 = smul.addr %s367, 16
          %s369 = scalar_lea.vmem [#allocation5], %s368
          %s370 = smul.addr %s22, 4
          %s371 = sadd.s32 %s23, %s370
          %s372 = smul.addr %s371, 8
          %s373 = scalar_lea.vmem %s4, %s372
          // Predicated region
          $region53: #{nlblock_cross_forward.3} parent=51 // pred_check
            _
          $region54: #{nlblock_cross_forward.3} parent=51 // pred_check_branch
            %375 = sbr.rel (0) target = $region56
          $region55: #{nlblock_cross_forward.3} parent=51 // pred_region
            // Predicated region
            $region57: #{nlblock_cross_forward.3} parent=55 // pred_check
              _
            $region58: #{nlblock_cross_forward.3} parent=55 // pred_check_branch
              %377 = sbr.rel (0) target = $region60
            $region59: #{nlblock_cross_forward.3} parent=55 // pred_region
              // Predicated region
              $region72: #{nlblock_cross_forward.3} parent=59 // pred_check
                _
              $region73: #{nlblock_cross_forward.3} parent=59 // pred_check_branch
                %394 = sbr.rel (0) target = $region75
              $region74: #{nlblock_cross_forward.3} parent=59 // pred_region
                loop: start=0, step=1, limit=1
                $region76: #{nlblock_cross_forward.3} parent=74 // loop_pre_header
                  _
                $region77: #{nlblock_cross_forward.3} parent=74 // loop_header
                  %s396 = sphi 0, %s400
                  %p397 = scmp.ge.s32.totalorder %s396, 1
                  %s401 = sphi %s373, %s373
                  %s402 = sphi %s369, %s369
                $region78: #{nlblock_cross_forward.3} parent=74 // loop_header_branch
                  %399 = sbr.rel (%p397) target = $region82
                $region79: #{nlblock_cross_forward.3} parent=74 // loop_body
                  %v403 = vld [vmem:[%s401] sm:$0xff]
                  %404 = vst [vmem:[%s402] sm:$0xff] %v403
                  %v405 = vld [vmem:[%s401 + $0x10] sm:$0xff]
                  %406 = vst [vmem:[%s402 + $0x8] sm:$0xff] %v405
                $region80: #{nlblock_cross_forward.3} parent=74 // loop_footer
                  %s400 = sadd.s32 1, %s396
                $region81: #{nlblock_cross_forward.3} parent=74 // loop_footer_branch
                  %395 = sbr.rel target = $region77
                $region82: #{nlblock_cross_forward.3} parent=74 // loop_exit
                  _
              $region75: #{nlblock_cross_forward.3} parent=59 // pred_fallthru
                _
              // Predicated region
              $region83: #{nlblock_cross_forward.3} parent=59 // pred_check
                _
              $region84: #{nlblock_cross_forward.3} parent=59 // pred_check_branch
                %408 = sbr.rel target = $region86
              $region85: #{nlblock_cross_forward.3} parent=59 // pred_region
                _
              $region86: #{nlblock_cross_forward.3} parent=59 // pred_fallthru
                _
            $region60: #{nlblock_cross_forward.3} parent=55 // pred_fallthru
              _
            // Predicated region
            $region61: #{nlblock_cross_forward.3} parent=55 // pred_check
              _
            $region62: #{nlblock_cross_forward.3} parent=55 // pred_check_branch
              %379 = sbr.rel target = $region64
            $region63: #{nlblock_cross_forward.3} parent=55 // pred_region
              loop: start=0, step=1, limit=1
              $region65: #{nlblock_cross_forward.3} parent=63 // loop_pre_header
                _
              $region66: #{nlblock_cross_forward.3} parent=63 // loop_header
                %s382 = sphi 0, %s386
                %p383 = scmp.ge.s32.totalorder %s382, 1
                %s387 = sphi %s373, %s373
                %s388 = sphi %s369, %s369
              $region67: #{nlblock_cross_forward.3} parent=63 // loop_header_branch
                %385 = sbr.rel (%p383) target = $region71
              $region68: #{nlblock_cross_forward.3} parent=63 // loop_body
                %v389 = vld [vmem:[%s387] sm:$0xff]
                %390 = vst [vmem:[%s388] sm:$0xff] %v389
                %v391 = vld [vmem:[%s387 + $0x10] sm:$0xff]
                %392 = vst [vmem:[%s388 + $0x8] sm:$0xff] %v391
              $region69: #{nlblock_cross_forward.3} parent=63 // loop_footer
                %s386 = sadd.s32 1, %s382
              $region70: #{nlblock_cross_forward.3} parent=63 // loop_footer_branch
                %381 = sbr.rel target = $region66
              $region71: #{nlblock_cross_forward.3} parent=63 // loop_exit
                _
            $region64: #{nlblock_cross_forward.3} parent=55 // pred_fallthru
              _
          $region56: #{nlblock_cross_forward.3} parent=51 // pred_fallthru
            _
          %409 = vnop
        $region52: #{nlblock_cross_forward.3} parent=31 // pred_fallthru
          _
      $region32: #{nlblock_cross_forward.3} parent=5 // pred_fallthru
        _
      %p410 = scmp.le.s32.totalorder 1, %s15
      %p411 = scmp.lt.s32.totalorder %s15, 9
      %p412 = pnand %p410, %p411
      %p413 = pneg %p412
      // Predicated region
      $region87: #{nlblock_cross_forward.3} parent=5 // pred_check
        _
      $region88: #{nlblock_cross_forward.3} parent=5 // pred_check_branch
        %415 = sbr.rel (%p412) target = $region90
      $region89: #{nlblock_cross_forward.3} parent=5 // pred_region
        %s416 = ssub.s32 %s15, 1
        %s417 = sand.u32 %s161, 1
        %s418 = sand.u32 %s161, 1
        %s419 = smul.addr %s418, 16
        %s420 = scalar_lea.vmem [#allocation5], %s419
        // Predicated region
        $region91: #{nlblock_cross_forward.3} parent=89 // pred_check
          %p421 = pneg %p174
        $region92: #{nlblock_cross_forward.3} parent=89 // pred_check_branch
          %423 = sbr.rel (%p421) target = $region94
        $region93: #{nlblock_cross_forward.3} parent=89 // pred_region
          _
        $region94: #{nlblock_cross_forward.3} parent=89 // pred_fallthru
          _
        %s424 = smul.u32 16, %s26
        %p425 = scmp.lt.s32.totalorder %s25, 1
        %s426 = scalar_select %p425, %s25, 1
        %p427 = scmp.lt.s32.totalorder %s424, 31
        %s428 = scalar_select %p427, %s424, 31
        %s429 = smul.addr %s426, 32
        %s430 = sadd.s32 %s428, %s429
        %s431 = smul.addr %s430, 4
        %s432 = scalar_lea.vmem %s0, %s431
        %p433 = pneg %p62
        %p434 = pneg %p59
        %p435 = scmp.lt.s32.totalorder %s25, 1
        %s436 = scalar_select %p435, %s25, 1
        %p437 = scmp.lt.s32.totalorder %s27, 1
        %s438 = scalar_select %p437, %s27, 1
        %s439 = smul.addr %s436, 2
        %s440 = sadd.s32 %s438, %s439
        %s441 = smul.addr %s440, 4
        %s442 = scalar_lea.vmem %s1, %s441
        %p443 = pneg %p90
        %p444 = pneg %p87
        %p445 = scmp.lt.s32.totalorder %s25, 1
        %s446 = scalar_select %p445, %s25, 1
        %p447 = scmp.lt.s32.totalorder %s27, 1
        %s448 = scalar_select %p447, %s27, 1
        %s449 = smul.addr %s446, 2
        %s450 = sadd.s32 %s448, %s449
        %s451 = smul.addr %s450, 4
        %s452 = scalar_lea.vmem %s2, %s451
        %p453 = pneg %p118
        %p454 = pneg %p115
        %p455 = scmp.lt.s32.totalorder %s25, 1
        %s456 = scalar_select %p455, %s25, 1
        %p457 = scmp.lt.s32.totalorder %s26, 1
        %s458 = scalar_select %p457, %s26, 1
        %s459 = smul.addr %s456, 2
        %s460 = sadd.s32 %s458, %s459
        %s461 = smul.addr %s460, 8
        %s462 = scalar_lea.vmem %s3, %s461
        %p463 = pneg %p146
        %p464 = pneg %p143
        %s465 = sand.u32 %s161, 1
        %s466 = sand.u32 %s161, 1
        %s467 = smul.addr %s466, 16
        %s468 = scalar_lea.vmem [#allocation5], %s467
        %p469 = pneg %p174
        %p470 = pneg %p171
        %p471 = pneg %p195
        %p472 = pneg %p192
        %p473 = pneg %p216
        %p474 = pneg %p213
        %p475 = pneg %p237
        %p476 = pneg %p234
        %p477 = pneg %p258
        %p478 = pneg %p255
        %p479 = pneg %p286
        %p480 = pneg %p283
        %s481 = sand.u32 %s273, 1
        %s482 = sand.u32 %s273, 1
        %s483 = smul.addr %s482, 16
        %s484 = scalar_lea.vmem [#allocation6], %s483
        %s485 = smul.u32 16, %s26
        %p486 = scmp.lt.s32.totalorder %s25, 1
        %s487 = scalar_select %p486, %s25, 1
        %p488 = scmp.lt.s32.totalorder %s485, 31
        %s489 = scalar_select %p488, %s485, 31
        %s490 = smul.addr %s487, 32
        %s491 = sadd.s32 %s489, %s490
        %s492 = smul.addr %s491, 4
        %s493 = scalar_lea.vmem %s0, %s492
        %s494 = smul.u32 16, %s26
        %p495 = scmp.lt.s32.totalorder %s25, 1
        %s496 = scalar_select %p495, %s25, 1
        %p497 = scmp.lt.s32.totalorder %s27, 1
        %s498 = scalar_select %p497, %s27, 1
        %s499 = smul.addr %s496, 2
        %s500 = sadd.s32 %s498, %s499
        %s501 = smul.addr %s500, 4
        %s502 = scalar_lea.vmem %s1, %s501
        %p503 = scmp.lt.s32.totalorder %s25, 1
        %s504 = scalar_select %p503, %s25, 1
        %p505 = scmp.lt.s32.totalorder %s27, 1
        %s506 = scalar_select %p505, %s27, 1
        %s507 = smul.addr %s504, 2
        %s508 = sadd.s32 %s506, %s507
        %s509 = smul.addr %s508, 4
        %s510 = scalar_lea.vmem %s2, %s509
        %p511 = scmp.lt.s32.totalorder %s25, 1
        %s512 = scalar_select %p511, %s25, 1
        %p513 = scmp.lt.s32.totalorder %s26, 1
        %s514 = scalar_select %p513, %s26, 1
        %s515 = smul.addr %s512, 2
        %s516 = sadd.s32 %s514, %s515
        %s517 = smul.addr %s516, 8
        %s518 = scalar_lea.vmem %s3, %s517
        %p520 = scmp.eq.s32.totalorder %s27, 0
        // Predicated region
        $region95: #{nlblock_cross_forward.3} parent=89 // pred_check
          %p521 = pneg %p520
        $region96: #{nlblock_cross_forward.3} parent=89 // pred_check_branch
          %523 = sbr.rel (%p521) target = $region98
        $region97: #{nlblock_cross_forward.3} parent=89 // pred_region
          %vm524 = vcmask 7168
          %525 = vst.msk [vmem:[#allocation2] sm:$0xff] %vm524, -inf
          %526 = vst.msk [vmem:[#allocation2 + $0x8] sm:$0xff] %vm524, -inf
          %527 = vst.msk [vmem:[#allocation2 + $0x10] sm:$0xff] %vm524, -inf
          %528 = vst.msk [vmem:[#allocation2 + $0x18] sm:$0xff] %vm524, -inf
          %529 = vst.msk [vmem:[#allocation2 + $0x20] sm:$0xff] %vm524, -inf
          %530 = vst.msk [vmem:[#allocation2 + $0x28] sm:$0xff] %vm524, -inf
          %531 = vst.msk [vmem:[#allocation2 + $0x30] sm:$0xff] %vm524, -inf
          %532 = vst.msk [vmem:[#allocation2 + $0x38] sm:$0xff] %vm524, -inf
          %533 = vst.msk [vmem:[#allocation2 + $0x40] sm:$0xff] %vm524, -inf
          %534 = vst.msk [vmem:[#allocation2 + $0x48] sm:$0xff] %vm524, -inf
          %535 = vst.msk [vmem:[#allocation2 + $0x50] sm:$0xff] %vm524, -inf
          %536 = vst.msk [vmem:[#allocation2 + $0x58] sm:$0xff] %vm524, -inf
          %537 = vst.msk [vmem:[#allocation2 + $0x60] sm:$0xff] %vm524, -inf
          %538 = vst.msk [vmem:[#allocation2 + $0x68] sm:$0xff] %vm524, -inf
          %539 = vst.msk [vmem:[#allocation2 + $0x70] sm:$0xff] %vm524, -inf
          %540 = vst.msk [vmem:[#allocation2 + $0x78] sm:$0xff] %vm524, -inf
          %541 = vst.msk [vmem:[#allocation3] sm:$0xff] %vm524, 0.0
          %542 = vst.msk [vmem:[#allocation3 + $0x8] sm:$0xff] %vm524, 0.0
          %543 = vst.msk [vmem:[#allocation3 + $0x10] sm:$0xff] %vm524, 0.0
          %544 = vst.msk [vmem:[#allocation3 + $0x18] sm:$0xff] %vm524, 0.0
          %545 = vst.msk [vmem:[#allocation3 + $0x20] sm:$0xff] %vm524, 0.0
          %546 = vst.msk [vmem:[#allocation3 + $0x28] sm:$0xff] %vm524, 0.0
          %547 = vst.msk [vmem:[#allocation3 + $0x30] sm:$0xff] %vm524, 0.0
          %548 = vst.msk [vmem:[#allocation3 + $0x38] sm:$0xff] %vm524, 0.0
          %549 = vst.msk [vmem:[#allocation3 + $0x40] sm:$0xff] %vm524, 0.0
          %550 = vst.msk [vmem:[#allocation3 + $0x48] sm:$0xff] %vm524, 0.0
          %551 = vst.msk [vmem:[#allocation3 + $0x50] sm:$0xff] %vm524, 0.0
          %552 = vst.msk [vmem:[#allocation3 + $0x58] sm:$0xff] %vm524, 0.0
          %553 = vst.msk [vmem:[#allocation3 + $0x60] sm:$0xff] %vm524, 0.0
          %554 = vst.msk [vmem:[#allocation3 + $0x68] sm:$0xff] %vm524, 0.0
          %555 = vst.msk [vmem:[#allocation3 + $0x70] sm:$0xff] %vm524, 0.0
          %556 = vst.msk [vmem:[#allocation3 + $0x78] sm:$0xff] %vm524, 0.0
          %vm557 = vcmask 64512
          %558 = vst.msk [vmem:[#allocation4] sm:$0xff] %vm557, 0.0
          %559 = vst.msk [vmem:[#allocation4 + $0x8] sm:$0xff] %vm557, 0.0
          %560 = vst.msk [vmem:[#allocation4 + $0x10] sm:$0xff] %vm557, 0.0
          %561 = vst.msk [vmem:[#allocation4 + $0x18] sm:$0xff] %vm557, 0.0
          %562 = vst.msk [vmem:[#allocation4 + $0x20] sm:$0xff] %vm557, 0.0
          %563 = vst.msk [vmem:[#allocation4 + $0x28] sm:$0xff] %vm557, 0.0
          %564 = vst.msk [vmem:[#allocation4 + $0x30] sm:$0xff] %vm557, 0.0
          %565 = vst.msk [vmem:[#allocation4 + $0x38] sm:$0xff] %vm557, 0.0
          %566 = vst.msk [vmem:[#allocation4 + $0x40] sm:$0xff] %vm557, 0.0
          %567 = vst.msk [vmem:[#allocation4 + $0x48] sm:$0xff] %vm557, 0.0
          %568 = vst.msk [vmem:[#allocation4 + $0x50] sm:$0xff] %vm557, 0.0
          %569 = vst.msk [vmem:[#allocation4 + $0x58] sm:$0xff] %vm557, 0.0
          %570 = vst.msk [vmem:[#allocation4 + $0x60] sm:$0xff] %vm557, 0.0
          %571 = vst.msk [vmem:[#allocation4 + $0x68] sm:$0xff] %vm557, 0.0
          %572 = vst.msk [vmem:[#allocation4 + $0x70] sm:$0xff] %vm557, 0.0
          %573 = vst.msk [vmem:[#allocation4 + $0x78] sm:$0xff] %vm557, 0.0
        $region98: #{nlblock_cross_forward.3} parent=89 // pred_fallthru
          _
        %v574 = vld [vmem:[%s493] sm:$0xf]
        %v575 = vld [vmem:[%s493 + $0x4] sm:$0xf]
        %v576 = vld [vmem:[%s493 + $0x8] sm:$0xf]
        %v577 = vld [vmem:[%s493 + $0xc] sm:$0xf]
        %v578 = vld [vmem:[%s493 + $0x10] sm:$0xf]
        %v579 = vld [vmem:[%s493 + $0x14] sm:$0xf]
        %v580 = vld [vmem:[%s493 + $0x18] sm:$0xf]
        %v581 = vld [vmem:[%s493 + $0x1c] sm:$0xf]
        %v582 = vld [vmem:[%s493 + $0x20] sm:$0xf]
        %v583 = vld [vmem:[%s493 + $0x24] sm:$0xf]
        %v584 = vld [vmem:[%s493 + $0x28] sm:$0xf]
        %v585 = vld [vmem:[%s493 + $0x2c] sm:$0xf]
        %v586 = vld [vmem:[%s493 + $0x30] sm:$0xf]
        %v587 = vld [vmem:[%s493 + $0x34] sm:$0xf]
        %v588 = vld [vmem:[%s493 + $0x38] sm:$0xf]
        %v589 = vld [vmem:[%s493 + $0x3c] sm:$0xf]
        %v590 = vld [vmem:[%s502] sm:$0xf]
        %v607 = vunpack.c.l.b16 %v574
        %v608 = vunpack.c.l.b16 %v575
        %v609 = vunpack.c.l.b16 %v576
        %v610 = vunpack.c.l.b16 %v577
        %v611 = vunpack.c.l.b16 %v578
        %v612 = vunpack.c.l.b16 %v579
        %v613 = vunpack.c.l.b16 %v580
        %v614 = vunpack.c.l.b16 %v581
        %v615 = vunpack.c.l.b16 %v582
        %v616 = vunpack.c.l.b16 %v583
        %v617 = vunpack.c.l.b16 %v584
        %v618 = vunpack.c.l.b16 %v585
        %v619 = vunpack.c.l.b16 %v586
        %v620 = vunpack.c.l.b16 %v587
        %v621 = vunpack.c.l.b16 %v588
        %v622 = vunpack.c.l.b16 %v589
        %v623 = vpack.c.b16 %v608, %v607
        %v624 = vpack.c.b16 %v610, %v609
        %v625 = vpack.c.b16 %v612, %v611
        %v626 = vpack.c.b16 %v614, %v613
        %v627 = vpack.c.b16 %v616, %v615
        %v628 = vpack.c.b16 %v618, %v617
        %v629 = vpack.c.b16 %v620, %v619
        %v630 = vpack.c.b16 %v622, %v621
        %vm631 = vcmask 64512
        %v633 = vsel %vm631, %v623, 0
        %v636 = vsel %vm631, %v624, 0
        %v639 = vsel %vm631, %v625, 0
        %v642 = vsel %vm631, %v626, 0
        %v645 = vsel %vm631, %v627, 0
        %v648 = vsel %vm631, %v628, 0
        %v651 = vsel %vm631, %v629, 0
        %v654 = vsel %vm631, %v630, 0
        %vm656 = vcmask 1043456
        %v658 = vsel %vm656, %v590, 0
        %660 = vmatprep.subr.bf16.mxu0 0
        %661 = vmatpush1.bf16.msra.mxu0 %v658
        %662 = vmatprep.subr.bf16.mxu0 0
        %663 = vmatpush1.bf16.msra.mxu0 0
        %664 = vmatprep.subr.bf16.mxu0 0
        %665 = vmatpush1.bf16.msra.mxu0 0
        %666 = vmatprep.subr.bf16.mxu0 0
        %667 = vmatpush1.bf16.msra.mxu0 0
        %668 = vmatprep.subr.bf16.mxu0 0
        %669 = vmatpush1.bf16.msra.mxu0 0
        %670 = vmatprep.subr.bf16.mxu0 0
        %671 = vmatpush1.bf16.msra.mxu0 0
        %672 = vmatprep.subr.bf16.mxu0 0
        %673 = vmatpush1.bf16.msra.mxu0 0
        %674 = vmatprep.subr.bf16.mxu0 0
        %675 = vmatpush1.bf16.msra.mxu0 0
        %676 = vmatprep.subr.bf16.mxu0 0
        %677 = vmatpush1.bf16.msra.mxu0 0
        %678 = vmatprep.subr.bf16.mxu0 0
        %679 = vmatpush1.bf16.msra.mxu0 0
        %680 = vmatprep.subr.bf16.mxu0 0
        %681 = vmatpush1.bf16.msra.mxu0 0
        %682 = vmatprep.subr.bf16.mxu0 0
        %683 = vmatpush1.bf16.msra.mxu0 0
        %684 = vmatprep.subr.bf16.mxu0 0
        %685 = vmatpush1.bf16.msra.mxu0 0
        %686 = vmatprep.subr.bf16.mxu0 0
        %687 = vmatpush1.bf16.msra.mxu0 0
        %688 = vmatprep.subr.bf16.mxu0 0
        %689 = vmatpush1.bf16.msra.mxu0 0
        %690 = vmatprep.subr.bf16.mxu0 0
        %691 = vmatpush1.bf16.msra.mxu0 0
        %692 = vmatprep.mubr.bf16.mxu0 0
        %693 = vmatmul.mubr.bf16.gmra.mrb[0].mxu0 %v633
        %v694 = vpop.f32.mrb[0].mxu0
        %v695 = vadd.f32 0.0, %v694
        %v696 = vpop.f32.mrb[0].mxu0
        %v697 = vpop.f32.mrb[0].mxu0
        %v698 = vadd.f32 0.0, %v697
        %v699 = vpop.f32.mrb[0].mxu0
        %700 = vmatprep.mubr.bf16.mxu0 0
        %701 = vmatmul.mubr.bf16.gmra.mrb[0].mxu0 %v636
        %v702 = vpop.f32.mrb[0].mxu0
        %v703 = vadd.f32 0.0, %v702
        %v704 = vpop.f32.mrb[0].mxu0
        %v705 = vpop.f32.mrb[0].mxu0
        %v706 = vadd.f32 0.0, %v705
        %v707 = vpop.f32.mrb[0].mxu0
        %708 = vmatprep.mubr.bf16.mxu0 0
        %709 = vmatmul.mubr.bf16.gmra.mrb[0].mxu0 %v639
        %v710 = vpop.f32.mrb[0].mxu0
        %v711 = vadd.f32 0.0, %v710
        %v712 = vpop.f32.mrb[0].mxu0
        %v713 = vpop.f32.mrb[0].mxu0
        %v714 = vadd.f32 0.0, %v713
        %v715 = vpop.f32.mrb[0].mxu0
        %716 = vmatprep.mubr.bf16.mxu0 0
        %717 = vmatmul.mubr.bf16.gmra.mrb[0].mxu0 %v642
        %v718 = vpop.f32.mrb[0].mxu0
        %v719 = vadd.f32 0.0, %v718
        %v720 = vpop.f32.mrb[0].mxu0
        %v721 = vpop.f32.mrb[0].mxu0
        %v722 = vadd.f32 0.0, %v721
        %v723 = vpop.f32.mrb[0].mxu0
        %724 = vmatprep.mubr.bf16.mxu0 0
        %725 = vmatmul.mubr.bf16.gmra.mrb[0].mxu0 %v645
        %v726 = vpop.f32.mrb[0].mxu0
        %v727 = vadd.f32 0.0, %v726
        %v728 = vpop.f32.mrb[0].mxu0
        %v729 = vpop.f32.mrb[0].mxu0
        %v730 = vadd.f32 0.0, %v729
        %v731 = vpop.f32.mrb[0].mxu0
        %732 = vmatprep.mubr.bf16.mxu0 0
        %733 = vmatmul.mubr.bf16.gmra.mrb[0].mxu0 %v648
        %v734 = vpop.f32.mrb[0].mxu0
        %v735 = vadd.f32 0.0, %v734
        %v736 = vpop.f32.mrb[0].mxu0
        %v737 = vpop.f32.mrb[0].mxu0
        %v738 = vadd.f32 0.0, %v737
        %v739 = vpop.f32.mrb[0].mxu0
        %740 = vmatprep.mubr.bf16.mxu0 0
        %741 = vmatmul.mubr.bf16.gmra.mrb[0].mxu0 %v651
        %v742 = vpop.f32.mrb[0].mxu0
        %v743 = vadd.f32 0.0, %v742
        %v744 = vpop.f32.mrb[0].mxu0
        %v745 = vpop.f32.mrb[0].mxu0
        %v746 = vadd.f32 0.0, %v745
        %v747 = vpop.f32.mrb[0].mxu0
        %748 = vmatprep.mubr.bf16.mxu0 0
        %749 = vmatmul.mubr.bf16.gmra.mrb[0].mxu0 %v654
        %v750 = vpop.f32.mrb[0].mxu0
        %v751 = vadd.f32 0.0, %v750
        %v752 = vpop.f32.mrb[0].mxu0
        %v753 = vpop.f32.mrb[0].mxu0
        %v754 = vadd.f32 0.0, %v753
        %v755 = vpop.f32.mrb[0].mxu0
        %756 = vdwg.mxu0
        %v757 = vld [vmem:[#allocation2] sm:$0xff]
        %v758 = vld [vmem:[#allocation2 + $0x8] sm:$0xff]
        %v759 = vld [vmem:[#allocation2 + $0x10] sm:$0xff]
        %v760 = vld [vmem:[#allocation2 + $0x18] sm:$0xff]
        %v761 = vld [vmem:[#allocation2 + $0x20] sm:$0xff]
        %v762 = vld [vmem:[#allocation2 + $0x28] sm:$0xff]
        %v763 = vld [vmem:[#allocation2 + $0x30] sm:$0xff]
        %v764 = vld [vmem:[#allocation2 + $0x38] sm:$0xff]
        %v765 = vld [vmem:[#allocation2 + $0x40] sm:$0xff]
        %v766 = vld [vmem:[#allocation2 + $0x48] sm:$0xff]
        %v767 = vld [vmem:[#allocation2 + $0x50] sm:$0xff]
        %v768 = vld [vmem:[#allocation2 + $0x58] sm:$0xff]
        %v769 = vld [vmem:[#allocation2 + $0x60] sm:$0xff]
        %v770 = vld [vmem:[#allocation2 + $0x68] sm:$0xff]
        %v771 = vld [vmem:[#allocation2 + $0x70] sm:$0xff]
        %v772 = vld [vmem:[#allocation2 + $0x78] sm:$0xff]
        %773 = vmax.xlane.f32.xlu0 %v695
        %v774 = vpop.xlane.xlu0 %773
        %775 = vmax.xlane.f32.xlu0 %v698
        %v776 = vpop.xlane.xlu0 %775
        %777 = vmax.xlane.f32.xlu0 %v703
        %v778 = vpop.xlane.xlu0 %777
        %779 = vmax.xlane.f32.xlu0 %v706
        %v780 = vpop.xlane.xlu0 %779
        %781 = vmax.xlane.f32.xlu0 %v711
        %v782 = vpop.xlane.xlu0 %781
        %783 = vmax.xlane.f32.xlu0 %v714
        %v784 = vpop.xlane.xlu0 %783
        %785 = vmax.xlane.f32.xlu0 %v719
        %v786 = vpop.xlane.xlu0 %785
        %787 = vmax.xlane.f32.xlu0 %v722
        %v788 = vpop.xlane.xlu0 %787
        %789 = vmax.xlane.f32.xlu0 %v727
        %v790 = vpop.xlane.xlu0 %789
        %791 = vmax.xlane.f32.xlu0 %v730
        %v792 = vpop.xlane.xlu0 %791
        %793 = vmax.xlane.f32.xlu0 %v735
        %v794 = vpop.xlane.xlu0 %793
        %795 = vmax.xlane.f32.xlu0 %v738
        %v796 = vpop.xlane.xlu0 %795
        %797 = vmax.xlane.f32.xlu0 %v743
        %v798 = vpop.xlane.xlu0 %797
        %799 = vmax.xlane.f32.xlu0 %v746
        %v800 = vpop.xlane.xlu0 %799
        %801 = vmax.xlane.f32.xlu0 %v751
        %v802 = vpop.xlane.xlu0 %801
        %803 = vmax.xlane.f32.xlu0 %v754
        %v804 = vpop.xlane.xlu0 %803
        %v805 = vmax.f32 %v757, %v774
        %v806 = vmax.f32 %v758, %v776
        %v807 = vmax.f32 %v759, %v778
        %v808 = vmax.f32 %v760, %v780
        %v809 = vmax.f32 %v761, %v782
        %v810 = vmax.f32 %v762, %v784
        %v811 = vmax.f32 %v763, %v786
        %v812 = vmax.f32 %v764, %v788
        %v813 = vmax.f32 %v765, %v790
        %v814 = vmax.f32 %v766, %v792
        %v815 = vmax.f32 %v767, %v794
        %v816 = vmax.f32 %v768, %v796
        %v817 = vmax.f32 %v769, %v798
        %v818 = vmax.f32 %v770, %v800
        %v819 = vmax.f32 %v771, %v802
        %v820 = vmax.f32 %v772, %v804
        %v821 = vsub.f32 %v757, %v805
        %v822 = vsub.f32 %v758, %v806
        %v823 = vsub.f32 %v759, %v807
        %v824 = vsub.f32 %v760, %v808
        %v825 = vsub.f32 %v761, %v809
        %v826 = vsub.f32 %v762, %v810
        %v827 = vsub.f32 %v763, %v811
        %v828 = vsub.f32 %v764, %v812
        %v829 = vsub.f32 %v765, %v813
        %v830 = vsub.f32 %v766, %v814
        %v831 = vsub.f32 %v767, %v815
        %v832 = vsub.f32 %v768, %v816
        %v833 = vsub.f32 %v769, %v817
        %v834 = vsub.f32 %v770, %v818
        %v835 = vsub.f32 %v771, %v819
        %v836 = vsub.f32 %v772, %v820
        %v837 = vmul.f32 %v821, 1.442695
        %v838 = vpow.pop %v837
        %v839 = vmul.f32 %v822, 1.442695
        %v840 = vpow.pop %v839
        %v841 = vmul.f32 %v823, 1.442695
        %v842 = vpow.pop %v841
        %v843 = vmul.f32 %v824, 1.442695
        %v844 = vpow.pop %v843
        %v845 = vmul.f32 %v825, 1.442695
        %v846 = vpow.pop %v845
        %v847 = vmul.f32 %v826, 1.442695
        %v848 = vpow.pop %v847
        %v849 = vmul.f32 %v827, 1.442695
        %v850 = vpow.pop %v849
        %v851 = vmul.f32 %v828, 1.442695
        %v852 = vpow.pop %v851
        %v853 = vmul.f32 %v829, 1.442695
        %v854 = vpow.pop %v853
        %v855 = vmul.f32 %v830, 1.442695
        %v856 = vpow.pop %v855
        %v857 = vmul.f32 %v831, 1.442695
        %v858 = vpow.pop %v857
        %v859 = vmul.f32 %v832, 1.442695
        %v860 = vpow.pop %v859
        %v861 = vmul.f32 %v833, 1.442695
        %v862 = vpow.pop %v861
        %v863 = vmul.f32 %v834, 1.442695
        %v864 = vpow.pop %v863
        %v865 = vmul.f32 %v835, 1.442695
        %v866 = vpow.pop %v865
        %v867 = vmul.f32 %v836, 1.442695
        %v868 = vpow.pop %v867
        %870 = vset.pattern.permute.xlu0 0
        %871 = vperm.xlu0 %870, %v805
        %v872 = vpop.permute.xlu0 %871
        %875 = vset.pattern.permute.xlu0 0
        %876 = vperm.xlu0 %875, %v806
        %v877 = vpop.permute.xlu0 %876
        %880 = vset.pattern.permute.xlu0 0
        %881 = vperm.xlu0 %880, %v807
        %v882 = vpop.permute.xlu0 %881
        %885 = vset.pattern.permute.xlu0 0
        %886 = vperm.xlu0 %885, %v808
        %v887 = vpop.permute.xlu0 %886
        %890 = vset.pattern.permute.xlu0 0
        %891 = vperm.xlu0 %890, %v809
        %v892 = vpop.permute.xlu0 %891
        %895 = vset.pattern.permute.xlu0 0
        %896 = vperm.xlu0 %895, %v810
        %v897 = vpop.permute.xlu0 %896
        %900 = vset.pattern.permute.xlu0 0
        %901 = vperm.xlu0 %900, %v811
        %v902 = vpop.permute.xlu0 %901
        %905 = vset.pattern.permute.xlu0 0
        %906 = vperm.xlu0 %905, %v812
        %v907 = vpop.permute.xlu0 %906
        %910 = vset.pattern.permute.xlu0 0
        %911 = vperm.xlu0 %910, %v813
        %v912 = vpop.permute.xlu0 %911
        %915 = vset.pattern.permute.xlu0 0
        %916 = vperm.xlu0 %915, %v814
        %v917 = vpop.permute.xlu0 %916
        %920 = vset.pattern.permute.xlu0 0
        %921 = vperm.xlu0 %920, %v815
        %v922 = vpop.permute.xlu0 %921
        %925 = vset.pattern.permute.xlu0 0
        %926 = vperm.xlu0 %925, %v816
        %v927 = vpop.permute.xlu0 %926
        %930 = vset.pattern.permute.xlu0 0
        %931 = vperm.xlu0 %930, %v817
        %v932 = vpop.permute.xlu0 %931
        %935 = vset.pattern.permute.xlu0 0
        %936 = vperm.xlu0 %935, %v818
        %v937 = vpop.permute.xlu0 %936
        %940 = vset.pattern.permute.xlu0 0
        %941 = vperm.xlu0 %940, %v819
        %v942 = vpop.permute.xlu0 %941
        %945 = vset.pattern.permute.xlu0 0
        %946 = vperm.xlu0 %945, %v820
        %v947 = vpop.permute.xlu0 %946
        %v949 = vsub.f32 %v695, %v872
        %v950 = vsub.f32 %v698, %v877
        %v951 = vsub.f32 %v703, %v882
        %v952 = vsub.f32 %v706, %v887
        %v953 = vsub.f32 %v711, %v892
        %v954 = vsub.f32 %v714, %v897
        %v955 = vsub.f32 %v719, %v902
        %v956 = vsub.f32 %v722, %v907
        %v957 = vsub.f32 %v727, %v912
        %v958 = vsub.f32 %v730, %v917
        %v959 = vsub.f32 %v735, %v922
        %v960 = vsub.f32 %v738, %v927
        %v961 = vsub.f32 %v743, %v932
        %v962 = vsub.f32 %v746, %v937
        %v963 = vsub.f32 %v751, %v942
        %v964 = vsub.f32 %v754, %v947
        %v965 = vmul.f32 %v949, 1.442695
        %v966 = vpow.pop %v965
        %v967 = vmul.f32 %v950, 1.442695
        %v968 = vpow.pop %v967
        %v969 = vmul.f32 %v951, 1.442695
        %v970 = vpow.pop %v969
        %v971 = vmul.f32 %v952, 1.442695
        %v972 = vpow.pop %v971
        %v973 = vmul.f32 %v953, 1.442695
        %v974 = vpow.pop %v973
        %v975 = vmul.f32 %v954, 1.442695
        %v976 = vpow.pop %v975
        %v977 = vmul.f32 %v955, 1.442695
        %v978 = vpow.pop %v977
        %v979 = vmul.f32 %v956, 1.442695
        %v980 = vpow.pop %v979
        %v981 = vmul.f32 %v957, 1.442695
        %v982 = vpow.pop %v981
        %v983 = vmul.f32 %v958, 1.442695
        %v984 = vpow.pop %v983
        %v985 = vmul.f32 %v959, 1.442695
        %v986 = vpow.pop %v985
        %v987 = vmul.f32 %v960, 1.442695
        %v988 = vpow.pop %v987
        %v989 = vmul.f32 %v961, 1.442695
        %v990 = vpow.pop %v989
        %v991 = vmul.f32 %v962, 1.442695
        %v992 = vpow.pop %v991
        %v993 = vmul.f32 %v963, 1.442695
        %v994 = vpow.pop %v993
        %v995 = vmul.f32 %v964, 1.442695
        %v996 = vpow.pop %v995
        %v997 = vld [vmem:[#allocation3] sm:$0xff]
        %v998 = vld [vmem:[#allocation3 + $0x8] sm:$0xff]
        %v999 = vld [vmem:[#allocation3 + $0x10] sm:$0xff]
        %v1000 = vld [vmem:[#allocation3 + $0x18] sm:$0xff]
        %v1001 = vld [vmem:[#allocation3 + $0x20] sm:$0xff]
        %v1002 = vld [vmem:[#allocation3 + $0x28] sm:$0xff]
        %v1003 = vld [vmem:[#allocation3 + $0x30] sm:$0xff]
        %v1004 = vld [vmem:[#allocation3 + $0x38] sm:$0xff]
        %v1005 = vld [vmem:[#allocation3 + $0x40] sm:$0xff]
        %v1006 = vld [vmem:[#allocation3 + $0x48] sm:$0xff]
        %v1007 = vld [vmem:[#allocation3 + $0x50] sm:$0xff]
        %v1008 = vld [vmem:[#allocation3 + $0x58] sm:$0xff]
        %v1009 = vld [vmem:[#allocation3 + $0x60] sm:$0xff]
        %v1010 = vld [vmem:[#allocation3 + $0x68] sm:$0xff]
        %v1011 = vld [vmem:[#allocation3 + $0x70] sm:$0xff]
        %v1012 = vld [vmem:[#allocation3 + $0x78] sm:$0xff]
        %v1013 = vmul.f32 %v838, %v997
        %v1014 = vmul.f32 %v840, %v998
        %v1015 = vmul.f32 %v842, %v999
        %v1016 = vmul.f32 %v844, %v1000
        %v1017 = vmul.f32 %v846, %v1001
        %v1018 = vmul.f32 %v848, %v1002
        %v1019 = vmul.f32 %v850, %v1003
        %v1020 = vmul.f32 %v852, %v1004
        %v1021 = vmul.f32 %v854, %v1005
        %v1022 = vmul.f32 %v856, %v1006
        %v1023 = vmul.f32 %v858, %v1007
        %v1024 = vmul.f32 %v860, %v1008
        %v1025 = vmul.f32 %v862, %v1009
        %v1026 = vmul.f32 %v864, %v1010
        %v1027 = vmul.f32 %v866, %v1011
        %v1028 = vmul.f32 %v868, %v1012
        %1029 = vadd.xlane.f32.xlu0 %v966
        %v1030 = vpop.xlane.xlu0 %1029
        %1031 = vadd.xlane.f32.xlu0 %v968
        %v1032 = vpop.xlane.xlu0 %1031
        %1033 = vadd.xlane.f32.xlu0 %v970
        %v1034 = vpop.xlane.xlu0 %1033
        %1035 = vadd.xlane.f32.xlu0 %v972
        %v1036 = vpop.xlane.xlu0 %1035
        %1037 = vadd.xlane.f32.xlu0 %v974
        %v1038 = vpop.xlane.xlu0 %1037
        %1039 = vadd.xlane.f32.xlu0 %v976
        %v1040 = vpop.xlane.xlu0 %1039
        %1041 = vadd.xlane.f32.xlu0 %v978
        %v1042 = vpop.xlane.xlu0 %1041
        %1043 = vadd.xlane.f32.xlu0 %v980
        %v1044 = vpop.xlane.xlu0 %1043
        %1045 = vadd.xlane.f32.xlu0 %v982
        %v1046 = vpop.xlane.xlu0 %1045
        %1047 = vadd.xlane.f32.xlu0 %v984
        %v1048 = vpop.xlane.xlu0 %1047
        %1049 = vadd.xlane.f32.xlu0 %v986
        %v1050 = vpop.xlane.xlu0 %1049
        %1051 = vadd.xlane.f32.xlu0 %v988
        %v1052 = vpop.xlane.xlu0 %1051
        %1053 = vadd.xlane.f32.xlu0 %v990
        %v1054 = vpop.xlane.xlu0 %1053
        %1055 = vadd.xlane.f32.xlu0 %v992
        %v1056 = vpop.xlane.xlu0 %1055
        %1057 = vadd.xlane.f32.xlu0 %v994
        %v1058 = vpop.xlane.xlu0 %1057
        %1059 = vadd.xlane.f32.xlu0 %v996
        %v1060 = vpop.xlane.xlu0 %1059
        %v1061 = vadd.f32 %v1013, %v1030
        %v1062 = vadd.f32 %v1014, %v1032
        %v1063 = vadd.f32 %v1015, %v1034
        %v1064 = vadd.f32 %v1016, %v1036
        %v1065 = vadd.f32 %v1017, %v1038
        %v1066 = vadd.f32 %v1018, %v1040
        %v1067 = vadd.f32 %v1019, %v1042
        %v1068 = vadd.f32 %v1020, %v1044
        %v1069 = vadd.f32 %v1021, %v1046
        %v1070 = vadd.f32 %v1022, %v1048
        %v1071 = vadd.f32 %v1023, %v1050
        %v1072 = vadd.f32 %v1024, %v1052
        %v1073 = vadd.f32 %v1025, %v1054
        %v1074 = vadd.f32 %v1026, %v1056
        %v1075 = vadd.f32 %v1027, %v1058
        %v1076 = vadd.f32 %v1028, %v1060
        %vm1077 = vcmask 7168
        %1078 = vst.msk [vmem:[#allocation3] sm:$0xff] %vm1077, %v1061
        %1079 = vst.msk [vmem:[#allocation3 + $0x8] sm:$0xff] %vm1077, %v1062
        %1080 = vst.msk [vmem:[#allocation3 + $0x10] sm:$0xff] %vm1077, %v1063
        %1081 = vst.msk [vmem:[#allocation3 + $0x18] sm:$0xff] %vm1077, %v1064
        %1082 = vst.msk [vmem:[#allocation3 + $0x20] sm:$0xff] %vm1077, %v1065
        %1083 = vst.msk [vmem:[#allocation3 + $0x28] sm:$0xff] %vm1077, %v1066
        %1084 = vst.msk [vmem:[#allocation3 + $0x30] sm:$0xff] %vm1077, %v1067
        %1085 = vst.msk [vmem:[#allocation3 + $0x38] sm:$0xff] %vm1077, %v1068
        %1086 = vst.msk [vmem:[#allocation3 + $0x40] sm:$0xff] %vm1077, %v1069
        %1087 = vst.msk [vmem:[#allocation3 + $0x48] sm:$0xff] %vm1077, %v1070
        %1088 = vst.msk [vmem:[#allocation3 + $0x50] sm:$0xff] %vm1077, %v1071
        %1089 = vst.msk [vmem:[#allocation3 + $0x58] sm:$0xff] %vm1077, %v1072
        %1090 = vst.msk [vmem:[#allocation3 + $0x60] sm:$0xff] %vm1077, %v1073
        %1091 = vst.msk [vmem:[#allocation3 + $0x68] sm:$0xff] %vm1077, %v1074
        %1092 = vst.msk [vmem:[#allocation3 + $0x70] sm:$0xff] %vm1077, %v1075
        %1093 = vst.msk [vmem:[#allocation3 + $0x78] sm:$0xff] %vm1077, %v1076
        %v1094 = vpack.c.bf16 %v968, %v966
        %v1095 = vpack.c.bf16 %v972, %v970
        %v1096 = vpack.c.bf16 %v976, %v974
        %v1097 = vpack.c.bf16 %v980, %v978
        %v1098 = vpack.c.bf16 %v984, %v982
        %v1099 = vpack.c.bf16 %v988, %v986
        %v1100 = vpack.c.bf16 %v992, %v990
        %v1101 = vpack.c.bf16 %v996, %v994
        %v1102 = vld [vmem:[%s510] sm:$0xf]
        %1103 = vmatprep.subr.bf16.mxu0 0
        %1104 = vmatpush1.bf16.xpose.msra.mxu0 %v1102
        %1105 = vmatprep.subr.bf16.mxu0 0
        %1106 = vmatpush1.bf16.xpose.msra.mxu0 0
        %1107 = vmatprep.subr.bf16.mxu0 0
        %1108 = vmatpush1.bf16.xpose.msra.mxu0 0
        %1109 = vmatprep.subr.bf16.mxu0 0
        %1110 = vmatpush1.bf16.xpose.msra.mxu0 0
        %1111 = vmatprep.subr.bf16.mxu0 0
        %1112 = vmatpush1.bf16.xpose.msra.mxu0 0
        %1113 = vmatprep.subr.bf16.mxu0 0
        %1114 = vmatpush1.bf16.xpose.msra.mxu0 0
        %1115 = vmatprep.subr.bf16.mxu0 0
        %1116 = vmatpush1.bf16.xpose.msra.mxu0 0
        %1117 = vmatprep.subr.bf16.mxu0 0
        %1118 = vmatpush1.bf16.xpose.msra.mxu0 0
        %1119 = vmatprep.subr.bf16.mxu0 0
        %1120 = vmatpush1.bf16.xpose.msra.mxu0 0
        %1121 = vmatprep.subr.bf16.mxu0 0
        %1122 = vmatpush1.bf16.xpose.msra.mxu0 0
        %1123 = vmatprep.subr.bf16.mxu0 0
        %1124 = vmatpush1.bf16.xpose.msra.mxu0 0
        %1125 = vmatprep.subr.bf16.mxu0 0
        %1126 = vmatpush1.bf16.xpose.msra.mxu0 0
        %1127 = vmatprep.subr.bf16.mxu0 0
        %1128 = vmatpush1.bf16.xpose.msra.mxu0 0
        %1129 = vmatprep.subr.bf16.mxu0 0
        %1130 = vmatpush1.bf16.xpose.msra.mxu0 0
        %1131 = vmatprep.subr.bf16.mxu0 0
        %1132 = vmatpush1.bf16.xpose.msra.mxu0 0
        %1133 = vmatprep.subr.bf16.mxu0 0
        %1134 = vmatpush1.bf16.xpose.msra.mxu0 0
        %1135 = vmatprep.mubr.bf16.mxu0 0
        %1136 = vmatmul.mubr.bf16.gmra.mrb[0].mxu0 %v1094
        %v1137 = vpop.f32.mrb[0].mxu0
        %v1138 = vadd.f32 0.0, %v1137
        %v1139 = vpop.f32.mrb[0].mxu0
        %v1140 = vpop.f32.mrb[0].mxu0
        %v1141 = vadd.f32 0.0, %v1140
        %v1142 = vpop.f32.mrb[0].mxu0
        %1143 = vmatprep.mubr.bf16.mxu0 0
        %1144 = vmatmul.mubr.bf16.gmra.mrb[0].mxu0 %v1095
        %v1145 = vpop.f32.mrb[0].mxu0
        %v1146 = vadd.f32 0.0, %v1145
        %v1147 = vpop.f32.mrb[0].mxu0
        %v1148 = vpop.f32.mrb[0].mxu0
        %v1149 = vadd.f32 0.0, %v1148
        %v1150 = vpop.f32.mrb[0].mxu0
        %1151 = vmatprep.mubr.bf16.mxu0 0
        %1152 = vmatmul.mubr.bf16.gmra.mrb[0].mxu0 %v1096
        %v1153 = vpop.f32.mrb[0].mxu0
        %v1154 = vadd.f32 0.0, %v1153
        %v1155 = vpop.f32.mrb[0].mxu0
        %v1156 = vpop.f32.mrb[0].mxu0
        %v1157 = vadd.f32 0.0, %v1156
        %v1158 = vpop.f32.mrb[0].mxu0
        %1159 = vmatprep.mubr.bf16.mxu0 0
        %1160 = vmatmul.mubr.bf16.gmra.mrb[0].mxu0 %v1097
        %v1161 = vpop.f32.mrb[0].mxu0
        %v1162 = vadd.f32 0.0, %v1161
        %v1163 = vpop.f32.mrb[0].mxu0
        %v1164 = vpop.f32.mrb[0].mxu0
        %v1165 = vadd.f32 0.0, %v1164
        %v1166 = vpop.f32.mrb[0].mxu0
        %1167 = vmatprep.mubr.bf16.mxu0 0
        %1168 = vmatmul.mubr.bf16.gmra.mrb[0].mxu0 %v1098
        %v1169 = vpop.f32.mrb[0].mxu0
        %v1170 = vadd.f32 0.0, %v1169
        %v1171 = vpop.f32.mrb[0].mxu0
        %v1172 = vpop.f32.mrb[0].mxu0
        %v1173 = vadd.f32 0.0, %v1172
        %v1174 = vpop.f32.mrb[0].mxu0
        %1175 = vmatprep.mubr.bf16.mxu0 0
        %1176 = vmatmul.mubr.bf16.gmra.mrb[0].mxu0 %v1099
        %v1177 = vpop.f32.mrb[0].mxu0
        %v1178 = vadd.f32 0.0, %v1177
        %v1179 = vpop.f32.mrb[0].mxu0
        %v1180 = vpop.f32.mrb[0].mxu0
        %v1181 = vadd.f32 0.0, %v1180
        %v1182 = vpop.f32.mrb[0].mxu0
        %1183 = vmatprep.mubr.bf16.mxu0 0
        %1184 = vmatmul.mubr.bf16.gmra.mrb[0].mxu0 %v1100
        %v1185 = vpop.f32.mrb[0].mxu0
        %v1186 = vadd.f32 0.0, %v1185
        %v1187 = vpop.f32.mrb[0].mxu0
        %v1188 = vpop.f32.mrb[0].mxu0
        %v1189 = vadd.f32 0.0, %v1188
        %v1190 = vpop.f32.mrb[0].mxu0
        %1191 = vmatprep.mubr.bf16.mxu0 0
        %1192 = vmatmul.mubr.bf16.gmra.mrb[0].mxu0 %v1101
        %v1193 = vpop.f32.mrb[0].mxu0
        %v1194 = vadd.f32 0.0, %v1193
        %v1195 = vpop.f32.mrb[0].mxu0
        %v1196 = vpop.f32.mrb[0].mxu0
        %v1197 = vadd.f32 0.0, %v1196
        %v1198 = vpop.f32.mrb[0].mxu0
        %1199 = vdwg.mxu0
        %v1200 = vld [vmem:[#allocation4] sm:$0xff]
        %v1201 = vld [vmem:[#allocation4 + $0x8] sm:$0xff]
        %v1202 = vld [vmem:[#allocation4 + $0x10] sm:$0xff]
        %v1203 = vld [vmem:[#allocation4 + $0x18] sm:$0xff]
        %v1204 = vld [vmem:[#allocation4 + $0x20] sm:$0xff]
        %v1205 = vld [vmem:[#allocation4 + $0x28] sm:$0xff]
        %v1206 = vld [vmem:[#allocation4 + $0x30] sm:$0xff]
        %v1207 = vld [vmem:[#allocation4 + $0x38] sm:$0xff]
        %v1208 = vld [vmem:[#allocation4 + $0x40] sm:$0xff]
        %v1209 = vld [vmem:[#allocation4 + $0x48] sm:$0xff]
        %v1210 = vld [vmem:[#allocation4 + $0x50] sm:$0xff]
        %v1211 = vld [vmem:[#allocation4 + $0x58] sm:$0xff]
        %v1212 = vld [vmem:[#allocation4 + $0x60] sm:$0xff]
        %v1213 = vld [vmem:[#allocation4 + $0x68] sm:$0xff]
        %v1214 = vld [vmem:[#allocation4 + $0x70] sm:$0xff]
        %v1215 = vld [vmem:[#allocation4 + $0x78] sm:$0xff]
        %1217 = vset.pattern.permute.xlu0 0
        %1218 = vperm.xlu0 %1217, %v838
        %v1219 = vpop.permute.xlu0 %1218
        %1222 = vset.pattern.permute.xlu0 0
        %1223 = vperm.xlu0 %1222, %v840
        %v1224 = vpop.permute.xlu0 %1223
        %1227 = vset.pattern.permute.xlu0 0
        %1228 = vperm.xlu0 %1227, %v842
        %v1229 = vpop.permute.xlu0 %1228
        %1232 = vset.pattern.permute.xlu0 0
        %1233 = vperm.xlu0 %1232, %v844
        %v1234 = vpop.permute.xlu0 %1233
        %1237 = vset.pattern.permute.xlu0 0
        %1238 = vperm.xlu0 %1237, %v846
        %v1239 = vpop.permute.xlu0 %1238
        %1242 = vset.pattern.permute.xlu0 0
        %1243 = vperm.xlu0 %1242, %v848
        %v1244 = vpop.permute.xlu0 %1243
        %1247 = vset.pattern.permute.xlu0 0
        %1248 = vperm.xlu0 %1247, %v850
        %v1249 = vpop.permute.xlu0 %1248
        %1252 = vset.pattern.permute.xlu0 0
        %1253 = vperm.xlu0 %1252, %v852
        %v1254 = vpop.permute.xlu0 %1253
        %1257 = vset.pattern.permute.xlu0 0
        %1258 = vperm.xlu0 %1257, %v854
        %v1259 = vpop.permute.xlu0 %1258
        %1262 = vset.pattern.permute.xlu0 0
        %1263 = vperm.xlu0 %1262, %v856
        %v1264 = vpop.permute.xlu0 %1263
        %1267 = vset.pattern.permute.xlu0 0
        %1268 = vperm.xlu0 %1267, %v858
        %v1269 = vpop.permute.xlu0 %1268
        %1272 = vset.pattern.permute.xlu0 0
        %1273 = vperm.xlu0 %1272, %v860
        %v1274 = vpop.permute.xlu0 %1273
        %1277 = vset.pattern.permute.xlu0 0
        %1278 = vperm.xlu0 %1277, %v862
        %v1279 = vpop.permute.xlu0 %1278
        %1282 = vset.pattern.permute.xlu0 0
        %1283 = vperm.xlu0 %1282, %v864
        %v1284 = vpop.permute.xlu0 %1283
        %1287 = vset.pattern.permute.xlu0 0
        %1288 = vperm.xlu0 %1287, %v866
        %v1289 = vpop.permute.xlu0 %1288
        %1292 = vset.pattern.permute.xlu0 0
        %1293 = vperm.xlu0 %1292, %v868
        %v1294 = vpop.permute.xlu0 %1293
        %v1296 = vmul.f32 %v1219, %v1200
        %v1297 = vmul.f32 %v1224, %v1201
        %v1298 = vmul.f32 %v1229, %v1202
        %v1299 = vmul.f32 %v1234, %v1203
        %v1300 = vmul.f32 %v1239, %v1204
        %v1301 = vmul.f32 %v1244, %v1205
        %v1302 = vmul.f32 %v1249, %v1206
        %v1303 = vmul.f32 %v1254, %v1207
        %v1304 = vmul.f32 %v1259, %v1208
        %v1305 = vmul.f32 %v1264, %v1209
        %v1306 = vmul.f32 %v1269, %v1210
        %v1307 = vmul.f32 %v1274, %v1211
        %v1308 = vmul.f32 %v1279, %v1212
        %v1309 = vmul.f32 %v1284, %v1213
        %v1310 = vmul.f32 %v1289, %v1214
        %v1311 = vmul.f32 %v1294, %v1215
        %v1312 = vadd.f32 %v1296, %v1138
        %v1313 = vadd.f32 %v1297, %v1141
        %v1314 = vadd.f32 %v1298, %v1146
        %v1315 = vadd.f32 %v1299, %v1149
        %v1316 = vadd.f32 %v1300, %v1154
        %v1317 = vadd.f32 %v1301, %v1157
        %v1318 = vadd.f32 %v1302, %v1162
        %v1319 = vadd.f32 %v1303, %v1165
        %v1320 = vadd.f32 %v1304, %v1170
        %v1321 = vadd.f32 %v1305, %v1173
        %v1322 = vadd.f32 %v1306, %v1178
        %v1323 = vadd.f32 %v1307, %v1181
        %v1324 = vadd.f32 %v1308, %v1186
        %v1325 = vadd.f32 %v1309, %v1189
        %v1326 = vadd.f32 %v1310, %v1194
        %v1327 = vadd.f32 %v1311, %v1197
        %1328 = vst.msk [vmem:[#allocation4] sm:$0xff] %vm631, %v1312
        %1329 = vst.msk [vmem:[#allocation4 + $0x8] sm:$0xff] %vm631, %v1313
        %1330 = vst.msk [vmem:[#allocation4 + $0x10] sm:$0xff] %vm631, %v1314
        %1331 = vst.msk [vmem:[#allocation4 + $0x18] sm:$0xff] %vm631, %v1315
        %1332 = vst.msk [vmem:[#allocation4 + $0x20] sm:$0xff] %vm631, %v1316
        %1333 = vst.msk [vmem:[#allocation4 + $0x28] sm:$0xff] %vm631, %v1317
        %1334 = vst.msk [vmem:[#allocation4 + $0x30] sm:$0xff] %vm631, %v1318
        %1335 = vst.msk [vmem:[#allocation4 + $0x38] sm:$0xff] %vm631, %v1319
        %1336 = vst.msk [vmem:[#allocation4 + $0x40] sm:$0xff] %vm631, %v1320
        %1337 = vst.msk [vmem:[#allocation4 + $0x48] sm:$0xff] %vm631, %v1321
        %1338 = vst.msk [vmem:[#allocation4 + $0x50] sm:$0xff] %vm631, %v1322
        %1339 = vst.msk [vmem:[#allocation4 + $0x58] sm:$0xff] %vm631, %v1323
        %1340 = vst.msk [vmem:[#allocation4 + $0x60] sm:$0xff] %vm631, %v1324
        %1341 = vst.msk [vmem:[#allocation4 + $0x68] sm:$0xff] %vm631, %v1325
        %1342 = vst.msk [vmem:[#allocation4 + $0x70] sm:$0xff] %vm631, %v1326
        %1343 = vst.msk [vmem:[#allocation4 + $0x78] sm:$0xff] %vm631, %v1327
        %1344 = vst.msk [vmem:[#allocation2] sm:$0xff] %vm1077, %v805
        %1345 = vst.msk [vmem:[#allocation2 + $0x8] sm:$0xff] %vm1077, %v806
        %1346 = vst.msk [vmem:[#allocation2 + $0x10] sm:$0xff] %vm1077, %v807
        %1347 = vst.msk [vmem:[#allocation2 + $0x18] sm:$0xff] %vm1077, %v808
        %1348 = vst.msk [vmem:[#allocation2 + $0x20] sm:$0xff] %vm1077, %v809
        %1349 = vst.msk [vmem:[#allocation2 + $0x28] sm:$0xff] %vm1077, %v810
        %1350 = vst.msk [vmem:[#allocation2 + $0x30] sm:$0xff] %vm1077, %v811
        %1351 = vst.msk [vmem:[#allocation2 + $0x38] sm:$0xff] %vm1077, %v812
        %1352 = vst.msk [vmem:[#allocation2 + $0x40] sm:$0xff] %vm1077, %v813
        %1353 = vst.msk [vmem:[#allocation2 + $0x48] sm:$0xff] %vm1077, %v814
        %1354 = vst.msk [vmem:[#allocation2 + $0x50] sm:$0xff] %vm1077, %v815
        %1355 = vst.msk [vmem:[#allocation2 + $0x58] sm:$0xff] %vm1077, %v816
        %1356 = vst.msk [vmem:[#allocation2 + $0x60] sm:$0xff] %vm1077, %v817
        %1357 = vst.msk [vmem:[#allocation2 + $0x68] sm:$0xff] %vm1077, %v818
        %1358 = vst.msk [vmem:[#allocation2 + $0x70] sm:$0xff] %vm1077, %v819
        %1359 = vst.msk [vmem:[#allocation2 + $0x78] sm:$0xff] %vm1077, %v820
        %p1360 = scmp.eq.s32.totalorder %s27, 1
        // Predicated region
        $region99: #{nlblock_cross_forward.3} parent=89 // pred_check
          %p1361 = pneg %p1360
        $region100: #{nlblock_cross_forward.3} parent=89 // pred_check_branch
          %1363 = sbr.rel (%p1361) target = $region102
        $region101: #{nlblock_cross_forward.3} parent=89 // pred_region
          %v1364 = vld [vmem:[#allocation4] sm:$0xff]
          %v1365 = vld [vmem:[#allocation4 + $0x8] sm:$0xff]
          %v1366 = vld [vmem:[#allocation4 + $0x10] sm:$0xff]
          %v1367 = vld [vmem:[#allocation4 + $0x18] sm:$0xff]
          %v1368 = vld [vmem:[#allocation4 + $0x20] sm:$0xff]
          %v1369 = vld [vmem:[#allocation4 + $0x28] sm:$0xff]
          %v1370 = vld [vmem:[#allocation4 + $0x30] sm:$0xff]
          %v1371 = vld [vmem:[#allocation4 + $0x38] sm:$0xff]
          %v1372 = vld [vmem:[#allocation4 + $0x40] sm:$0xff]
          %v1373 = vld [vmem:[#allocation4 + $0x48] sm:$0xff]
          %v1374 = vld [vmem:[#allocation4 + $0x50] sm:$0xff]
          %v1375 = vld [vmem:[#allocation4 + $0x58] sm:$0xff]
          %v1376 = vld [vmem:[#allocation4 + $0x60] sm:$0xff]
          %v1377 = vld [vmem:[#allocation4 + $0x68] sm:$0xff]
          %v1378 = vld [vmem:[#allocation4 + $0x70] sm:$0xff]
          %v1379 = vld [vmem:[#allocation4 + $0x78] sm:$0xff]
          %v1380 = vld [vmem:[#allocation3] sm:$0xff]
          %v1381 = vld [vmem:[#allocation3 + $0x8] sm:$0xff]
          %v1382 = vld [vmem:[#allocation3 + $0x10] sm:$0xff]
          %v1383 = vld [vmem:[#allocation3 + $0x18] sm:$0xff]
          %v1384 = vld [vmem:[#allocation3 + $0x20] sm:$0xff]
          %v1385 = vld [vmem:[#allocation3 + $0x28] sm:$0xff]
          %v1386 = vld [vmem:[#allocation3 + $0x30] sm:$0xff]
          %v1387 = vld [vmem:[#allocation3 + $0x38] sm:$0xff]
          %v1388 = vld [vmem:[#allocation3 + $0x40] sm:$0xff]
          %v1389 = vld [vmem:[#allocation3 + $0x48] sm:$0xff]
          %v1390 = vld [vmem:[#allocation3 + $0x50] sm:$0xff]
          %v1391 = vld [vmem:[#allocation3 + $0x58] sm:$0xff]
          %v1392 = vld [vmem:[#allocation3 + $0x60] sm:$0xff]
          %v1393 = vld [vmem:[#allocation3 + $0x68] sm:$0xff]
          %v1394 = vld [vmem:[#allocation3 + $0x70] sm:$0xff]
          %v1395 = vld [vmem:[#allocation3 + $0x78] sm:$0xff]
          %v1396 = vrcp.pop %v1380
          %v1397 = vrcp.pop %v1381
          %v1398 = vrcp.pop %v1382
          %v1399 = vrcp.pop %v1383
          %v1400 = vrcp.pop %v1384
          %v1401 = vrcp.pop %v1385
          %v1402 = vrcp.pop %v1386
          %v1403 = vrcp.pop %v1387
          %v1404 = vrcp.pop %v1388
          %v1405 = vrcp.pop %v1389
          %v1406 = vrcp.pop %v1390
          %v1407 = vrcp.pop %v1391
          %v1408 = vrcp.pop %v1392
          %v1409 = vrcp.pop %v1393
          %v1410 = vrcp.pop %v1394
          %v1411 = vrcp.pop %v1395
          %1413 = vset.pattern.permute.xlu0 0
          %1414 = vperm.xlu0 %1413, %v1396
          %v1415 = vpop.permute.xlu0 %1414
          %1418 = vset.pattern.permute.xlu0 0
          %1419 = vperm.xlu0 %1418, %v1397
          %v1420 = vpop.permute.xlu0 %1419
          %1423 = vset.pattern.permute.xlu0 0
          %1424 = vperm.xlu0 %1423, %v1398
          %v1425 = vpop.permute.xlu0 %1424
          %1428 = vset.pattern.permute.xlu0 0
          %1429 = vperm.xlu0 %1428, %v1399
          %v1430 = vpop.permute.xlu0 %1429
          %1433 = vset.pattern.permute.xlu0 0
          %1434 = vperm.xlu0 %1433, %v1400
          %v1435 = vpop.permute.xlu0 %1434
          %1438 = vset.pattern.permute.xlu0 0
          %1439 = vperm.xlu0 %1438, %v1401
          %v1440 = vpop.permute.xlu0 %1439
          %1443 = vset.pattern.permute.xlu0 0
          %1444 = vperm.xlu0 %1443, %v1402
          %v1445 = vpop.permute.xlu0 %1444
          %1448 = vset.pattern.permute.xlu0 0
          %1449 = vperm.xlu0 %1448, %v1403
          %v1450 = vpop.permute.xlu0 %1449
          %1453 = vset.pattern.permute.xlu0 0
          %1454 = vperm.xlu0 %1453, %v1404
          %v1455 = vpop.permute.xlu0 %1454
          %1458 = vset.pattern.permute.xlu0 0
          %1459 = vperm.xlu0 %1458, %v1405
          %v1460 = vpop.permute.xlu0 %1459
          %1463 = vset.pattern.permute.xlu0 0
          %1464 = vperm.xlu0 %1463, %v1406
          %v1465 = vpop.permute.xlu0 %1464
          %1468 = vset.pattern.permute.xlu0 0
          %1469 = vperm.xlu0 %1468, %v1407
          %v1470 = vpop.permute.xlu0 %1469
          %1473 = vset.pattern.permute.xlu0 0
          %1474 = vperm.xlu0 %1473, %v1408
          %v1475 = vpop.permute.xlu0 %1474
          %1478 = vset.pattern.permute.xlu0 0
          %1479 = vperm.xlu0 %1478, %v1409
          %v1480 = vpop.permute.xlu0 %1479
          %1483 = vset.pattern.permute.xlu0 0
          %1484 = vperm.xlu0 %1483, %v1410
          %v1485 = vpop.permute.xlu0 %1484
          %1488 = vset.pattern.permute.xlu0 0
          %1489 = vperm.xlu0 %1488, %v1411
          %v1490 = vpop.permute.xlu0 %1489
          %v1492 = vmul.f32 %v1364, %v1415
          %v1493 = vmul.f32 %v1365, %v1420
          %v1494 = vmul.f32 %v1366, %v1425
          %v1495 = vmul.f32 %v1367, %v1430
          %v1496 = vmul.f32 %v1368, %v1435
          %v1497 = vmul.f32 %v1369, %v1440
          %v1498 = vmul.f32 %v1370, %v1445
          %v1499 = vmul.f32 %v1371, %v1450
          %v1500 = vmul.f32 %v1372, %v1455
          %v1501 = vmul.f32 %v1373, %v1460
          %v1502 = vmul.f32 %v1374, %v1465
          %v1503 = vmul.f32 %v1375, %v1470
          %v1504 = vmul.f32 %v1376, %v1475
          %v1505 = vmul.f32 %v1377, %v1480
          %v1506 = vmul.f32 %v1378, %v1485
          %v1507 = vmul.f32 %v1379, %v1490
          %1508 = vxpose.xlu0.b32.start [1/16] %v1492, 128
          %1509 = vxpose.xlu0.b32.cont [2/16] %v1493, 128
          %1510 = vxpose.xlu0.b32.cont [3/16] %v1494, 128
          %1511 = vxpose.xlu0.b32.cont [4/16] %v1495, 128
          %1512 = vxpose.xlu0.b32.cont [5/16] %v1496, 128
          %1513 = vxpose.xlu0.b32.cont [6/16] %v1497, 128
          %1514 = vxpose.xlu0.b32.cont [7/16] %v1498, 128
          %1515 = vxpose.xlu0.b32.cont [8/16] %v1499, 128
          %1516 = vxpose.xlu0.b32.cont [9/16] %v1500, 128
          %1517 = vxpose.xlu0.b32.cont [10/16] %v1501, 128
          %1518 = vxpose.xlu0.b32.cont [11/16] %v1502, 128
          %1519 = vxpose.xlu0.b32.cont [12/16] %v1503, 128
          %1520 = vxpose.xlu0.b32.cont [13/16] %v1504, 128
          %1521 = vxpose.xlu0.b32.cont [14/16] %v1505, 128
          %1522 = vxpose.xlu0.b32.cont [15/16] %v1506, 128
          %1523 = vxpose.xlu0.b32.end [16/16] %v1507, 128
          %v1524 = vpop.trf.xlu0
          %v1525 = vpop.trf.xlu0
          %v1526 = vpop.trf.xlu0
          %v1527 = vpop.trf.xlu0
          %v1528 = vpop.trf.xlu0
          %v1529 = vpop.trf.xlu0
          %v1530 = vpop.trf.xlu0
          %v1531 = vpop.trf.xlu0
          %v1532 = vpop.trf.xlu0
          %v1533 = vpop.trf.xlu0
          %v1534 = vpop.trf.xlu0
          %v1535 = vpop.trf.xlu0
          %v1536 = vpop.trf.xlu0
          %v1537 = vpop.trf.xlu0
          %v1538 = vpop.trf.xlu0
          %v1539 = vpop.trf.xlu0
          %v1540 = vld [vmem:[%s518] sm:$0xff]
          %v1541 = vmul.f32 %v1524, %v1540
          %v1542 = vld [vmem:[%s5] sm:$0xff]
          %v1543 = vld [vmem:[%s5 + $0x8] sm:$0xff]
          %v1544 = vld [vmem:[%s6] sm:$0xff]
          %v1545 = vld [vmem:[%s6 + $0x8] sm:$0xff]
          %1547 = vset.pattern.permute.xlu0 0
          %1548 = vperm.xlu0 %1547, %v1544
          %v1549 = vpop.permute.xlu0 %1548
          %1552 = vset.pattern.permute.xlu0 0
          %1553 = vperm.xlu0 %1552, %v1545
          %v1554 = vpop.permute.xlu0 %1553
          %v1557 = vsel %vm631, %v1542, 0
          %v1560 = vsel %vm631, %v1543, 0
          %1562 = vmatprep.subr.mxu0 0.0
          %1563 = vmatpush1.msra.mxu0 %v1541
          %1564 = vmatprep.subr.mxu0 0.0
          %1565 = vmatpush1.msra.mxu0 0.0
          %1566 = vmatprep.subr.mxu0 0.0
          %1567 = vmatpush1.msra.mxu0 0.0
          %1568 = vmatprep.subr.mxu0 0.0
          %1569 = vmatpush1.msra.mxu0 0.0
          %1570 = vmatprep.subr.mxu0 0.0
          %1571 = vmatpush1.msra.mxu0 0.0
          %1572 = vmatprep.subr.mxu0 0.0
          %1573 = vmatpush1.msra.mxu0 0.0
          %1574 = vmatprep.subr.mxu0 0.0
          %1575 = vmatpush1.msra.mxu0 0.0
          %1576 = vmatprep.subr.mxu0 0.0
          %1577 = vmatpush1.msra.mxu0 0.0
          %1578 = vmatprep.subr.mxu0 0.0
          %1579 = vmatpush1.msra.mxu0 0.0
          %1580 = vmatprep.subr.mxu0 0.0
          %1581 = vmatpush1.msra.mxu0 0.0
          %1582 = vmatprep.subr.mxu0 0.0
          %1583 = vmatpush1.msra.mxu0 0.0
          %1584 = vmatprep.subr.mxu0 0.0
          %1585 = vmatpush1.msra.mxu0 0.0
          %1586 = vmatprep.subr.mxu0 0.0
          %1587 = vmatpush1.msra.mxu0 0.0
          %1588 = vmatprep.subr.mxu0 0.0
          %1589 = vmatpush1.msra.mxu0 0.0
          %1590 = vmatprep.subr.mxu0 0.0
          %1591 = vmatpush1.msra.mxu0 0.0
          %1592 = vmatprep.subr.mxu0 0.0
          %1593 = vmatpush1.msra.mxu0 0.0
          %1594 = vmatprep.subr.mxu0 0.0
          %1595 = vmatpush1.msra.mxu0 0.0
          %1596 = vmatprep.subr.mxu0 0.0
          %1597 = vmatpush1.msra.mxu0 0.0
          %1598 = vmatprep.subr.mxu0 0.0
          %1599 = vmatpush1.msra.mxu0 0.0
          %1600 = vmatprep.subr.mxu0 0.0
          %1601 = vmatpush1.msra.mxu0 0.0
          %1602 = vmatprep.subr.mxu0 0.0
          %1603 = vmatpush1.msra.mxu0 0.0
          %1604 = vmatprep.subr.mxu0 0.0
          %1605 = vmatpush1.msra.mxu0 0.0
          %1606 = vmatprep.subr.mxu0 0.0
          %1607 = vmatpush1.msra.mxu0 0.0
          %1608 = vmatprep.subr.mxu0 0.0
          %1609 = vmatpush1.msra.mxu0 0.0
          %1610 = vmatprep.subr.mxu0 0.0
          %1611 = vmatpush1.msra.mxu0 0.0
          %1612 = vmatprep.subr.mxu0 0.0
          %1613 = vmatpush1.msra.mxu0 0.0
          %1614 = vmatprep.subr.mxu0 0.0
          %1615 = vmatpush1.msra.mxu0 0.0
          %1616 = vmatprep.subr.mxu0 0.0
          %1617 = vmatpush1.msra.mxu0 0.0
          %1618 = vmatprep.subr.mxu0 0.0
          %1619 = vmatpush1.msra.mxu0 0.0
          %1620 = vmatprep.subr.mxu0 0.0
          %1621 = vmatpush1.msra.mxu0 0.0
          %1622 = vmatprep.subr.mxu0 0.0
          %1623 = vmatpush1.msra.mxu0 0.0
          %1624 = vmatprep.subr.mxu0 0.0
          %1625 = vmatpush1.msra.mxu0 0.0
          %1626 = vmatprep.mubr.f32.mxu0 0.0
          %1627 = vmatmul.mubr.f32.gmra.mrb[0].mxu0 %v1557
          %v1628 = vpop.f32.mrb[0].mxu0
          %v1629 = vadd.f32 %v1549, %v1628
          %v1630 = vpop.f32.mrb[0].mxu0
          %1631 = vmatprep.mubr.f32.mxu0 0.0
          %1632 = vmatmul.mubr.f32.gmra.mrb[0].mxu0 %v1560
          %v1633 = vpop.f32.mrb[0].mxu0
          %v1634 = vadd.f32 %v1554, %v1633
          %v1635 = vpop.f32.mrb[0].mxu0
          %1636 = vdwg.mxu0
          %v1637 = vld [vmem:[%s7] sm:$0xff]
          %v1638 = vld [vmem:[%s7 + $0x8] sm:$0xff]
          %1640 = vset.pattern.permute.xlu0 0
          %1641 = vperm.xlu0 %1640, %v1637
          %v1642 = vpop.permute.xlu0 %1641
          %1645 = vset.pattern.permute.xlu0 0
          %1646 = vperm.xlu0 %1645, %v1638
          %v1647 = vpop.permute.xlu0 %1646
          %v1649 = vmul.f32 %v1629, %v1642
          %v1650 = vmul.f32 %v1634, %v1647
          %v1651 = vld [vmem:[%s8] sm:$0xff]
          %v1652 = vld [vmem:[%s8 + $0x8] sm:$0xff]
          %1654 = vset.pattern.permute.xlu0 0
          %1655 = vperm.xlu0 %1654, %v1651
          %v1656 = vpop.permute.xlu0 %1655
          %1659 = vset.pattern.permute.xlu0 0
          %1660 = vperm.xlu0 %1659, %v1652
          %v1661 = vpop.permute.xlu0 %1660
          %v1663 = vadd.f32 %v1649, %v1656
          %v1664 = vadd.f32 %v1650, %v1661
          %v1665 = vld [vmem:[%s420] sm:$0xff]
          %v1666 = vld [vmem:[%s420 + $0x8] sm:$0xff]
          %v1667 = vadd.f32 %v1663, %v1665
          %v1668 = vadd.f32 %v1664, %v1666
          %1669 = vst [vmem:[%s484] sm:$0xff] %v1667
          %1670 = vst [vmem:[%s484 + $0x8] sm:$0xff] %v1668
        $region102: #{nlblock_cross_forward.3} parent=89 // pred_fallthru
          _
        %s1671 = sand.u32 %s273, 1
        %s1672 = sand.u32 %s273, 1
        %s1673 = smul.addr %s1672, 16
        %s1674 = scalar_lea.vmem [#allocation6], %s1673
        // Predicated region
        $region103: #{nlblock_cross_forward.3} parent=89 // pred_check
          %p1675 = pneg %p283
        $region104: #{nlblock_cross_forward.3} parent=89 // pred_check_branch
          %1677 = sbr.rel (%p1675) target = $region106
        $region105: #{nlblock_cross_forward.3} parent=89 // pred_region
          %s1678 = smul.addr %s25, 4
          %s1679 = sadd.s32 %s26, %s1678
          %s1680 = smul.addr %s1679, 8
          %s1681 = scalar_lea.vmem %s9, %s1680
          // Predicated region
          $region107: #{nlblock_cross_forward.3} parent=105 // pred_check
            _
          $region108: #{nlblock_cross_forward.3} parent=105 // pred_check_branch
            %1683 = sbr.rel (0) target = $region110
          $region109: #{nlblock_cross_forward.3} parent=105 // pred_region
            // Predicated region
            $region111: #{nlblock_cross_forward.3} parent=109 // pred_check
              _
            $region112: #{nlblock_cross_forward.3} parent=109 // pred_check_branch
              %1685 = sbr.rel (0) target = $region114
            $region113: #{nlblock_cross_forward.3} parent=109 // pred_region
              // Predicated region
              $region126: #{nlblock_cross_forward.3} parent=113 // pred_check
                _
              $region127: #{nlblock_cross_forward.3} parent=113 // pred_check_branch
                %1702 = sbr.rel (0) target = $region129
              $region128: #{nlblock_cross_forward.3} parent=113 // pred_region
                loop: start=0, step=1, limit=1
                $region130: #{nlblock_cross_forward.3} parent=128 // loop_pre_header
                  _
                $region131: #{nlblock_cross_forward.3} parent=128 // loop_header
                  %s1704 = sphi 0, %s1708
                  %p1705 = scmp.ge.s32.totalorder %s1704, 1
                  %s1709 = sphi %s1674, %s1674
                  %s1710 = sphi %s1681, %s1681
                $region132: #{nlblock_cross_forward.3} parent=128 // loop_header_branch
                  %1707 = sbr.rel (%p1705) target = $region136
                $region133: #{nlblock_cross_forward.3} parent=128 // loop_body
                  %v1711 = vld [vmem:[%s1709] sm:$0xff]
                  %1712 = vst [vmem:[%s1710] sm:$0xff] %v1711
                  %v1713 = vld [vmem:[%s1709 + $0x8] sm:$0xff]
                  %1714 = vst [vmem:[%s1710 + $0x10] sm:$0xff] %v1713
                $region134: #{nlblock_cross_forward.3} parent=128 // loop_footer
                  %s1708 = sadd.s32 1, %s1704
                $region135: #{nlblock_cross_forward.3} parent=128 // loop_footer_branch
                  %1703 = sbr.rel target = $region131
                $region136: #{nlblock_cross_forward.3} parent=128 // loop_exit
                  _
              $region129: #{nlblock_cross_forward.3} parent=113 // pred_fallthru
                _
              // Predicated region
              $region137: #{nlblock_cross_forward.3} parent=113 // pred_check
                _
              $region138: #{nlblock_cross_forward.3} parent=113 // pred_check_branch
                %1716 = sbr.rel target = $region140
              $region139: #{nlblock_cross_forward.3} parent=113 // pred_region
                _
              $region140: #{nlblock_cross_forward.3} parent=113 // pred_fallthru
                _
            $region114: #{nlblock_cross_forward.3} parent=109 // pred_fallthru
              _
            // Predicated region
            $region115: #{nlblock_cross_forward.3} parent=109 // pred_check
              _
            $region116: #{nlblock_cross_forward.3} parent=109 // pred_check_branch
              %1687 = sbr.rel target = $region118
            $region117: #{nlblock_cross_forward.3} parent=109 // pred_region
              loop: start=0, step=1, limit=1
              $region119: #{nlblock_cross_forward.3} parent=117 // loop_pre_header
                _
              $region120: #{nlblock_cross_forward.3} parent=117 // loop_header
                %s1690 = sphi 0, %s1694
                %p1691 = scmp.ge.s32.totalorder %s1690, 1
                %s1695 = sphi %s1674, %s1674
                %s1696 = sphi %s1681, %s1681
              $region121: #{nlblock_cross_forward.3} parent=117 // loop_header_branch
                %1693 = sbr.rel (%p1691) target = $region125
              $region122: #{nlblock_cross_forward.3} parent=117 // loop_body
                %v1697 = vld [vmem:[%s1695] sm:$0xff]
                %1698 = vst [vmem:[%s1696] sm:$0xff] %v1697
                %v1699 = vld [vmem:[%s1695 + $0x8] sm:$0xff]
                %1700 = vst [vmem:[%s1696 + $0x10] sm:$0xff] %v1699
              $region123: #{nlblock_cross_forward.3} parent=117 // loop_footer
                %s1694 = sadd.s32 1, %s1690
              $region124: #{nlblock_cross_forward.3} parent=117 // loop_footer_branch
                %1689 = sbr.rel target = $region120
              $region125: #{nlblock_cross_forward.3} parent=117 // loop_exit
                _
            $region118: #{nlblock_cross_forward.3} parent=109 // pred_fallthru
              _
          $region110: #{nlblock_cross_forward.3} parent=105 // pred_fallthru
            _
          %1717 = vnop
        $region106: #{nlblock_cross_forward.3} parent=89 // pred_fallthru
          _
      $region90: #{nlblock_cross_forward.3} parent=5 // pred_fallthru
        _
      %p1718 = scmp.le.s32.totalorder 2, %s15
      // Predicated region
      $region141: #{nlblock_cross_forward.3} parent=5 // pred_check
        %p1719 = pneg %p1718
      $region142: #{nlblock_cross_forward.3} parent=5 // pred_check_branch
        %1721 = sbr.rel (%p1719) target = $region144
      $region143: #{nlblock_cross_forward.3} parent=5 // pred_region
        %s1722 = ssub.s32 %s15, 2
        // Predicated region
        $region145: #{nlblock_cross_forward.3} parent=143 // pred_check
          %p1723 = pneg %p289
        $region146: #{nlblock_cross_forward.3} parent=143 // pred_check_branch
          %1725 = sbr.rel (%p1723) target = $region148
        $region147: #{nlblock_cross_forward.3} parent=143 // pred_region
          %s1726 = sand.u32 %s274, 1
          %s1727 = sand.u32 %s274, 1
          %s1728 = smul.addr %s1727, 16
          %s1729 = scalar_lea.vmem [#allocation6], %s1728
        $region148: #{nlblock_cross_forward.3} parent=143 // pred_fallthru
          _
      $region144: #{nlblock_cross_forward.3} parent=5 // pred_fallthru
        _
    $region6: #{nlblock_cross_forward.3} parent=1 // loop_footer
      %s19 = sadd.s32 1, %s15
    $region7: #{nlblock_cross_forward.3} parent=1 // loop_footer_branch
      %14 = sbr.rel target = $region3
    $region8: #{nlblock_cross_forward.3} parent=1 // loop_exit
      _

</llo_original>
